<compile_context>
chip_gen: v6e
topology: v6e:2x2x1
jax: 0.10.0
libtpu: 0.0.40
codegen_flags: <defaults>
</compile_context>

<pallas_src>
import jax
import jax.numpy as jnp
from jax import lax
from jax.experimental import pallas as pl
from jax.experimental.pallas import tpu as pltpu


# ----------------------------- fused kernel --------------------------------
def _net_fused_kernel(x_ref, t1_ref, b1_ref, t2_ref, b2_ref,
                      wf1_ref, bf1_ref, wf2_ref, bf2_ref, o_ref):
    """Whole forward pass for one image; all intermediates stay in VMEM.

    x_ref  : (1, 4, 7, 28)  image rows split by (row mod 4): x[0,s,q,:] = img[4q+s]
    t1_ref : (5, 28, 240)   conv1 banded weights (per kernel row di);
                            out col = wparity*120 + wpool*10 + cout
    b1_ref : (1, 120)       conv1 bias over (wpool, cout)
    t2_ref : (5, 120, 160)  conv2 banded weights; in col = w*10 + cin,
                            out col = wparity*80 + wpool*20 + cout
    b2_ref : (1, 80)
    wf1_ref: (4, 80, 50)    fc1 weight split per pooled row, cols permuted to
                            the (w, c) activation layout
    bf1_ref: (1, 50)        wf2_ref: (50, 10)   bf2_ref: (1, 10)
    o_ref  : (1, 1, 10)     log-probabilities
    """
    xv = x_ref[0]                                           # (4, 7, 28)

    # ---- conv1 (1->10, k=5) fused with 2x2 max-pool + ReLU ----------------
    # Four row-phase accumulators (conv row = 4*r + m); width taps + pooling
    # parity are baked into the banded weight columns.
    vpool = []
    for m in range(4):
        acc = jnp.zeros((6, 240), jnp.float32)
        for di in range(5):
            s, q = (m + di) % 4, (m + di) // 4
            acc = acc + jnp.dot(xv[s, q:q + 6, :], t1_ref[di],
                                preferred_element_type=jnp.float32)
        vpool.append(jnp.maximum(acc[:, :120], acc[:, 120:]))   # pool over W
    # pool over H (row phases 2s, 2s+1) + bias + ReLU; result stays split by
    # row parity because that is exactly the layout conv2's taps consume.
    p1 = [jnp.maximum(jnp.maximum(vpool[2 * s], vpool[2 * s + 1])
                      + b1_ref[...], 0.0) for s in range(2)]     # 2 x (6, 120)

    # ---- conv2 (10->20, k=5) fused with 2x2 max-pool + ReLU ---------------
    v2 = []
    for m in range(2):
        acc = jnp.zeros((4, 160), jnp.float32)
        for di in range(5):
            s, q = (m + di) % 2, (m + di) // 2
            acc = acc + jnp.dot(p1[s][q:q + 4, :], t2_ref[di],
                                preferred_element_type=jnp.float32)
        v2.append(jnp.maximum(acc[:, :80], acc[:, 80:]))         # pool over W
    p2 = jnp.maximum(jnp.maximum(v2[0], v2[1]) + b2_ref[...], 0.0)  # (4, 80)

    # ---- fc1 + ReLU (dropout = identity in eval mode) ---------------------
    h = jnp.zeros((1, 50), jnp.float32)
    for r in range(4):
        h = h + jnp.dot(p2[r:r + 1, :], wf1_ref[r],
                        preferred_element_type=jnp.float32)
    h = jnp.maximum(h + bf1_ref[...], 0.0)

    # ---- fc2 + log_softmax ------------------------------------------------
    z = jnp.dot(h, wf2_ref[...], preferred_element_type=jnp.float32) + bf2_ref[...]
    z = z - jnp.max(z, axis=-1, keepdims=True)
    z = z - jnp.log(jnp.sum(jnp.exp(z), axis=-1, keepdims=True))
    o_ref[0] = z


# ----------------------------- wrapper --------------------------------------
def net_forward(x_nchw, kp):
    """x_nchw: (N, 1, 28, 28) float32 (PyTorch NCHW). Returns (N, 10) log-probs."""
    N = x_nchw.shape[0]
    x = x_nchw.astype(jnp.float32).reshape(N, 28, 28)
    # split rows by (row mod 4): x4[n, s, q, :] = x[n, 4q + s, :]
    x4 = x.reshape(N, 7, 4, 28).transpose(0, 2, 1, 3)            # (N, 4, 7, 28)

    out = pl.pallas_call(
        _net_fused_kernel,
        out_shape=jax.ShapeDtypeStruct((N, 1, 10), jnp.float32),
        grid=(N,),
        in_specs=[
            pl.BlockSpec((1, 4, 7, 28), lambda b: (b, 0, 0, 0)),
            pl.BlockSpec((5, 28, 240), lambda b: (0, 0, 0)),
            pl.BlockSpec((1, 120), lambda b: (0, 0)),
            pl.BlockSpec((5, 120, 160), lambda b: (0, 0, 0)),
            pl.BlockSpec((1, 80), lambda b: (0, 0)),
            pl.BlockSpec((4, 80, 50), lambda b: (0, 0, 0)),
            pl.BlockSpec((1, 50), lambda b: (0, 0)),
            pl.BlockSpec((50, 10), lambda b: (0, 0)),
            pl.BlockSpec((1, 10), lambda b: (0, 0)),
        ],
        out_specs=pl.BlockSpec((1, 1, 10), lambda b: (b, 0, 0)),
        compiler_params=pltpu.CompilerParams(
            dimension_semantics=("parallel",)),
    )(x4, kp["t1"], kp["b1"], kp["t2"], kp["b2"],
      kp["wf1"], kp["bf1"], kp["wf2"], kp["bf2"])
    return out.reshape(N, 10)


# ----------------------------- parameters -----------------------------------
def init_params(key):
    # Synthetic PyTorch-layout parameters (U(-1/sqrt(fan_in), +)).
    def uni(k, shape, fan_in):
        b = 1.0 / jnp.sqrt(jnp.float32(fan_in))
        return jax.random.uniform(k, shape, jnp.float32, -b, b)

    ks = jax.random.split(key, 8)
    return {
        "conv1_w": uni(ks[0], (10, 1, 5, 5), 25),  "conv1_b": uni(ks[1], (10,), 25),
        "conv2_w": uni(ks[2], (20, 10, 5, 5), 250), "conv2_b": uni(ks[3], (20,), 250),
        "fc1_w": uni(ks[4], (50, 320), 320),        "fc1_b": uni(ks[5], (50,), 320),
        "fc2_w": uni(ks[6], (10, 50), 50),          "fc2_b": uni(ks[7], (10,), 50),
    }


def prepare_kernel_params(p):
    """One-time host-side weight re-layout into the banded/fused kernel format."""
    f32 = jnp.float32
    # conv1: T1[di, win, b*120 + wp*10 + co] = w1[co, di, win - (2wp + b)]
    w1 = p["conv1_w"][:, 0]                                   # (10, 5, 5)
    di = jnp.arange(5)[:, None, None]
    win = jnp.arange(28)[None, :, None]
    col = jnp.arange(240)[None, None, :]
    b_, wp, co = col // 120, (col % 120) // 10, col % 10
    dj = win - (2 * wp + b_)
    t1 = jnp.where((dj >= 0) & (dj < 5), w1[co, di, jnp.clip(dj, 0, 4)], 0.0)
    b1 = jnp.tile(p["conv1_b"], 12)[None, :]                  # (1, 120)

    # conv2: T2[di, w*10 + ci, b*80 + wp*20 + co] = w2[co, ci, di, w - (2wp + b)]
    rin = jnp.arange(120)[None, :, None]
    w_in, ci = rin // 10, rin % 10
    col = jnp.arange(160)[None, None, :]
    b_, wp, co = col // 80, (col % 80) // 20, col % 20
    dj = w_in - (2 * wp + b_)
    t2 = jnp.where((dj >= 0) & (dj < 5),
                   p["conv2_w"][co, ci, di, jnp.clip(dj, 0, 4)], 0.0)
    b2 = jnp.tile(p["conv2_b"], 4)[None, :]                   # (1, 80)

    # fc1: Wf1[h, w*20 + c, o] = fc1_w[o, c*16 + h*4 + w]  (PyTorch NCHW flatten)
    h = jnp.arange(4)[:, None]
    rin = jnp.arange(80)[None, :]
    idx = (rin % 20) * 16 + h * 4 + (rin // 20)               # (4, 80)
    wf1 = jnp.transpose(p["fc1_w"][:, idx], (1, 2, 0))        # (4, 80, 50)

    return {
        "t1": t1.astype(f32), "b1": b1.astype(f32),
        "t2": t2.astype(f32), "b2": b2.astype(f32),
        "wf1": wf1.astype(f32), "bf1": p["fc1_b"][None, :].astype(f32),
        "wf2": p["fc2_w"].T.astype(f32), "bf2": p["fc2_b"][None, :].astype(f32),
    }


# ----------------------------- pure-JAX reference ---------------------------
def reference_forward(x_nchw, p):
    x = x_nchw.astype(jnp.float32)
    dn = ("NCHW", "OIHW", "NCHW")
    y = lax.conv_general_dilated(x, p["conv1_w"], (1, 1), "VALID",
                                 dimension_numbers=dn)
    y = y + p["conv1_b"][None, :, None, None]
    y = lax.reduce_window(y, -jnp.inf, lax.max, (1, 1, 2, 2), (1, 1, 2, 2), "VALID")
    y = jnp.maximum(y, 0.0)
    y = lax.conv_general_dilated(y, p["conv2_w"], (1, 1), "VALID",
                                 dimension_numbers=dn)
    y = y + p["conv2_b"][None, :, None, None]
    y = lax.reduce_window(y, -jnp.inf, lax.max, (1, 1, 2, 2), (1, 1, 2, 2), "VALID")
    y = jnp.maximum(y, 0.0)
    y = y.reshape(y.shape[0], 320)
    y = jnp.maximum(y @ p["fc1_w"].T + p["fc1_b"], 0.0)
    y = y @ p["fc2_w"].T + p["fc2_b"]
    return jax.nn.log_softmax(y, axis=-1)


# ----------------------------- demo / check ---------------------------------
if __name__ == "__main__":
    key = jax.random.PRNGKey(0)
    k_x, k_p = jax.random.split(key)
    x = jax.random.normal(k_x, (2, 1, 28, 28), jnp.float32)   # MNIST-shaped
    params = init_params(k_p)
    kparams = prepare_kernel_params(params)

    fwd = jax.jit(net_forward)
    out = jax.block_until_ready(fwd(x, kparams))

    assert out.shape == (2, 10) and out.dtype == jnp.float32
    # rows must be log-probabilities
    assert jnp.allclose(jnp.sum(jnp.exp(out), axis=1), 1.0, atol=1e-5)
    # cross-check against the pure-JAX reference of the PyTorch forward
    ref = reference_forward(x, params)
    err = jnp.max(jnp.abs(out - ref))
    assert jnp.allclose(out, ref, atol=2e-2, rtol=2e-2), f"max abs err {err}"
    print("KERNEL_OK")
</pallas_src>

<mosaic_0001>
module attributes {stable_mosaic.version = 11 : i64} {
  func.func @_net_fused_kernel(%arg0: i32, %arg1: memref<1x4x7x28xf32, #tpu.memory_space<vmem>>, %arg2: memref<5x28x240xf32, #tpu.memory_space<vmem>>, %arg3: memref<1x120xf32, #tpu.memory_space<vmem>>, %arg4: memref<5x120x160xf32, #tpu.memory_space<vmem>>, %arg5: memref<1x80xf32, #tpu.memory_space<vmem>>, %arg6: memref<4x80x50xf32, #tpu.memory_space<vmem>>, %arg7: memref<1x50xf32, #tpu.memory_space<vmem>>, %arg8: memref<50x10xf32, #tpu.memory_space<vmem>>, %arg9: memref<1x10xf32, #tpu.memory_space<vmem>>, %arg10: memref<1x1x10xf32, #tpu.memory_space<vmem>>) attributes {dimension_semantics = [#tpu.dimension_semantics<parallel>], iteration_bounds = array<i64: 2>, scalar_prefetch = 0 : i64, scratch_operands = 0 : i64, tpu.core_type = #tpu.core_type<tc>, window_params = [{transform_indices = @transform_0, window_bounds = array<i64: 1, 4, 7, 28>}, {pipeline_mode = #tpu.pipeline_mode<synchronous>, transform_indices = @transform_1, window_bounds = array<i64: 5, 28, 240>}, {pipeline_mode = #tpu.pipeline_mode<synchronous>, transform_indices = @transform_2, window_bounds = array<i64: 1, 120>}, {pipeline_mode = #tpu.pipeline_mode<synchronous>, transform_indices = @transform_3, window_bounds = array<i64: 5, 120, 160>}, {pipeline_mode = #tpu.pipeline_mode<synchronous>, transform_indices = @transform_4, window_bounds = array<i64: 1, 80>}, {pipeline_mode = #tpu.pipeline_mode<synchronous>, transform_indices = @transform_5, window_bounds = array<i64: 4, 80, 50>}, {pipeline_mode = #tpu.pipeline_mode<synchronous>, transform_indices = @transform_6, window_bounds = array<i64: 1, 50>}, {pipeline_mode = #tpu.pipeline_mode<synchronous>, transform_indices = @transform_7, window_bounds = array<i64: 50, 10>}, {pipeline_mode = #tpu.pipeline_mode<synchronous>, transform_indices = @transform_8, window_bounds = array<i64: 1, 10>}, {transform_indices = @transform_9, window_bounds = array<i64: 1, 1, 10>}]} {
    %c0 = arith.constant 0 : index
    %c0_0 = arith.constant 0 : index
    %c0_1 = arith.constant 0 : index
    %c0_2 = arith.constant 0 : index
    %0 = vector.load %arg1[%c0, %c0_0, %c0_1, %c0_2] : memref<1x4x7x28xf32, #tpu.memory_space<vmem>>, vector<1x4x7x28xf32>
    %1 = vector.shape_cast %0 : vector<1x4x7x28xf32> to vector<4x7x28xf32>
    %cst = arith.constant 0.000000e+00 : f32
    %2 = vector.broadcast %cst : f32 to vector<6x240xf32>
    %3 = vector.extract_strided_slice %1 {offsets = [0, 0, 0], sizes = [1, 6, 28], strides = [1, 1, 1]} : vector<4x7x28xf32> to vector<1x6x28xf32>
    %4 = vector.shape_cast %3 : vector<1x6x28xf32> to vector<6x28xf32>
    %c0_3 = arith.constant 0 : index
    %c0_4 = arith.constant 0 : index
    %c0_5 = arith.constant 0 : index
    %5 = vector.load %arg2[%c0_3, %c0_4, %c0_5] : memref<5x28x240xf32, #tpu.memory_space<vmem>>, vector<1x28x240xf32>
    %6 = vector.shape_cast %5 : vector<1x28x240xf32> to vector<28x240xf32>
    %cst_6 = arith.constant dense<0.000000e+00> : vector<6x240xf32>
    %7 = tpu.matmul %4, %6, %cst_6 {dimension_numbers = #tpu.dot_dimension_numbers<[1], [0], [0], [1], [0, 0, 1, 1], [], []>} : vector<6x28xf32>, vector<28x240xf32>, vector<6x240xf32> -> vector<6x240xf32>
    %8 = arith.addf %2, %7 : vector<6x240xf32>
    %9 = vector.extract_strided_slice %1 {offsets = [1, 0, 0], sizes = [1, 6, 28], strides = [1, 1, 1]} : vector<4x7x28xf32> to vector<1x6x28xf32>
    %10 = vector.shape_cast %9 : vector<1x6x28xf32> to vector<6x28xf32>
    %c1 = arith.constant 1 : index
    %c0_7 = arith.constant 0 : index
    %c0_8 = arith.constant 0 : index
    %11 = vector.load %arg2[%c1, %c0_7, %c0_8] : memref<5x28x240xf32, #tpu.memory_space<vmem>>, vector<1x28x240xf32>
    %12 = vector.shape_cast %11 : vector<1x28x240xf32> to vector<28x240xf32>
    %cst_9 = arith.constant dense<0.000000e+00> : vector<6x240xf32>
    %13 = tpu.matmul %10, %12, %cst_9 {dimension_numbers = #tpu.dot_dimension_numbers<[1], [0], [0], [1], [0, 0, 1, 1], [], []>} : vector<6x28xf32>, vector<28x240xf32>, vector<6x240xf32> -> vector<6x240xf32>
    %14 = arith.addf %8, %13 : vector<6x240xf32>
    %15 = vector.extract_strided_slice %1 {offsets = [2, 0, 0], sizes = [1, 6, 28], strides = [1, 1, 1]} : vector<4x7x28xf32> to vector<1x6x28xf32>
    %16 = vector.shape_cast %15 : vector<1x6x28xf32> to vector<6x28xf32>
    %c2 = arith.constant 2 : index
    %c0_10 = arith.constant 0 : index
    %c0_11 = arith.constant 0 : index
    %17 = vector.load %arg2[%c2, %c0_10, %c0_11] : memref<5x28x240xf32, #tpu.memory_space<vmem>>, vector<1x28x240xf32>
    %18 = vector.shape_cast %17 : vector<1x28x240xf32> to vector<28x240xf32>
    %cst_12 = arith.constant dense<0.000000e+00> : vector<6x240xf32>
    %19 = tpu.matmul %16, %18, %cst_12 {dimension_numbers = #tpu.dot_dimension_numbers<[1], [0], [0], [1], [0, 0, 1, 1], [], []>} : vector<6x28xf32>, vector<28x240xf32>, vector<6x240xf32> -> vector<6x240xf32>
    %20 = arith.addf %14, %19 : vector<6x240xf32>
    %21 = vector.extract_strided_slice %1 {offsets = [3, 0, 0], sizes = [1, 6, 28], strides = [1, 1, 1]} : vector<4x7x28xf32> to vector<1x6x28xf32>
    %22 = vector.shape_cast %21 : vector<1x6x28xf32> to vector<6x28xf32>
    %c3 = arith.constant 3 : index
    %c0_13 = arith.constant 0 : index
    %c0_14 = arith.constant 0 : index
    %23 = vector.load %arg2[%c3, %c0_13, %c0_14] : memref<5x28x240xf32, #tpu.memory_space<vmem>>, vector<1x28x240xf32>
    %24 = vector.shape_cast %23 : vector<1x28x240xf32> to vector<28x240xf32>
    %cst_15 = arith.constant dense<0.000000e+00> : vector<6x240xf32>
    %25 = tpu.matmul %22, %24, %cst_15 {dimension_numbers = #tpu.dot_dimension_numbers<[1], [0], [0], [1], [0, 0, 1, 1], [], []>} : vector<6x28xf32>, vector<28x240xf32>, vector<6x240xf32> -> vector<6x240xf32>
    %26 = arith.addf %20, %25 : vector<6x240xf32>
    %27 = vector.extract_strided_slice %1 {offsets = [0, 1, 0], sizes = [1, 6, 28], strides = [1, 1, 1]} : vector<4x7x28xf32> to vector<1x6x28xf32>
    %28 = vector.shape_cast %27 : vector<1x6x28xf32> to vector<6x28xf32>
    %c4 = arith.constant 4 : index
    %c0_16 = arith.constant 0 : index
    %c0_17 = arith.constant 0 : index
    %29 = vector.load %arg2[%c4, %c0_16, %c0_17] : memref<5x28x240xf32, #tpu.memory_space<vmem>>, vector<1x28x240xf32>
    %30 = vector.shape_cast %29 : vector<1x28x240xf32> to vector<28x240xf32>
    %cst_18 = arith.constant dense<0.000000e+00> : vector<6x240xf32>
    %31 = tpu.matmul %28, %30, %cst_18 {dimension_numbers = #tpu.dot_dimension_numbers<[1], [0], [0], [1], [0, 0, 1, 1], [], []>} : vector<6x28xf32>, vector<28x240xf32>, vector<6x240xf32> -> vector<6x240xf32>
    %32 = arith.addf %26, %31 : vector<6x240xf32>
    %33 = vector.extract_strided_slice %32 {offsets = [0, 0], sizes = [6, 120], strides = [1, 1]} : vector<6x240xf32> to vector<6x120xf32>
    %34 = vector.extract_strided_slice %32 {offsets = [0, 120], sizes = [6, 120], strides = [1, 1]} : vector<6x240xf32> to vector<6x120xf32>
    %35 = arith.maximumf %33, %34 : vector<6x120xf32>
    %cst_19 = arith.constant 0.000000e+00 : f32
    %36 = vector.broadcast %cst_19 : f32 to vector<6x240xf32>
    %37 = vector.extract_strided_slice %1 {offsets = [1, 0, 0], sizes = [1, 6, 28], strides = [1, 1, 1]} : vector<4x7x28xf32> to vector<1x6x28xf32>
    %38 = vector.shape_cast %37 : vector<1x6x28xf32> to vector<6x28xf32>
    %c0_20 = arith.constant 0 : index
    %c0_21 = arith.constant 0 : index
    %c0_22 = arith.constant 0 : index
    %39 = vector.load %arg2[%c0_20, %c0_21, %c0_22] : memref<5x28x240xf32, #tpu.memory_space<vmem>>, vector<1x28x240xf32>
    %40 = vector.shape_cast %39 : vector<1x28x240xf32> to vector<28x240xf32>
    %cst_23 = arith.constant dense<0.000000e+00> : vector<6x240xf32>
    %41 = tpu.matmul %38, %40, %cst_23 {dimension_numbers = #tpu.dot_dimension_numbers<[1], [0], [0], [1], [0, 0, 1, 1], [], []>} : vector<6x28xf32>, vector<28x240xf32>, vector<6x240xf32> -> vector<6x240xf32>
    %42 = arith.addf %36, %41 : vector<6x240xf32>
    %43 = vector.extract_strided_slice %1 {offsets = [2, 0, 0], sizes = [1, 6, 28], strides = [1, 1, 1]} : vector<4x7x28xf32> to vector<1x6x28xf32>
    %44 = vector.shape_cast %43 : vector<1x6x28xf32> to vector<6x28xf32>
    %c1_24 = arith.constant 1 : index
    %c0_25 = arith.constant 0 : index
    %c0_26 = arith.constant 0 : index
    %45 = vector.load %arg2[%c1_24, %c0_25, %c0_26] : memref<5x28x240xf32, #tpu.memory_space<vmem>>, vector<1x28x240xf32>
    %46 = vector.shape_cast %45 : vector<1x28x240xf32> to vector<28x240xf32>
    %cst_27 = arith.constant dense<0.000000e+00> : vector<6x240xf32>
    %47 = tpu.matmul %44, %46, %cst_27 {dimension_numbers = #tpu.dot_dimension_numbers<[1], [0], [0], [1], [0, 0, 1, 1], [], []>} : vector<6x28xf32>, vector<28x240xf32>, vector<6x240xf32> -> vector<6x240xf32>
    %48 = arith.addf %42, %47 : vector<6x240xf32>
    %49 = vector.extract_strided_slice %1 {offsets = [3, 0, 0], sizes = [1, 6, 28], strides = [1, 1, 1]} : vector<4x7x28xf32> to vector<1x6x28xf32>
    %50 = vector.shape_cast %49 : vector<1x6x28xf32> to vector<6x28xf32>
    %c2_28 = arith.constant 2 : index
    %c0_29 = arith.constant 0 : index
    %c0_30 = arith.constant 0 : index
    %51 = vector.load %arg2[%c2_28, %c0_29, %c0_30] : memref<5x28x240xf32, #tpu.memory_space<vmem>>, vector<1x28x240xf32>
    %52 = vector.shape_cast %51 : vector<1x28x240xf32> to vector<28x240xf32>
    %cst_31 = arith.constant dense<0.000000e+00> : vector<6x240xf32>
    %53 = tpu.matmul %50, %52, %cst_31 {dimension_numbers = #tpu.dot_dimension_numbers<[1], [0], [0], [1], [0, 0, 1, 1], [], []>} : vector<6x28xf32>, vector<28x240xf32>, vector<6x240xf32> -> vector<6x240xf32>
    %54 = arith.addf %48, %53 : vector<6x240xf32>
    %55 = vector.extract_strided_slice %1 {offsets = [0, 1, 0], sizes = [1, 6, 28], strides = [1, 1, 1]} : vector<4x7x28xf32> to vector<1x6x28xf32>
    %56 = vector.shape_cast %55 : vector<1x6x28xf32> to vector<6x28xf32>
    %c3_32 = arith.constant 3 : index
    %c0_33 = arith.constant 0 : index
    %c0_34 = arith.constant 0 : index
    %57 = vector.load %arg2[%c3_32, %c0_33, %c0_34] : memref<5x28x240xf32, #tpu.memory_space<vmem>>, vector<1x28x240xf32>
    %58 = vector.shape_cast %57 : vector<1x28x240xf32> to vector<28x240xf32>
    %cst_35 = arith.constant dense<0.000000e+00> : vector<6x240xf32>
    %59 = tpu.matmul %56, %58, %cst_35 {dimension_numbers = #tpu.dot_dimension_numbers<[1], [0], [0], [1], [0, 0, 1, 1], [], []>} : vector<6x28xf32>, vector<28x240xf32>, vector<6x240xf32> -> vector<6x240xf32>
    %60 = arith.addf %54, %59 : vector<6x240xf32>
    %61 = vector.extract_strided_slice %1 {offsets = [1, 1, 0], sizes = [1, 6, 28], strides = [1, 1, 1]} : vector<4x7x28xf32> to vector<1x6x28xf32>
    %62 = vector.shape_cast %61 : vector<1x6x28xf32> to vector<6x28xf32>
    %c4_36 = arith.constant 4 : index
    %c0_37 = arith.constant 0 : index
    %c0_38 = arith.constant 0 : index
    %63 = vector.load %arg2[%c4_36, %c0_37, %c0_38] : memref<5x28x240xf32, #tpu.memory_space<vmem>>, vector<1x28x240xf32>
    %64 = vector.shape_cast %63 : vector<1x28x240xf32> to vector<28x240xf32>
    %cst_39 = arith.constant dense<0.000000e+00> : vector<6x240xf32>
    %65 = tpu.matmul %62, %64, %cst_39 {dimension_numbers = #tpu.dot_dimension_numbers<[1], [0], [0], [1], [0, 0, 1, 1], [], []>} : vector<6x28xf32>, vector<28x240xf32>, vector<6x240xf32> -> vector<6x240xf32>
    %66 = arith.addf %60, %65 : vector<6x240xf32>
    %67 = vector.extract_strided_slice %66 {offsets = [0, 0], sizes = [6, 120], strides = [1, 1]} : vector<6x240xf32> to vector<6x120xf32>
    %68 = vector.extract_strided_slice %66 {offsets = [0, 120], sizes = [6, 120], strides = [1, 1]} : vector<6x240xf32> to vector<6x120xf32>
    %69 = arith.maximumf %67, %68 : vector<6x120xf32>
    %cst_40 = arith.constant 0.000000e+00 : f32
    %70 = vector.broadcast %cst_40 : f32 to vector<6x240xf32>
    %71 = vector.extract_strided_slice %1 {offsets = [2, 0, 0], sizes = [1, 6, 28], strides = [1, 1, 1]} : vector<4x7x28xf32> to vector<1x6x28xf32>
    %72 = vector.shape_cast %71 : vector<1x6x28xf32> to vector<6x28xf32>
    %c0_41 = arith.constant 0 : index
    %c0_42 = arith.constant 0 : index
    %c0_43 = arith.constant 0 : index
    %73 = vector.load %arg2[%c0_41, %c0_42, %c0_43] : memref<5x28x240xf32, #tpu.memory_space<vmem>>, vector<1x28x240xf32>
    %74 = vector.shape_cast %73 : vector<1x28x240xf32> to vector<28x240xf32>
    %cst_44 = arith.constant dense<0.000000e+00> : vector<6x240xf32>
    %75 = tpu.matmul %72, %74, %cst_44 {dimension_numbers = #tpu.dot_dimension_numbers<[1], [0], [0], [1], [0, 0, 1, 1], [], []>} : vector<6x28xf32>, vector<28x240xf32>, vector<6x240xf32> -> vector<6x240xf32>
    %76 = arith.addf %70, %75 : vector<6x240xf32>
    %77 = vector.extract_strided_slice %1 {offsets = [3, 0, 0], sizes = [1, 6, 28], strides = [1, 1, 1]} : vector<4x7x28xf32> to vector<1x6x28xf32>
    %78 = vector.shape_cast %77 : vector<1x6x28xf32> to vector<6x28xf32>
    %c1_45 = arith.constant 1 : index
    %c0_46 = arith.constant 0 : index
    %c0_47 = arith.constant 0 : index
    %79 = vector.load %arg2[%c1_45, %c0_46, %c0_47] : memref<5x28x240xf32, #tpu.memory_space<vmem>>, vector<1x28x240xf32>
    %80 = vector.shape_cast %79 : vector<1x28x240xf32> to vector<28x240xf32>
    %cst_48 = arith.constant dense<0.000000e+00> : vector<6x240xf32>
    %81 = tpu.matmul %78, %80, %cst_48 {dimension_numbers = #tpu.dot_dimension_numbers<[1], [0], [0], [1], [0, 0, 1, 1], [], []>} : vector<6x28xf32>, vector<28x240xf32>, vector<6x240xf32> -> vector<6x240xf32>
    %82 = arith.addf %76, %81 : vector<6x240xf32>
    %83 = vector.extract_strided_slice %1 {offsets = [0, 1, 0], sizes = [1, 6, 28], strides = [1, 1, 1]} : vector<4x7x28xf32> to vector<1x6x28xf32>
    %84 = vector.shape_cast %83 : vector<1x6x28xf32> to vector<6x28xf32>
    %c2_49 = arith.constant 2 : index
    %c0_50 = arith.constant 0 : index
    %c0_51 = arith.constant 0 : index
    %85 = vector.load %arg2[%c2_49, %c0_50, %c0_51] : memref<5x28x240xf32, #tpu.memory_space<vmem>>, vector<1x28x240xf32>
    %86 = vector.shape_cast %85 : vector<1x28x240xf32> to vector<28x240xf32>
    %cst_52 = arith.constant dense<0.000000e+00> : vector<6x240xf32>
    %87 = tpu.matmul %84, %86, %cst_52 {dimension_numbers = #tpu.dot_dimension_numbers<[1], [0], [0], [1], [0, 0, 1, 1], [], []>} : vector<6x28xf32>, vector<28x240xf32>, vector<6x240xf32> -> vector<6x240xf32>
    %88 = arith.addf %82, %87 : vector<6x240xf32>
    %89 = vector.extract_strided_slice %1 {offsets = [1, 1, 0], sizes = [1, 6, 28], strides = [1, 1, 1]} : vector<4x7x28xf32> to vector<1x6x28xf32>
    %90 = vector.shape_cast %89 : vector<1x6x28xf32> to vector<6x28xf32>
    %c3_53 = arith.constant 3 : index
    %c0_54 = arith.constant 0 : index
    %c0_55 = arith.constant 0 : index
    %91 = vector.load %arg2[%c3_53, %c0_54, %c0_55] : memref<5x28x240xf32, #tpu.memory_space<vmem>>, vector<1x28x240xf32>
    %92 = vector.shape_cast %91 : vector<1x28x240xf32> to vector<28x240xf32>
    %cst_56 = arith.constant dense<0.000000e+00> : vector<6x240xf32>
    %93 = tpu.matmul %90, %92, %cst_56 {dimension_numbers = #tpu.dot_dimension_numbers<[1], [0], [0], [1], [0, 0, 1, 1], [], []>} : vector<6x28xf32>, vector<28x240xf32>, vector<6x240xf32> -> vector<6x240xf32>
    %94 = arith.addf %88, %93 : vector<6x240xf32>
    %95 = vector.extract_strided_slice %1 {offsets = [2, 1, 0], sizes = [1, 6, 28], strides = [1, 1, 1]} : vector<4x7x28xf32> to vector<1x6x28xf32>
    %96 = vector.shape_cast %95 : vector<1x6x28xf32> to vector<6x28xf32>
    %c4_57 = arith.constant 4 : index
    %c0_58 = arith.constant 0 : index
    %c0_59 = arith.constant 0 : index
    %97 = vector.load %arg2[%c4_57, %c0_58, %c0_59] : memref<5x28x240xf32, #tpu.memory_space<vmem>>, vector<1x28x240xf32>
    %98 = vector.shape_cast %97 : vector<1x28x240xf32> to vector<28x240xf32>
    %cst_60 = arith.constant dense<0.000000e+00> : vector<6x240xf32>
    %99 = tpu.matmul %96, %98, %cst_60 {dimension_numbers = #tpu.dot_dimension_numbers<[1], [0], [0], [1], [0, 0, 1, 1], [], []>} : vector<6x28xf32>, vector<28x240xf32>, vector<6x240xf32> -> vector<6x240xf32>
    %100 = arith.addf %94, %99 : vector<6x240xf32>
    %101 = vector.extract_strided_slice %100 {offsets = [0, 0], sizes = [6, 120], strides = [1, 1]} : vector<6x240xf32> to vector<6x120xf32>
    %102 = vector.extract_strided_slice %100 {offsets = [0, 120], sizes = [6, 120], strides = [1, 1]} : vector<6x240xf32> to vector<6x120xf32>
    %103 = arith.maximumf %101, %102 : vector<6x120xf32>
    %cst_61 = arith.constant 0.000000e+00 : f32
    %104 = vector.broadcast %cst_61 : f32 to vector<6x240xf32>
    %105 = vector.extract_strided_slice %1 {offsets = [3, 0, 0], sizes = [1, 6, 28], strides = [1, 1, 1]} : vector<4x7x28xf32> to vector<1x6x28xf32>
    %106 = vector.shape_cast %105 : vector<1x6x28xf32> to vector<6x28xf32>
    %c0_62 = arith.constant 0 : index
    %c0_63 = arith.constant 0 : index
    %c0_64 = arith.constant 0 : index
    %107 = vector.load %arg2[%c0_62, %c0_63, %c0_64] : memref<5x28x240xf32, #tpu.memory_space<vmem>>, vector<1x28x240xf32>
    %108 = vector.shape_cast %107 : vector<1x28x240xf32> to vector<28x240xf32>
    %cst_65 = arith.constant dense<0.000000e+00> : vector<6x240xf32>
    %109 = tpu.matmul %106, %108, %cst_65 {dimension_numbers = #tpu.dot_dimension_numbers<[1], [0], [0], [1], [0, 0, 1, 1], [], []>} : vector<6x28xf32>, vector<28x240xf32>, vector<6x240xf32> -> vector<6x240xf32>
    %110 = arith.addf %104, %109 : vector<6x240xf32>
    %111 = vector.extract_strided_slice %1 {offsets = [0, 1, 0], sizes = [1, 6, 28], strides = [1, 1, 1]} : vector<4x7x28xf32> to vector<1x6x28xf32>
    %112 = vector.shape_cast %111 : vector<1x6x28xf32> to vector<6x28xf32>
    %c1_66 = arith.constant 1 : index
    %c0_67 = arith.constant 0 : index
    %c0_68 = arith.constant 0 : index
    %113 = vector.load %arg2[%c1_66, %c0_67, %c0_68] : memref<5x28x240xf32, #tpu.memory_space<vmem>>, vector<1x28x240xf32>
    %114 = vector.shape_cast %113 : vector<1x28x240xf32> to vector<28x240xf32>
    %cst_69 = arith.constant dense<0.000000e+00> : vector<6x240xf32>
    %115 = tpu.matmul %112, %114, %cst_69 {dimension_numbers = #tpu.dot_dimension_numbers<[1], [0], [0], [1], [0, 0, 1, 1], [], []>} : vector<6x28xf32>, vector<28x240xf32>, vector<6x240xf32> -> vector<6x240xf32>
    %116 = arith.addf %110, %115 : vector<6x240xf32>
    %117 = vector.extract_strided_slice %1 {offsets = [1, 1, 0], sizes = [1, 6, 28], strides = [1, 1, 1]} : vector<4x7x28xf32> to vector<1x6x28xf32>
    %118 = vector.shape_cast %117 : vector<1x6x28xf32> to vector<6x28xf32>
    %c2_70 = arith.constant 2 : index
    %c0_71 = arith.constant 0 : index
    %c0_72 = arith.constant 0 : index
    %119 = vector.load %arg2[%c2_70, %c0_71, %c0_72] : memref<5x28x240xf32, #tpu.memory_space<vmem>>, vector<1x28x240xf32>
    %120 = vector.shape_cast %119 : vector<1x28x240xf32> to vector<28x240xf32>
    %cst_73 = arith.constant dense<0.000000e+00> : vector<6x240xf32>
    %121 = tpu.matmul %118, %120, %cst_73 {dimension_numbers = #tpu.dot_dimension_numbers<[1], [0], [0], [1], [0, 0, 1, 1], [], []>} : vector<6x28xf32>, vector<28x240xf32>, vector<6x240xf32> -> vector<6x240xf32>
    %122 = arith.addf %116, %121 : vector<6x240xf32>
    %123 = vector.extract_strided_slice %1 {offsets = [2, 1, 0], sizes = [1, 6, 28], strides = [1, 1, 1]} : vector<4x7x28xf32> to vector<1x6x28xf32>
    %124 = vector.shape_cast %123 : vector<1x6x28xf32> to vector<6x28xf32>
    %c3_74 = arith.constant 3 : index
    %c0_75 = arith.constant 0 : index
    %c0_76 = arith.constant 0 : index
    %125 = vector.load %arg2[%c3_74, %c0_75, %c0_76] : memref<5x28x240xf32, #tpu.memory_space<vmem>>, vector<1x28x240xf32>
    %126 = vector.shape_cast %125 : vector<1x28x240xf32> to vector<28x240xf32>
    %cst_77 = arith.constant dense<0.000000e+00> : vector<6x240xf32>
    %127 = tpu.matmul %124, %126, %cst_77 {dimension_numbers = #tpu.dot_dimension_numbers<[1], [0], [0], [1], [0, 0, 1, 1], [], []>} : vector<6x28xf32>, vector<28x240xf32>, vector<6x240xf32> -> vector<6x240xf32>
    %128 = arith.addf %122, %127 : vector<6x240xf32>
    %129 = vector.extract_strided_slice %1 {offsets = [3, 1, 0], sizes = [1, 6, 28], strides = [1, 1, 1]} : vector<4x7x28xf32> to vector<1x6x28xf32>
    %130 = vector.shape_cast %129 : vector<1x6x28xf32> to vector<6x28xf32>
    %c4_78 = arith.constant 4 : index
    %c0_79 = arith.constant 0 : index
    %c0_80 = arith.constant 0 : index
    %131 = vector.load %arg2[%c4_78, %c0_79, %c0_80] : memref<5x28x240xf32, #tpu.memory_space<vmem>>, vector<1x28x240xf32>
    %132 = vector.shape_cast %131 : vector<1x28x240xf32> to vector<28x240xf32>
    %cst_81 = arith.constant dense<0.000000e+00> : vector<6x240xf32>
    %133 = tpu.matmul %130, %132, %cst_81 {dimension_numbers = #tpu.dot_dimension_numbers<[1], [0], [0], [1], [0, 0, 1, 1], [], []>} : vector<6x28xf32>, vector<28x240xf32>, vector<6x240xf32> -> vector<6x240xf32>
    %134 = arith.addf %128, %133 : vector<6x240xf32>
    %135 = vector.extract_strided_slice %134 {offsets = [0, 0], sizes = [6, 120], strides = [1, 1]} : vector<6x240xf32> to vector<6x120xf32>
    %136 = vector.extract_strided_slice %134 {offsets = [0, 120], sizes = [6, 120], strides = [1, 1]} : vector<6x240xf32> to vector<6x120xf32>
    %137 = arith.maximumf %135, %136 : vector<6x120xf32>
    %138 = arith.maximumf %35, %69 : vector<6x120xf32>
    %c0_82 = arith.constant 0 : index
    %c0_83 = arith.constant 0 : index
    %139 = vector.load %arg3[%c0_82, %c0_83] : memref<1x120xf32, #tpu.memory_space<vmem>>, vector<1x120xf32>
    %140 = vector.broadcast %139 : vector<1x120xf32> to vector<6x120xf32>
    %141 = arith.addf %138, %140 : vector<6x120xf32>
    %cst_84 = arith.constant 0.000000e+00 : f32
    %142 = vector.broadcast %cst_84 : f32 to vector<6x120xf32>
    %143 = arith.maximumf %141, %142 : vector<6x120xf32>
    %144 = arith.maximumf %103, %137 : vector<6x120xf32>
    %c0_85 = arith.constant 0 : index
    %c0_86 = arith.constant 0 : index
    %145 = vector.load %arg3[%c0_85, %c0_86] : memref<1x120xf32, #tpu.memory_space<vmem>>, vector<1x120xf32>
    %146 = vector.broadcast %145 : vector<1x120xf32> to vector<6x120xf32>
    %147 = arith.addf %144, %146 : vector<6x120xf32>
    %cst_87 = arith.constant 0.000000e+00 : f32
    %148 = vector.broadcast %cst_87 : f32 to vector<6x120xf32>
    %149 = arith.maximumf %147, %148 : vector<6x120xf32>
    %cst_88 = arith.constant 0.000000e+00 : f32
    %150 = vector.broadcast %cst_88 : f32 to vector<4x160xf32>
    %151 = vector.extract_strided_slice %143 {offsets = [0, 0], sizes = [4, 120], strides = [1, 1]} : vector<6x120xf32> to vector<4x120xf32>
    %c0_89 = arith.constant 0 : index
    %c0_90 = arith.constant 0 : index
    %c0_91 = arith.constant 0 : index
    %152 = vector.load %arg4[%c0_89, %c0_90, %c0_91] : memref<5x120x160xf32, #tpu.memory_space<vmem>>, vector<1x120x160xf32>
    %153 = vector.shape_cast %152 : vector<1x120x160xf32> to vector<120x160xf32>
    %cst_92 = arith.constant dense<0.000000e+00> : vector<4x160xf32>
    %154 = tpu.matmul %151, %153, %cst_92 {dimension_numbers = #tpu.dot_dimension_numbers<[1], [0], [0], [1], [0, 0, 1, 1], [], []>} : vector<4x120xf32>, vector<120x160xf32>, vector<4x160xf32> -> vector<4x160xf32>
    %155 = arith.addf %150, %154 : vector<4x160xf32>
    %156 = vector.extract_strided_slice %149 {offsets = [0, 0], sizes = [4, 120], strides = [1, 1]} : vector<6x120xf32> to vector<4x120xf32>
    %c1_93 = arith.constant 1 : index
    %c0_94 = arith.constant 0 : index
    %c0_95 = arith.constant 0 : index
    %157 = vector.load %arg4[%c1_93, %c0_94, %c0_95] : memref<5x120x160xf32, #tpu.memory_space<vmem>>, vector<1x120x160xf32>
    %158 = vector.shape_cast %157 : vector<1x120x160xf32> to vector<120x160xf32>
    %cst_96 = arith.constant dense<0.000000e+00> : vector<4x160xf32>
    %159 = tpu.matmul %156, %158, %cst_96 {dimension_numbers = #tpu.dot_dimension_numbers<[1], [0], [0], [1], [0, 0, 1, 1], [], []>} : vector<4x120xf32>, vector<120x160xf32>, vector<4x160xf32> -> vector<4x160xf32>
    %160 = arith.addf %155, %159 : vector<4x160xf32>
    %161 = vector.extract_strided_slice %143 {offsets = [1, 0], sizes = [4, 120], strides = [1, 1]} : vector<6x120xf32> to vector<4x120xf32>
    %c2_97 = arith.constant 2 : index
    %c0_98 = arith.constant 0 : index
    %c0_99 = arith.constant 0 : index
    %162 = vector.load %arg4[%c2_97, %c0_98, %c0_99] : memref<5x120x160xf32, #tpu.memory_space<vmem>>, vector<1x120x160xf32>
    %163 = vector.shape_cast %162 : vector<1x120x160xf32> to vector<120x160xf32>
    %cst_100 = arith.constant dense<0.000000e+00> : vector<4x160xf32>
    %164 = tpu.matmul %161, %163, %cst_100 {dimension_numbers = #tpu.dot_dimension_numbers<[1], [0], [0], [1], [0, 0, 1, 1], [], []>} : vector<4x120xf32>, vector<120x160xf32>, vector<4x160xf32> -> vector<4x160xf32>
    %165 = arith.addf %160, %164 : vector<4x160xf32>
    %166 = vector.extract_strided_slice %149 {offsets = [1, 0], sizes = [4, 120], strides = [1, 1]} : vector<6x120xf32> to vector<4x120xf32>
    %c3_101 = arith.constant 3 : index
    %c0_102 = arith.constant 0 : index
    %c0_103 = arith.constant 0 : index
    %167 = vector.load %arg4[%c3_101, %c0_102, %c0_103] : memref<5x120x160xf32, #tpu.memory_space<vmem>>, vector<1x120x160xf32>
    %168 = vector.shape_cast %167 : vector<1x120x160xf32> to vector<120x160xf32>
    %cst_104 = arith.constant dense<0.000000e+00> : vector<4x160xf32>
    %169 = tpu.matmul %166, %168, %cst_104 {dimension_numbers = #tpu.dot_dimension_numbers<[1], [0], [0], [1], [0, 0, 1, 1], [], []>} : vector<4x120xf32>, vector<120x160xf32>, vector<4x160xf32> -> vector<4x160xf32>
    %170 = arith.addf %165, %169 : vector<4x160xf32>
    %171 = vector.extract_strided_slice %143 {offsets = [2, 0], sizes = [4, 120], strides = [1, 1]} : vector<6x120xf32> to vector<4x120xf32>
    %c4_105 = arith.constant 4 : index
    %c0_106 = arith.constant 0 : index
    %c0_107 = arith.constant 0 : index
    %172 = vector.load %arg4[%c4_105, %c0_106, %c0_107] : memref<5x120x160xf32, #tpu.memory_space<vmem>>, vector<1x120x160xf32>
    %173 = vector.shape_cast %172 : vector<1x120x160xf32> to vector<120x160xf32>
    %cst_108 = arith.constant dense<0.000000e+00> : vector<4x160xf32>
    %174 = tpu.matmul %171, %173, %cst_108 {dimension_numbers = #tpu.dot_dimension_numbers<[1], [0], [0], [1], [0, 0, 1, 1], [], []>} : vector<4x120xf32>, vector<120x160xf32>, vector<4x160xf32> -> vector<4x160xf32>
    %175 = arith.addf %170, %174 : vector<4x160xf32>
    %176 = vector.extract_strided_slice %175 {offsets = [0, 0], sizes = [4, 80], strides = [1, 1]} : vector<4x160xf32> to vector<4x80xf32>
    %177 = vector.extract_strided_slice %175 {offsets = [0, 80], sizes = [4, 80], strides = [1, 1]} : vector<4x160xf32> to vector<4x80xf32>
    %178 = arith.maximumf %176, %177 : vector<4x80xf32>
    %cst_109 = arith.constant 0.000000e+00 : f32
    %179 = vector.broadcast %cst_109 : f32 to vector<4x160xf32>
    %180 = vector.extract_strided_slice %149 {offsets = [0, 0], sizes = [4, 120], strides = [1, 1]} : vector<6x120xf32> to vector<4x120xf32>
    %c0_110 = arith.constant 0 : index
    %c0_111 = arith.constant 0 : index
    %c0_112 = arith.constant 0 : index
    %181 = vector.load %arg4[%c0_110, %c0_111, %c0_112] : memref<5x120x160xf32, #tpu.memory_space<vmem>>, vector<1x120x160xf32>
    %182 = vector.shape_cast %181 : vector<1x120x160xf32> to vector<120x160xf32>
    %cst_113 = arith.constant dense<0.000000e+00> : vector<4x160xf32>
    %183 = tpu.matmul %180, %182, %cst_113 {dimension_numbers = #tpu.dot_dimension_numbers<[1], [0], [0], [1], [0, 0, 1, 1], [], []>} : vector<4x120xf32>, vector<120x160xf32>, vector<4x160xf32> -> vector<4x160xf32>
    %184 = arith.addf %179, %183 : vector<4x160xf32>
    %185 = vector.extract_strided_slice %143 {offsets = [1, 0], sizes = [4, 120], strides = [1, 1]} : vector<6x120xf32> to vector<4x120xf32>
    %c1_114 = arith.constant 1 : index
    %c0_115 = arith.constant 0 : index
    %c0_116 = arith.constant 0 : index
    %186 = vector.load %arg4[%c1_114, %c0_115, %c0_116] : memref<5x120x160xf32, #tpu.memory_space<vmem>>, vector<1x120x160xf32>
    %187 = vector.shape_cast %186 : vector<1x120x160xf32> to vector<120x160xf32>
    %cst_117 = arith.constant dense<0.000000e+00> : vector<4x160xf32>
    %188 = tpu.matmul %185, %187, %cst_117 {dimension_numbers = #tpu.dot_dimension_numbers<[1], [0], [0], [1], [0, 0, 1, 1], [], []>} : vector<4x120xf32>, vector<120x160xf32>, vector<4x160xf32> -> vector<4x160xf32>
    %189 = arith.addf %184, %188 : vector<4x160xf32>
    %190 = vector.extract_strided_slice %149 {offsets = [1, 0], sizes = [4, 120], strides = [1, 1]} : vector<6x120xf32> to vector<4x120xf32>
    %c2_118 = arith.constant 2 : index
    %c0_119 = arith.constant 0 : index
    %c0_120 = arith.constant 0 : index
    %191 = vector.load %arg4[%c2_118, %c0_119, %c0_120] : memref<5x120x160xf32, #tpu.memory_space<vmem>>, vector<1x120x160xf32>
    %192 = vector.shape_cast %191 : vector<1x120x160xf32> to vector<120x160xf32>
    %cst_121 = arith.constant dense<0.000000e+00> : vector<4x160xf32>
    %193 = tpu.matmul %190, %192, %cst_121 {dimension_numbers = #tpu.dot_dimension_numbers<[1], [0], [0], [1], [0, 0, 1, 1], [], []>} : vector<4x120xf32>, vector<120x160xf32>, vector<4x160xf32> -> vector<4x160xf32>
    %194 = arith.addf %189, %193 : vector<4x160xf32>
    %195 = vector.extract_strided_slice %143 {offsets = [2, 0], sizes = [4, 120], strides = [1, 1]} : vector<6x120xf32> to vector<4x120xf32>
    %c3_122 = arith.constant 3 : index
    %c0_123 = arith.constant 0 : index
    %c0_124 = arith.constant 0 : index
    %196 = vector.load %arg4[%c3_122, %c0_123, %c0_124] : memref<5x120x160xf32, #tpu.memory_space<vmem>>, vector<1x120x160xf32>
    %197 = vector.shape_cast %196 : vector<1x120x160xf32> to vector<120x160xf32>
    %cst_125 = arith.constant dense<0.000000e+00> : vector<4x160xf32>
    %198 = tpu.matmul %195, %197, %cst_125 {dimension_numbers = #tpu.dot_dimension_numbers<[1], [0], [0], [1], [0, 0, 1, 1], [], []>} : vector<4x120xf32>, vector<120x160xf32>, vector<4x160xf32> -> vector<4x160xf32>
    %199 = arith.addf %194, %198 : vector<4x160xf32>
    %200 = vector.extract_strided_slice %149 {offsets = [2, 0], sizes = [4, 120], strides = [1, 1]} : vector<6x120xf32> to vector<4x120xf32>
    %c4_126 = arith.constant 4 : index
    %c0_127 = arith.constant 0 : index
    %c0_128 = arith.constant 0 : index
    %201 = vector.load %arg4[%c4_126, %c0_127, %c0_128] : memref<5x120x160xf32, #tpu.memory_space<vmem>>, vector<1x120x160xf32>
    %202 = vector.shape_cast %201 : vector<1x120x160xf32> to vector<120x160xf32>
    %cst_129 = arith.constant dense<0.000000e+00> : vector<4x160xf32>
    %203 = tpu.matmul %200, %202, %cst_129 {dimension_numbers = #tpu.dot_dimension_numbers<[1], [0], [0], [1], [0, 0, 1, 1], [], []>} : vector<4x120xf32>, vector<120x160xf32>, vector<4x160xf32> -> vector<4x160xf32>
    %204 = arith.addf %199, %203 : vector<4x160xf32>
    %205 = vector.extract_strided_slice %204 {offsets = [0, 0], sizes = [4, 80], strides = [1, 1]} : vector<4x160xf32> to vector<4x80xf32>
    %206 = vector.extract_strided_slice %204 {offsets = [0, 80], sizes = [4, 80], strides = [1, 1]} : vector<4x160xf32> to vector<4x80xf32>
    %207 = arith.maximumf %205, %206 : vector<4x80xf32>
    %208 = arith.maximumf %178, %207 : vector<4x80xf32>
    %c0_130 = arith.constant 0 : index
    %c0_131 = arith.constant 0 : index
    %209 = vector.load %arg5[%c0_130, %c0_131] : memref<1x80xf32, #tpu.memory_space<vmem>>, vector<1x80xf32>
    %210 = vector.broadcast %209 : vector<1x80xf32> to vector<4x80xf32>
    %211 = arith.addf %208, %210 : vector<4x80xf32>
    %cst_132 = arith.constant 0.000000e+00 : f32
    %212 = vector.broadcast %cst_132 : f32 to vector<4x80xf32>
    %213 = arith.maximumf %211, %212 : vector<4x80xf32>
    %cst_133 = arith.constant 0.000000e+00 : f32
    %214 = vector.broadcast %cst_133 : f32 to vector<1x50xf32>
    %215 = vector.extract_strided_slice %213 {offsets = [0, 0], sizes = [1, 80], strides = [1, 1]} : vector<4x80xf32> to vector<1x80xf32>
    %c0_134 = arith.constant 0 : index
    %c0_135 = arith.constant 0 : index
    %c0_136 = arith.constant 0 : index
    %216 = vector.load %arg6[%c0_134, %c0_135, %c0_136] : memref<4x80x50xf32, #tpu.memory_space<vmem>>, vector<1x80x50xf32>
    %217 = vector.shape_cast %216 : vector<1x80x50xf32> to vector<80x50xf32>
    %cst_137 = arith.constant dense<0.000000e+00> : vector<1x50xf32>
    %218 = tpu.matmul %215, %217, %cst_137 {dimension_numbers = #tpu.dot_dimension_numbers<[1], [0], [0], [1], [0, 0, 1, 1], [], []>} : vector<1x80xf32>, vector<80x50xf32>, vector<1x50xf32> -> vector<1x50xf32>
    %219 = arith.addf %214, %218 : vector<1x50xf32>
    %220 = vector.extract_strided_slice %213 {offsets = [1, 0], sizes = [1, 80], strides = [1, 1]} : vector<4x80xf32> to vector<1x80xf32>
    %c1_138 = arith.constant 1 : index
    %c0_139 = arith.constant 0 : index
    %c0_140 = arith.constant 0 : index
    %221 = vector.load %arg6[%c1_138, %c0_139, %c0_140] : memref<4x80x50xf32, #tpu.memory_space<vmem>>, vector<1x80x50xf32>
    %222 = vector.shape_cast %221 : vector<1x80x50xf32> to vector<80x50xf32>
    %cst_141 = arith.constant dense<0.000000e+00> : vector<1x50xf32>
    %223 = tpu.matmul %220, %222, %cst_141 {dimension_numbers = #tpu.dot_dimension_numbers<[1], [0], [0], [1], [0, 0, 1, 1], [], []>} : vector<1x80xf32>, vector<80x50xf32>, vector<1x50xf32> -> vector<1x50xf32>
    %224 = arith.addf %219, %223 : vector<1x50xf32>
    %225 = vector.extract_strided_slice %213 {offsets = [2, 0], sizes = [1, 80], strides = [1, 1]} : vector<4x80xf32> to vector<1x80xf32>
    %c2_142 = arith.constant 2 : index
    %c0_143 = arith.constant 0 : index
    %c0_144 = arith.constant 0 : index
    %226 = vector.load %arg6[%c2_142, %c0_143, %c0_144] : memref<4x80x50xf32, #tpu.memory_space<vmem>>, vector<1x80x50xf32>
    %227 = vector.shape_cast %226 : vector<1x80x50xf32> to vector<80x50xf32>
    %cst_145 = arith.constant dense<0.000000e+00> : vector<1x50xf32>
    %228 = tpu.matmul %225, %227, %cst_145 {dimension_numbers = #tpu.dot_dimension_numbers<[1], [0], [0], [1], [0, 0, 1, 1], [], []>} : vector<1x80xf32>, vector<80x50xf32>, vector<1x50xf32> -> vector<1x50xf32>
    %229 = arith.addf %224, %228 : vector<1x50xf32>
    %230 = vector.extract_strided_slice %213 {offsets = [3, 0], sizes = [1, 80], strides = [1, 1]} : vector<4x80xf32> to vector<1x80xf32>
    %c3_146 = arith.constant 3 : index
    %c0_147 = arith.constant 0 : index
    %c0_148 = arith.constant 0 : index
    %231 = vector.load %arg6[%c3_146, %c0_147, %c0_148] : memref<4x80x50xf32, #tpu.memory_space<vmem>>, vector<1x80x50xf32>
    %232 = vector.shape_cast %231 : vector<1x80x50xf32> to vector<80x50xf32>
    %cst_149 = arith.constant dense<0.000000e+00> : vector<1x50xf32>
    %233 = tpu.matmul %230, %232, %cst_149 {dimension_numbers = #tpu.dot_dimension_numbers<[1], [0], [0], [1], [0, 0, 1, 1], [], []>} : vector<1x80xf32>, vector<80x50xf32>, vector<1x50xf32> -> vector<1x50xf32>
    %234 = arith.addf %229, %233 : vector<1x50xf32>
    %c0_150 = arith.constant 0 : index
    %c0_151 = arith.constant 0 : index
    %235 = vector.load %arg7[%c0_150, %c0_151] : memref<1x50xf32, #tpu.memory_space<vmem>>, vector<1x50xf32>
    %236 = arith.addf %234, %235 : vector<1x50xf32>
    %cst_152 = arith.constant 0.000000e+00 : f32
    %237 = vector.broadcast %cst_152 : f32 to vector<1x50xf32>
    %238 = arith.maximumf %236, %237 : vector<1x50xf32>
    %c0_153 = arith.constant 0 : index
    %c0_154 = arith.constant 0 : index
    %239 = vector.load %arg8[%c0_153, %c0_154] : memref<50x10xf32, #tpu.memory_space<vmem>>, vector<50x10xf32>
    %cst_155 = arith.constant dense<0.000000e+00> : vector<1x10xf32>
    %240 = tpu.matmul %238, %239, %cst_155 {dimension_numbers = #tpu.dot_dimension_numbers<[1], [0], [0], [1], [0, 0, 1, 1], [], []>} : vector<1x50xf32>, vector<50x10xf32>, vector<1x10xf32> -> vector<1x10xf32>
    %c0_156 = arith.constant 0 : index
    %c0_157 = arith.constant 0 : index
    %241 = vector.load %arg9[%c0_156, %c0_157] : memref<1x10xf32, #tpu.memory_space<vmem>>, vector<1x10xf32>
    %242 = arith.addf %240, %241 : vector<1x10xf32>
    %cst_158 = arith.constant dense<0xFF800000> : vector<1xf32>
    %243 = vector.multi_reduction <maximumf>, %242, %cst_158 [1] : vector<1x10xf32> to vector<1xf32>
    %244 = vector.shape_cast %243 : vector<1xf32> to vector<1x1xf32>
    %245 = vector.broadcast %244 : vector<1x1xf32> to vector<1x10xf32>
    %246 = arith.subf %242, %245 : vector<1x10xf32>
    %247 = math.exp %246 : vector<1x10xf32>
    %cst_159 = arith.constant dense<0.000000e+00> : vector<1xf32>
    %248 = vector.multi_reduction <add>, %247, %cst_159 [1] : vector<1x10xf32> to vector<1xf32>
    %249 = vector.shape_cast %248 : vector<1xf32> to vector<1x1xf32>
    %250 = math.log %249 : vector<1x1xf32>
    %251 = vector.broadcast %250 : vector<1x1xf32> to vector<1x10xf32>
    %252 = arith.subf %246, %251 : vector<1x10xf32>
    %c0_160 = arith.constant 0 : index
    %c0_161 = arith.constant 0 : index
    %c0_162 = arith.constant 0 : index
    %253 = vector.load %arg10[%c0_160, %c0_161, %c0_162] : memref<1x1x10xf32, #tpu.memory_space<vmem>>, vector<1x1x10xf32>
    %254 = vector.shape_cast %253 : vector<1x1x10xf32> to vector<1x10xf32>
    %255 = vector.shape_cast %252 : vector<1x10xf32> to vector<1x1x10xf32>
    tpu.vector_store %arg10[%c0_160, %c0_161, %c0_162], %255 {strides = array<i32>} : memref<1x1x10xf32, #tpu.memory_space<vmem>>, vector<1x1x10xf32>,
    return
  }
  func.func @transform_0(%arg0: i32) -> (i32, i32, i32, i32) {
    %c0_i32 = arith.constant 0 : i32
    %c0_i32_0 = arith.constant 0 : i32
    %c0_i32_1 = arith.constant 0 : i32
    %c0_i32_2 = arith.constant 0 : i32
    return %arg0, %c0_i32, %c0_i32_0, %c0_i32_1 : i32, i32, i32, i32
  }
  func.func @transform_1(%arg0: i32) -> (i32, i32, i32) {
    %c0_i32 = arith.constant 0 : i32
    %c0_i32_0 = arith.constant 0 : i32
    %c0_i32_1 = arith.constant 0 : i32
    %c0_i32_2 = arith.constant 0 : i32
    return %c0_i32, %c0_i32_0, %c0_i32_1 : i32, i32, i32
  }
  func.func @transform_2(%arg0: i32) -> (i32, i32) {
    %c0_i32 = arith.constant 0 : i32
    %c0_i32_0 = arith.constant 0 : i32
    %c0_i32_1 = arith.constant 0 : i32
    return %c0_i32, %c0_i32_0 : i32, i32
  }
  func.func @transform_3(%arg0: i32) -> (i32, i32, i32) {
    %c0_i32 = arith.constant 0 : i32
    %c0_i32_0 = arith.constant 0 : i32
    %c0_i32_1 = arith.constant 0 : i32
    %c0_i32_2 = arith.constant 0 : i32
    return %c0_i32, %c0_i32_0, %c0_i32_1 : i32, i32, i32
  }
  func.func @transform_4(%arg0: i32) -> (i32, i32) {
    %c0_i32 = arith.constant 0 : i32
    %c0_i32_0 = arith.constant 0 : i32
    %c0_i32_1 = arith.constant 0 : i32
    return %c0_i32, %c0_i32_0 : i32, i32
  }
  func.func @transform_5(%arg0: i32) -> (i32, i32, i32) {
    %c0_i32 = arith.constant 0 : i32
    %c0_i32_0 = arith.constant 0 : i32
    %c0_i32_1 = arith.constant 0 : i32
    %c0_i32_2 = arith.constant 0 : i32
    return %c0_i32, %c0_i32_0, %c0_i32_1 : i32, i32, i32
  }
  func.func @transform_6(%arg0: i32) -> (i32, i32) {
    %c0_i32 = arith.constant 0 : i32
    %c0_i32_0 = arith.constant 0 : i32
    %c0_i32_1 = arith.constant 0 : i32
    return %c0_i32, %c0_i32_0 : i32, i32
  }
  func.func @transform_7(%arg0: i32) -> (i32, i32) {
    %c0_i32 = arith.constant 0 : i32
    %c0_i32_0 = arith.constant 0 : i32
    %c0_i32_1 = arith.constant 0 : i32
    return %c0_i32, %c0_i32_0 : i32, i32
  }
  func.func @transform_8(%arg0: i32) -> (i32, i32) {
    %c0_i32 = arith.constant 0 : i32
    %c0_i32_0 = arith.constant 0 : i32
    %c0_i32_1 = arith.constant 0 : i32
    return %c0_i32, %c0_i32_0 : i32, i32
  }
  func.func @transform_9(%arg0: i32) -> (i32, i32, i32) {
    %c0_i32 = arith.constant 0 : i32
    %c0_i32_0 = arith.constant 0 : i32
    %c0_i32_1 = arith.constant 0 : i32
    return %arg0, %c0_i32, %c0_i32_0 : i32, i32, i32
  }
}

</mosaic_0001>

<llo_original>
// kernel: net_forward.1
$region0: #{net_forward.1}
  #allocation0 [shape = 'u32[]', space=smem, size = 0x4, offset = 0x4, fixed_abs, tag = 'smem constant byte address 0x4 - core index']
  #allocation1 [shape = 'u32[144,128]{1,0:T(1,128)}', space=vmem, size = 0x12000, scoped, tag = 'internal scratch']
  %s0 = inlined_call_operand.vmem [shape: f32[2,4,7,28], index: 0, kind: input, shape index: {}]
  %s1 = inlined_call_operand.vmem [shape: f32[5,28,240], index: 1, kind: input, shape index: {}]
  %s2 = inlined_call_operand.vmem [shape: f32[1,120], index: 2, kind: input, shape index: {}]
  %s3 = inlined_call_operand.vmem [shape: f32[5,120,160], index: 3, kind: input, shape index: {}]
  %s4 = inlined_call_operand.vmem [shape: f32[1,80], index: 4, kind: input, shape index: {}]
  %s5 = inlined_call_operand.vmem [shape: f32[4,80,50], index: 5, kind: input, shape index: {}]
  %s6 = inlined_call_operand.vmem [shape: f32[1,50], index: 6, kind: input, shape index: {}]
  %s7 = inlined_call_operand.vmem [shape: f32[50,10], index: 7, kind: input, shape index: {}]
  %s8 = inlined_call_operand.vmem [shape: f32[1,10], index: 8, kind: input, shape index: {}]
  %s9 = inlined_call_operand.hbm [shape: f32[2,1,10], index: 9, kind: output, shape index: {}]
  %s10 = sld [smem:[#allocation0]]
  $region69: #{net_forward.1} parent=0
    _
  %s12 = ssub.s32 1, %s10
  %s13 = scalar_select 0, %s12, %s10
  $region1: #{net_forward.1} parent=0
    #allocation2 [shape = 'u8[1024]{0}', space=vmem, size = 0x400, scoped, tag = 'output window, operand 0']
    #allocation3 [shape = 's32[2]{0}', space=sflag, size = 0x8, scoped, tag = 'scoped memory for net_forward.1']
    %14 = vsyncpa [#allocation3], 0
    %s15 = scalar_lea.sflag [#allocation3], 1
    %16 = vsyncpa %s15, 0
    loop: start=0, step=1, limit=4
    $region2: #{net_forward.1} parent=1 // loop_pre_header
      _
    $region3: #{net_forward.1} parent=1 // loop_header
      %s18 = sphi 0, %s22
      %p19 = scmp.ge.s32.totalorder %s18, 4
      %s28 = sphi 0, %s30
      %s31 = sphi 0, %s28
      %s32 = sphi 0, %s31
      %s48 = sphi 0, %s32
      %s52 = sphi 0, %s52
      %s54 = sphi 0, %s52
      %s55 = sphi 0, %s54
      %s69 = sphi 0, %s55
      %s73 = sphi 0, %s73
      %s75 = sphi 0, %s73
      %s76 = sphi 0, %s75
      %s90 = sphi 0, %s76
      %s94 = sphi 0, %s94
      %s96 = sphi 0, %s94
      %s97 = sphi 0, %s96
      %s111 = sphi 0, %s97
      %s115 = sphi 0, %s115
      %s117 = sphi 0, %s115
      %s118 = sphi 0, %s117
      %s132 = sphi 0, %s118
      %s136 = sphi 0, %s136
      %s138 = sphi 0, %s136
      %s139 = sphi 0, %s138
      %s153 = sphi 0, %s139
      %s157 = sphi 0, %s157
      %s159 = sphi 0, %s157
      %s160 = sphi 0, %s159
      %s174 = sphi 0, %s160
      %s178 = sphi 0, %s178
      %s180 = sphi 0, %s178
      %s181 = sphi 0, %s180
      %s195 = sphi 0, %s181
      %s199 = sphi 0, %s199
      %s201 = sphi 0, %s199
      %s202 = sphi 0, %s201
      %s216 = sphi 0, %s202
      %s222 = sphi 0, %s224
      %s225 = sphi 0, %s222
      %s226 = sphi 0, %s225
      %s242 = sphi 0, %s226
    $region4: #{net_forward.1} parent=1 // loop_header_branch
      %21 = sbr.rel (%p19) target = $region8
    $region5: #{net_forward.1} parent=1 // loop_body
      %s23 = ssub.s32 %s18, 1
      %s24 = ssub.s32 %s18, 2
      %s25 = sadd.s32 %s18, 1
      %s26 = ssub.s32 %s18, %s25
      %p27 = scmp.eq.s32.totalorder %s26, 0
      %s29 = sadd.s32 %s28, 1
      %s30 = scalar_select %p27, %s28, %s29
      %p33 = pneg %p27
      %p34 = scmp.eq.s32.totalorder %s18, 1
      %p35 = por %p33, %p34
      %p36 = scmp.ne.s32.totalorder %s28, %s31
      %p37 = scmp.eq.s32.totalorder %s18, 0
      %p38 = por %p36, %p37
      %p39 = scmp.ne.s32.totalorder %s28, %s31
      %p40 = scmp.eq.s32.totalorder %s23, 1
      %p41 = por %p39, %p40
      %p42 = scmp.ne.s32.totalorder %s31, %s32
      %p43 = scmp.eq.s32.totalorder %s23, 0
      %p44 = por %p42, %p43
      %p45 = scmp.ne.s32.totalorder %s31, %s32
      %p46 = scmp.eq.s32.totalorder %s24, 1
      %p47 = por %p45, %p46
      %p49 = scmp.ne.s32.totalorder %s32, %s48
      %p50 = scmp.eq.s32.totalorder %s24, 0
      %p51 = por %p49, %p50
      %s53 = sadd.s32 %s52, 1
      %p56 = scmp.eq.s32.totalorder %s18, 1
      %p57 = scmp.ne.s32.totalorder %s52, %s54
      %p58 = scmp.eq.s32.totalorder %s18, 0
      %p59 = por %p57, %p58
      %p60 = scmp.ne.s32.totalorder %s52, %s54
      %p61 = scmp.eq.s32.totalorder %s23, 1
      %p62 = por %p60, %p61
      %p63 = scmp.ne.s32.totalorder %s54, %s55
      %p64 = scmp.eq.s32.totalorder %s23, 0
      %p65 = por %p63, %p64
      %p66 = scmp.ne.s32.totalorder %s54, %s55
      %p67 = scmp.eq.s32.totalorder %s24, 1
      %p68 = por %p66, %p67
      %p70 = scmp.ne.s32.totalorder %s55, %s69
      %p71 = scmp.eq.s32.totalorder %s24, 0
      %p72 = por %p70, %p71
      %s74 = sadd.s32 %s73, 1
      %p77 = scmp.eq.s32.totalorder %s18, 1
      %p78 = scmp.ne.s32.totalorder %s73, %s75
      %p79 = scmp.eq.s32.totalorder %s18, 0
      %p80 = por %p78, %p79
      %p81 = scmp.ne.s32.totalorder %s73, %s75
      %p82 = scmp.eq.s32.totalorder %s23, 1
      %p83 = por %p81, %p82
      %p84 = scmp.ne.s32.totalorder %s75, %s76
      %p85 = scmp.eq.s32.totalorder %s23, 0
      %p86 = por %p84, %p85
      %p87 = scmp.ne.s32.totalorder %s75, %s76
      %p88 = scmp.eq.s32.totalorder %s24, 1
      %p89 = por %p87, %p88
      %p91 = scmp.ne.s32.totalorder %s76, %s90
      %p92 = scmp.eq.s32.totalorder %s24, 0
      %p93 = por %p91, %p92
      %s95 = sadd.s32 %s94, 1
      %p98 = scmp.eq.s32.totalorder %s18, 1
      %p99 = scmp.ne.s32.totalorder %s94, %s96
      %p100 = scmp.eq.s32.totalorder %s18, 0
      %p101 = por %p99, %p100
      %p102 = scmp.ne.s32.totalorder %s94, %s96
      %p103 = scmp.eq.s32.totalorder %s23, 1
      %p104 = por %p102, %p103
      %p105 = scmp.ne.s32.totalorder %s96, %s97
      %p106 = scmp.eq.s32.totalorder %s23, 0
      %p107 = por %p105, %p106
      %p108 = scmp.ne.s32.totalorder %s96, %s97
      %p109 = scmp.eq.s32.totalorder %s24, 1
      %p110 = por %p108, %p109
      %p112 = scmp.ne.s32.totalorder %s97, %s111
      %p113 = scmp.eq.s32.totalorder %s24, 0
      %p114 = por %p112, %p113
      %s116 = sadd.s32 %s115, 1
      %p119 = scmp.eq.s32.totalorder %s18, 1
      %p120 = scmp.ne.s32.totalorder %s115, %s117
      %p121 = scmp.eq.s32.totalorder %s18, 0
      %p122 = por %p120, %p121
      %p123 = scmp.ne.s32.totalorder %s115, %s117
      %p124 = scmp.eq.s32.totalorder %s23, 1
      %p125 = por %p123, %p124
      %p126 = scmp.ne.s32.totalorder %s117, %s118
      %p127 = scmp.eq.s32.totalorder %s23, 0
      %p128 = por %p126, %p127
      %p129 = scmp.ne.s32.totalorder %s117, %s118
      %p130 = scmp.eq.s32.totalorder %s24, 1
      %p131 = por %p129, %p130
      %p133 = scmp.ne.s32.totalorder %s118, %s132
      %p134 = scmp.eq.s32.totalorder %s24, 0
      %p135 = por %p133, %p134
      %s137 = sadd.s32 %s136, 1
      %p140 = scmp.eq.s32.totalorder %s18, 1
      %p141 = scmp.ne.s32.totalorder %s136, %s138
      %p142 = scmp.eq.s32.totalorder %s18, 0
      %p143 = por %p141, %p142
      %p144 = scmp.ne.s32.totalorder %s136, %s138
      %p145 = scmp.eq.s32.totalorder %s23, 1
      %p146 = por %p144, %p145
      %p147 = scmp.ne.s32.totalorder %s138, %s139
      %p148 = scmp.eq.s32.totalorder %s23, 0
      %p149 = por %p147, %p148
      %p150 = scmp.ne.s32.totalorder %s138, %s139
      %p151 = scmp.eq.s32.totalorder %s24, 1
      %p152 = por %p150, %p151
      %p154 = scmp.ne.s32.totalorder %s139, %s153
      %p155 = scmp.eq.s32.totalorder %s24, 0
      %p156 = por %p154, %p155
      %s158 = sadd.s32 %s157, 1
      %p161 = scmp.eq.s32.totalorder %s18, 1
      %p162 = scmp.ne.s32.totalorder %s157, %s159
      %p163 = scmp.eq.s32.totalorder %s18, 0
      %p164 = por %p162, %p163
      %p165 = scmp.ne.s32.totalorder %s157, %s159
      %p166 = scmp.eq.s32.totalorder %s23, 1
      %p167 = por %p165, %p166
      %p168 = scmp.ne.s32.totalorder %s159, %s160
      %p169 = scmp.eq.s32.totalorder %s23, 0
      %p170 = por %p168, %p169
      %p171 = scmp.ne.s32.totalorder %s159, %s160
      %p172 = scmp.eq.s32.totalorder %s24, 1
      %p173 = por %p171, %p172
      %p175 = scmp.ne.s32.totalorder %s160, %s174
      %p176 = scmp.eq.s32.totalorder %s24, 0
      %p177 = por %p175, %p176
      %s179 = sadd.s32 %s178, 1
      %p182 = scmp.eq.s32.totalorder %s18, 1
      %p183 = scmp.ne.s32.totalorder %s178, %s180
      %p184 = scmp.eq.s32.totalorder %s18, 0
      %p185 = por %p183, %p184
      %p186 = scmp.ne.s32.totalorder %s178, %s180
      %p187 = scmp.eq.s32.totalorder %s23, 1
      %p188 = por %p186, %p187
      %p189 = scmp.ne.s32.totalorder %s180, %s181
      %p190 = scmp.eq.s32.totalorder %s23, 0
      %p191 = por %p189, %p190
      %p192 = scmp.ne.s32.totalorder %s180, %s181
      %p193 = scmp.eq.s32.totalorder %s24, 1
      %p194 = por %p192, %p193
      %p196 = scmp.ne.s32.totalorder %s181, %s195
      %p197 = scmp.eq.s32.totalorder %s24, 0
      %p198 = por %p196, %p197
      %s200 = sadd.s32 %s199, 1
      %p203 = scmp.eq.s32.totalorder %s18, 1
      %p204 = scmp.ne.s32.totalorder %s199, %s201
      %p205 = scmp.eq.s32.totalorder %s18, 0
      %p206 = por %p204, %p205
      %p207 = scmp.ne.s32.totalorder %s199, %s201
      %p208 = scmp.eq.s32.totalorder %s23, 1
      %p209 = por %p207, %p208
      %p210 = scmp.ne.s32.totalorder %s201, %s202
      %p211 = scmp.eq.s32.totalorder %s23, 0
      %p212 = por %p210, %p211
      %p213 = scmp.ne.s32.totalorder %s201, %s202
      %p214 = scmp.eq.s32.totalorder %s24, 1
      %p215 = por %p213, %p214
      %p217 = scmp.ne.s32.totalorder %s202, %s216
      %p218 = scmp.eq.s32.totalorder %s24, 0
      %p219 = por %p217, %p218
      %s220 = ssub.s32 %s18, %s25
      %p221 = scmp.eq.s32.totalorder %s220, 0
      %s223 = sadd.s32 %s222, 1
      %s224 = scalar_select %p221, %s222, %s223
      %p227 = pneg %p221
      %p228 = scmp.eq.s32.totalorder %s18, 1
      %p229 = por %p227, %p228
      %p230 = scmp.ne.s32.totalorder %s222, %s225
      %p231 = scmp.eq.s32.totalorder %s18, 0
      %p232 = por %p230, %p231
      %p233 = scmp.ne.s32.totalorder %s222, %s225
      %p234 = scmp.eq.s32.totalorder %s23, 1
      %p235 = por %p233, %p234
      %p236 = scmp.ne.s32.totalorder %s225, %s226
      %p237 = scmp.eq.s32.totalorder %s23, 0
      %p238 = por %p236, %p237
      %p239 = scmp.ne.s32.totalorder %s225, %s226
      %p240 = scmp.eq.s32.totalorder %s24, 1
      %p241 = por %p239, %p240
      %p243 = scmp.ne.s32.totalorder %s226, %s242
      %p244 = scmp.eq.s32.totalorder %s24, 0
      %p245 = por %p243, %p244
      %p246 = scmp.le.s32.totalorder 1, %s18
      %p247 = scmp.lt.s32.totalorder %s18, 3
      %p248 = pnand %p246, %p247
      %p249 = pneg %p248
      // Predicated region
      $region9: #{net_forward.1} parent=5 // pred_check
        _
      $region10: #{net_forward.1} parent=5 // pred_check_branch
        %251 = sbr.rel (%p248) target = $region12
      $region11: #{net_forward.1} parent=5 // pred_region
        %s252 = ssub.s32 %s18, 1
        // Predicated region
        $region13: #{net_forward.1} parent=11 // pred_check
          %p253 = pneg %p65
        $region14: #{net_forward.1} parent=11 // pred_check_branch
          %255 = sbr.rel (%p253) target = $region16
        $region15: #{net_forward.1} parent=11 // pred_region
          _
        $region16: #{net_forward.1} parent=11 // pred_fallthru
          _
        // Predicated region
        $region17: #{net_forward.1} parent=11 // pred_check
          %p256 = pneg %p86
        $region18: #{net_forward.1} parent=11 // pred_check_branch
          %258 = sbr.rel (%p256) target = $region20
        $region19: #{net_forward.1} parent=11 // pred_region
          _
        $region20: #{net_forward.1} parent=11 // pred_fallthru
          _
        // Predicated region
        $region21: #{net_forward.1} parent=11 // pred_check
          %p259 = pneg %p107
        $region22: #{net_forward.1} parent=11 // pred_check_branch
          %261 = sbr.rel (%p259) target = $region24
        $region23: #{net_forward.1} parent=11 // pred_region
          _
        $region24: #{net_forward.1} parent=11 // pred_fallthru
          _
        // Predicated region
        $region25: #{net_forward.1} parent=11 // pred_check
          %p262 = pneg %p128
        $region26: #{net_forward.1} parent=11 // pred_check_branch
          %264 = sbr.rel (%p262) target = $region28
        $region27: #{net_forward.1} parent=11 // pred_region
          _
        $region28: #{net_forward.1} parent=11 // pred_fallthru
          _
        // Predicated region
        $region29: #{net_forward.1} parent=11 // pred_check
          %p265 = pneg %p149
        $region30: #{net_forward.1} parent=11 // pred_check_branch
          %267 = sbr.rel (%p265) target = $region32
        $region31: #{net_forward.1} parent=11 // pred_region
          _
        $region32: #{net_forward.1} parent=11 // pred_fallthru
          _
        // Predicated region
        $region33: #{net_forward.1} parent=11 // pred_check
          %p268 = pneg %p170
        $region34: #{net_forward.1} parent=11 // pred_check_branch
          %270 = sbr.rel (%p268) target = $region36
        $region35: #{net_forward.1} parent=11 // pred_region
          _
        $region36: #{net_forward.1} parent=11 // pred_fallthru
          _
        // Predicated region
        $region37: #{net_forward.1} parent=11 // pred_check
          %p271 = pneg %p191
        $region38: #{net_forward.1} parent=11 // pred_check_branch
          %273 = sbr.rel (%p271) target = $region40
        $region39: #{net_forward.1} parent=11 // pred_region
          _
        $region40: #{net_forward.1} parent=11 // pred_fallthru
          _
        // Predicated region
        $region41: #{net_forward.1} parent=11 // pred_check
          %p274 = pneg %p212
        $region42: #{net_forward.1} parent=11 // pred_check_branch
          %276 = sbr.rel (%p274) target = $region44
        $region43: #{net_forward.1} parent=11 // pred_region
          _
        $region44: #{net_forward.1} parent=11 // pred_fallthru
          _
      $region12: #{net_forward.1} parent=5 // pred_fallthru
        _
      %p277 = scmp.lt.s32.totalorder %s18, 2
      // Predicated region
      $region45: #{net_forward.1} parent=5 // pred_check
        %p278 = pneg %p277
      $region46: #{net_forward.1} parent=5 // pred_check_branch
        %280 = sbr.rel (%p278) target = $region48
      $region47: #{net_forward.1} parent=5 // pred_region
        // Predicated region
        $region49: #{net_forward.1} parent=47 // pred_check
          %p281 = pneg %p38
        $region50: #{net_forward.1} parent=47 // pred_check_branch
          %283 = sbr.rel (%p281) target = $region52
        $region51: #{net_forward.1} parent=47 // pred_region
          %p284 = scmp.lt.s32.totalorder %s18, 1
          %s285 = scalar_select %p284, %s18, 1
          %s286 = smul.addr %s285, 4
          %s287 = smul.addr %s286, 8
          %s288 = scalar_lea.vmem %s0, %s287
        $region52: #{net_forward.1} parent=47 // pred_fallthru
          _
      $region48: #{net_forward.1} parent=5 // pred_fallthru
        _
      %p289 = scmp.le.s32.totalorder 1, %s18
      %p290 = scmp.lt.s32.totalorder %s18, 3
      %p291 = pnand %p289, %p290
      %p292 = pneg %p291
      // Predicated region
      $region53: #{net_forward.1} parent=5 // pred_check
        _
      $region54: #{net_forward.1} parent=5 // pred_check_branch
        %294 = sbr.rel (%p291) target = $region56
      $region55: #{net_forward.1} parent=5 // pred_region
        %s295 = ssub.s32 %s18, 1
        %p296 = scmp.lt.s32.totalorder %s23, 1
        %s297 = scalar_select %p296, %s23, 1
        %s298 = smul.addr %s297, 4
        %s299 = smul.addr %s298, 8
        %s300 = scalar_lea.vmem %s0, %s299
        %p301 = pneg %p44
        %p302 = pneg %p41
        %p303 = pneg %p65
        %p304 = pneg %p62
        %p305 = pneg %p86
        %p306 = pneg %p83
        %p307 = pneg %p107
        %p308 = pneg %p104
        %p309 = pneg %p128
        %p310 = pneg %p125
        %p311 = pneg %p149
        %p312 = pneg %p146
        %p313 = pneg %p170
        %p314 = pneg %p167
        %p315 = pneg %p191
        %p316 = pneg %p188
        %p317 = pneg %p212
        %p318 = pneg %p209
        %p319 = pneg %p238
        %p320 = pneg %p235
        %s321 = sand.u32 %s225, 1
        %s322 = scalar_lea.sflag [#allocation3], %s321
        %s323 = sand.u32 %s225, 1
        %s324 = scalar_lea.vmem [#allocation2], %s323
        %p325 = scmp.lt.s32.totalorder %s23, 1
        %s326 = scalar_select %p325, %s23, 1
        %s327 = smul.addr %s326, 4
        %s328 = smul.addr %s327, 8
        %s329 = scalar_lea.vmem %s0, %s328
        %v330 = vld [vmem:[%s329] sm:$0x7f]
        %v331 = vld [vmem:[%s329 + $0x8] sm:$0x7f]
        %v332 = vld [vmem:[%s329 + $0x10] sm:$0x7f]
        %v333 = vld [vmem:[%s329 + $0x18] sm:$0x7f]
        %v334 = vld [vmem:[%s1] sm:$0xff]
        %v335 = vld [vmem:[%s1 + $0x8] sm:$0xff]
        %v336 = vld [vmem:[%s1 + $0x10] sm:$0xff]
        %v337 = vld [vmem:[%s1 + $0x18] sm:$0xff]
        %v338 = vld [vmem:[%s1 + $0x20] sm:$0xff]
        %v339 = vld [vmem:[%s1 + $0x28] sm:$0xff]
        %v340 = vld [vmem:[%s1 + $0x30] sm:$0xf]
        %v341 = vld [vmem:[%s1 + $0x38] sm:$0xf]
        %s342 = scalar_lea.vmem %s1, 64
        %v343 = vld [vmem:[%s342] sm:$0xff]
        %v344 = vld [vmem:[%s342 + $0x8] sm:$0xff]
        %v345 = vld [vmem:[%s342 + $0x10] sm:$0xff]
        %v346 = vld [vmem:[%s342 + $0x18] sm:$0xff]
        %v347 = vld [vmem:[%s342 + $0x20] sm:$0xff]
        %v348 = vld [vmem:[%s342 + $0x28] sm:$0xff]
        %v349 = vld [vmem:[%s342 + $0x30] sm:$0xf]
        %v350 = vld [vmem:[%s342 + $0x38] sm:$0xf]
        %vm351 = vcmask 228352
        %v353 = vsel %vm351, %v331, 0
        %vm355 = vcmask 1043456
        %v357 = vsel %vm355, %v349, 0
        %v360 = vsel %vm355, %v350, 0
        %362 = vmatprep.subr.mxu0 0.0
        %363 = vmatpush1.msra.mxu0 0.0
        %364 = vmatprep.subr.mxu0 0.0
        %365 = vmatpush1.msra.mxu0 0.0
        %366 = vmatprep.subr.mxu0 0.0
        %367 = vmatpush1.msra.mxu0 0.0
        %368 = vmatprep.subr.mxu0 0.0
        %369 = vmatpush1.msra.mxu0 0.0
        %370 = vmatprep.subr.mxu0 0.0
        %371 = vmatpush1.msra.mxu0 0.0
        %372 = vmatprep.subr.mxu0 0.0
        %373 = vmatpush1.msra.mxu0 0.0
        %374 = vmatprep.subr.mxu0 0.0
        %375 = vmatpush1.msra.mxu0 0.0
        %376 = vmatprep.subr.mxu0 0.0
        %377 = vmatpush1.msra.mxu0 0.0
        %378 = vmatprep.subr.mxu0 0.0
        %379 = vmatpush1.msra.mxu0 0.0
        %380 = vmatprep.subr.mxu0 0.0
        %381 = vmatpush1.msra.mxu0 0.0
        %382 = vmatprep.subr.mxu0 0.0
        %383 = vmatpush1.msra.mxu0 0.0
        %384 = vmatprep.subr.mxu0 0.0
        %385 = vmatpush1.msra.mxu0 0.0
        %386 = vmatprep.subr.mxu0 %v360
        %387 = vmatpush1.msra.mxu0 %v357
        %388 = vmatprep.subr.mxu0 %v348
        %389 = vmatpush1.msra.mxu0 %v347
        %390 = vmatprep.subr.mxu0 %v346
        %391 = vmatpush1.msra.mxu0 %v345
        %392 = vmatprep.subr.mxu0 %v344
        %393 = vmatpush1.msra.mxu0 %v343
        %394 = vmatprep.subr.mxu0 0.0
        %395 = vmatpush2.msra.mxu0 0.0
        %396 = vmatprep.subr.mxu0 0.0
        %397 = vmatpush2.msra.mxu0 0.0
        %398 = vmatprep.subr.mxu0 0.0
        %399 = vmatpush2.msra.mxu0 0.0
        %400 = vmatprep.subr.mxu0 0.0
        %401 = vmatpush2.msra.mxu0 0.0
        %402 = vmatprep.subr.mxu0 0.0
        %403 = vmatpush2.msra.mxu0 0.0
        %404 = vmatprep.subr.mxu0 0.0
        %405 = vmatpush2.msra.mxu0 0.0
        %406 = vmatprep.subr.mxu0 0.0
        %407 = vmatpush2.msra.mxu0 0.0
        %408 = vmatprep.subr.mxu0 0.0
        %409 = vmatpush2.msra.mxu0 0.0
        %410 = vmatprep.subr.mxu0 0.0
        %411 = vmatpush2.msra.mxu0 0.0
        %412 = vmatprep.subr.mxu0 0.0
        %413 = vmatpush2.msra.mxu0 0.0
        %414 = vmatprep.subr.mxu0 0.0
        %415 = vmatpush2.msra.mxu0 0.0
        %416 = vmatprep.subr.mxu0 0.0
        %417 = vmatpush2.msra.mxu0 0.0
        %418 = vmatprep.subr.mxu0 0.0
        %419 = vmatpush2.msra.mxu0 0.0
        %420 = vmatprep.subr.mxu0 0.0
        %421 = vmatpush2.msra.mxu0 0.0
        %422 = vmatprep.subr.mxu0 0.0
        %423 = vmatpush2.msra.mxu0 0.0
        %424 = vmatprep.subr.mxu0 0.0
        %425 = vmatpush2.msra.mxu0 0.0
        %426 = vmatprep.mubr.f32.mxu0 0.0
        %427 = vmatmul.mubr.f32.gmra.mxu0 %v353
        %v428 = vpop.f32.mrf.mxu0
        %v429 = vadd.f32 0.0, %v428
        %v430 = vpop.f32.mrf.mxu0
        %v431 = vadd.f32 0.0, %v430
        %432 = vdwg.mxu0
        %v434 = vsel %vm351, %v330, 0
        %v437 = vsel %vm355, %v340, 0
        %v440 = vsel %vm355, %v341, 0
        %442 = vmatprep.subr.mxu0 0.0
        %443 = vmatpush1.msra.mxu0 0.0
        %444 = vmatprep.subr.mxu0 0.0
        %445 = vmatpush1.msra.mxu0 0.0
        %446 = vmatprep.subr.mxu0 0.0
        %447 = vmatpush1.msra.mxu0 0.0
        %448 = vmatprep.subr.mxu0 0.0
        %449 = vmatpush1.msra.mxu0 0.0
        %450 = vmatprep.subr.mxu0 0.0
        %451 = vmatpush1.msra.mxu0 0.0
        %452 = vmatprep.subr.mxu0 0.0
        %453 = vmatpush1.msra.mxu0 0.0
        %454 = vmatprep.subr.mxu0 0.0
        %455 = vmatpush1.msra.mxu0 0.0
        %456 = vmatprep.subr.mxu0 0.0
        %457 = vmatpush1.msra.mxu0 0.0
        %458 = vmatprep.subr.mxu0 0.0
        %459 = vmatpush1.msra.mxu0 0.0
        %460 = vmatprep.subr.mxu0 0.0
        %461 = vmatpush1.msra.mxu0 0.0
        %462 = vmatprep.subr.mxu0 0.0
        %463 = vmatpush1.msra.mxu0 0.0
        %464 = vmatprep.subr.mxu0 0.0
        %465 = vmatpush1.msra.mxu0 0.0
        %466 = vmatprep.subr.mxu0 %v440
        %467 = vmatpush1.msra.mxu0 %v437
        %468 = vmatprep.subr.mxu0 %v339
        %469 = vmatpush1.msra.mxu0 %v338
        %470 = vmatprep.subr.mxu0 %v337
        %471 = vmatpush1.msra.mxu0 %v336
        %472 = vmatprep.subr.mxu0 %v335
        %473 = vmatpush1.msra.mxu0 %v334
        %474 = vmatprep.subr.mxu0 0.0
        %475 = vmatpush2.msra.mxu0 0.0
        %476 = vmatprep.subr.mxu0 0.0
        %477 = vmatpush2.msra.mxu0 0.0
        %478 = vmatprep.subr.mxu0 0.0
        %479 = vmatpush2.msra.mxu0 0.0
        %480 = vmatprep.subr.mxu0 0.0
        %481 = vmatpush2.msra.mxu0 0.0
        %482 = vmatprep.subr.mxu0 0.0
        %483 = vmatpush2.msra.mxu0 0.0
        %484 = vmatprep.subr.mxu0 0.0
        %485 = vmatpush2.msra.mxu0 0.0
        %486 = vmatprep.subr.mxu0 0.0
        %487 = vmatpush2.msra.mxu0 0.0
        %488 = vmatprep.subr.mxu0 0.0
        %489 = vmatpush2.msra.mxu0 0.0
        %490 = vmatprep.subr.mxu0 0.0
        %491 = vmatpush2.msra.mxu0 0.0
        %492 = vmatprep.subr.mxu0 0.0
        %493 = vmatpush2.msra.mxu0 0.0
        %494 = vmatprep.subr.mxu0 0.0
        %495 = vmatpush2.msra.mxu0 0.0
        %496 = vmatprep.subr.mxu0 0.0
        %497 = vmatpush2.msra.mxu0 0.0
        %498 = vmatprep.subr.mxu0 0.0
        %499 = vmatpush2.msra.mxu0 0.0
        %500 = vmatprep.subr.mxu0 0.0
        %501 = vmatpush2.msra.mxu0 0.0
        %502 = vmatprep.subr.mxu0 0.0
        %503 = vmatpush2.msra.mxu0 0.0
        %504 = vmatprep.subr.mxu0 0.0
        %505 = vmatpush2.msra.mxu0 0.0
        %506 = vmatprep.mubr.f32.mxu0 0.0
        %507 = vmatmul.mubr.f32.gmra.mxu0 %v434
        %v508 = vpop.f32.mrf.mxu0
        %v509 = vadd.f32 %v429, %v508
        %v510 = vpop.f32.mrf.mxu0
        %v511 = vadd.f32 %v431, %v510
        %512 = vdwg.mxu0
        %s513 = scalar_lea.vmem %s1, 128
        %v514 = vld [vmem:[%s513] sm:$0xff]
        %v515 = vld [vmem:[%s513 + $0x8] sm:$0xff]
        %v516 = vld [vmem:[%s513 + $0x10] sm:$0xff]
        %v517 = vld [vmem:[%s513 + $0x18] sm:$0xff]
        %v518 = vld [vmem:[%s513 + $0x20] sm:$0xff]
        %v519 = vld [vmem:[%s513 + $0x28] sm:$0xff]
        %v520 = vld [vmem:[%s513 + $0x30] sm:$0xf]
        %v521 = vld [vmem:[%s513 + $0x38] sm:$0xf]
        %v523 = vsel %vm351, %v332, 0
        %v526 = vsel %vm355, %v520, 0
        %v529 = vsel %vm355, %v521, 0
        %531 = vmatprep.subr.mxu0 0.0
        %532 = vmatpush1.msra.mxu0 0.0
        %533 = vmatprep.subr.mxu0 0.0
        %534 = vmatpush1.msra.mxu0 0.0
        %535 = vmatprep.subr.mxu0 0.0
        %536 = vmatpush1.msra.mxu0 0.0
        %537 = vmatprep.subr.mxu0 0.0
        %538 = vmatpush1.msra.mxu0 0.0
        %539 = vmatprep.subr.mxu0 0.0
        %540 = vmatpush1.msra.mxu0 0.0
        %541 = vmatprep.subr.mxu0 0.0
        %542 = vmatpush1.msra.mxu0 0.0
        %543 = vmatprep.subr.mxu0 0.0
        %544 = vmatpush1.msra.mxu0 0.0
        %545 = vmatprep.subr.mxu0 0.0
        %546 = vmatpush1.msra.mxu0 0.0
        %547 = vmatprep.subr.mxu0 0.0
        %548 = vmatpush1.msra.mxu0 0.0
        %549 = vmatprep.subr.mxu0 0.0
        %550 = vmatpush1.msra.mxu0 0.0
        %551 = vmatprep.subr.mxu0 0.0
        %552 = vmatpush1.msra.mxu0 0.0
        %553 = vmatprep.subr.mxu0 0.0
        %554 = vmatpush1.msra.mxu0 0.0
        %555 = vmatprep.subr.mxu0 %v529
        %556 = vmatpush1.msra.mxu0 %v526
        %557 = vmatprep.subr.mxu0 %v519
        %558 = vmatpush1.msra.mxu0 %v518
        %559 = vmatprep.subr.mxu0 %v517
        %560 = vmatpush1.msra.mxu0 %v516
        %561 = vmatprep.subr.mxu0 %v515
        %562 = vmatpush1.msra.mxu0 %v514
        %563 = vmatprep.subr.mxu0 0.0
        %564 = vmatpush2.msra.mxu0 0.0
        %565 = vmatprep.subr.mxu0 0.0
        %566 = vmatpush2.msra.mxu0 0.0
        %567 = vmatprep.subr.mxu0 0.0
        %568 = vmatpush2.msra.mxu0 0.0
        %569 = vmatprep.subr.mxu0 0.0
        %570 = vmatpush2.msra.mxu0 0.0
        %571 = vmatprep.subr.mxu0 0.0
        %572 = vmatpush2.msra.mxu0 0.0
        %573 = vmatprep.subr.mxu0 0.0
        %574 = vmatpush2.msra.mxu0 0.0
        %575 = vmatprep.subr.mxu0 0.0
        %576 = vmatpush2.msra.mxu0 0.0
        %577 = vmatprep.subr.mxu0 0.0
        %578 = vmatpush2.msra.mxu0 0.0
        %579 = vmatprep.subr.mxu0 0.0
        %580 = vmatpush2.msra.mxu0 0.0
        %581 = vmatprep.subr.mxu0 0.0
        %582 = vmatpush2.msra.mxu0 0.0
        %583 = vmatprep.subr.mxu0 0.0
        %584 = vmatpush2.msra.mxu0 0.0
        %585 = vmatprep.subr.mxu0 0.0
        %586 = vmatpush2.msra.mxu0 0.0
        %587 = vmatprep.subr.mxu0 0.0
        %588 = vmatpush2.msra.mxu0 0.0
        %589 = vmatprep.subr.mxu0 0.0
        %590 = vmatpush2.msra.mxu0 0.0
        %591 = vmatprep.subr.mxu0 0.0
        %592 = vmatpush2.msra.mxu0 0.0
        %593 = vmatprep.subr.mxu0 0.0
        %594 = vmatpush2.msra.mxu0 0.0
        %595 = vmatprep.mubr.f32.mxu0 0.0
        %596 = vmatmul.mubr.f32.gmra.mxu0 %v523
        %v597 = vpop.f32.mrf.mxu0
        %v598 = vadd.f32 0.0, %v597
        %v599 = vpop.f32.mrf.mxu0
        %v600 = vadd.f32 0.0, %v599
        %601 = vdwg.mxu0
        %v602 = vadd.f32 %v509, %v598
        %v603 = vadd.f32 %v511, %v600
        %s604 = scalar_lea.vmem %s1, 192
        %v605 = vld [vmem:[%s604] sm:$0xff]
        %v606 = vld [vmem:[%s604 + $0x8] sm:$0xff]
        %v607 = vld [vmem:[%s604 + $0x10] sm:$0xff]
        %v608 = vld [vmem:[%s604 + $0x18] sm:$0xff]
        %v609 = vld [vmem:[%s604 + $0x20] sm:$0xff]
        %v610 = vld [vmem:[%s604 + $0x28] sm:$0xff]
        %v611 = vld [vmem:[%s604 + $0x30] sm:$0xf]
        %v612 = vld [vmem:[%s604 + $0x38] sm:$0xf]
        %v614 = vsel %vm351, %v333, 0
        %v617 = vsel %vm355, %v611, 0
        %v620 = vsel %vm355, %v612, 0
        %622 = vmatprep.subr.mxu0 0.0
        %623 = vmatpush1.msra.mxu0 0.0
        %624 = vmatprep.subr.mxu0 0.0
        %625 = vmatpush1.msra.mxu0 0.0
        %626 = vmatprep.subr.mxu0 0.0
        %627 = vmatpush1.msra.mxu0 0.0
        %628 = vmatprep.subr.mxu0 0.0
        %629 = vmatpush1.msra.mxu0 0.0
        %630 = vmatprep.subr.mxu0 0.0
        %631 = vmatpush1.msra.mxu0 0.0
        %632 = vmatprep.subr.mxu0 0.0
        %633 = vmatpush1.msra.mxu0 0.0
        %634 = vmatprep.subr.mxu0 0.0
        %635 = vmatpush1.msra.mxu0 0.0
        %636 = vmatprep.subr.mxu0 0.0
        %637 = vmatpush1.msra.mxu0 0.0
        %638 = vmatprep.subr.mxu0 0.0
        %639 = vmatpush1.msra.mxu0 0.0
        %640 = vmatprep.subr.mxu0 0.0
        %641 = vmatpush1.msra.mxu0 0.0
        %642 = vmatprep.subr.mxu0 0.0
        %643 = vmatpush1.msra.mxu0 0.0
        %644 = vmatprep.subr.mxu0 0.0
        %645 = vmatpush1.msra.mxu0 0.0
        %646 = vmatprep.subr.mxu0 %v620
        %647 = vmatpush1.msra.mxu0 %v617
        %648 = vmatprep.subr.mxu0 %v610
        %649 = vmatpush1.msra.mxu0 %v609
        %650 = vmatprep.subr.mxu0 %v608
        %651 = vmatpush1.msra.mxu0 %v607
        %652 = vmatprep.subr.mxu0 %v606
        %653 = vmatpush1.msra.mxu0 %v605
        %654 = vmatprep.subr.mxu0 0.0
        %655 = vmatpush2.msra.mxu0 0.0
        %656 = vmatprep.subr.mxu0 0.0
        %657 = vmatpush2.msra.mxu0 0.0
        %658 = vmatprep.subr.mxu0 0.0
        %659 = vmatpush2.msra.mxu0 0.0
        %660 = vmatprep.subr.mxu0 0.0
        %661 = vmatpush2.msra.mxu0 0.0
        %662 = vmatprep.subr.mxu0 0.0
        %663 = vmatpush2.msra.mxu0 0.0
        %664 = vmatprep.subr.mxu0 0.0
        %665 = vmatpush2.msra.mxu0 0.0
        %666 = vmatprep.subr.mxu0 0.0
        %667 = vmatpush2.msra.mxu0 0.0
        %668 = vmatprep.subr.mxu0 0.0
        %669 = vmatpush2.msra.mxu0 0.0
        %670 = vmatprep.subr.mxu0 0.0
        %671 = vmatpush2.msra.mxu0 0.0
        %672 = vmatprep.subr.mxu0 0.0
        %673 = vmatpush2.msra.mxu0 0.0
        %674 = vmatprep.subr.mxu0 0.0
        %675 = vmatpush2.msra.mxu0 0.0
        %676 = vmatprep.subr.mxu0 0.0
        %677 = vmatpush2.msra.mxu0 0.0
        %678 = vmatprep.subr.mxu0 0.0
        %679 = vmatpush2.msra.mxu0 0.0
        %680 = vmatprep.subr.mxu0 0.0
        %681 = vmatpush2.msra.mxu0 0.0
        %682 = vmatprep.subr.mxu0 0.0
        %683 = vmatpush2.msra.mxu0 0.0
        %684 = vmatprep.subr.mxu0 0.0
        %685 = vmatpush2.msra.mxu0 0.0
        %686 = vmatprep.mubr.f32.mxu0 0.0
        %687 = vmatmul.mubr.f32.gmra.mxu0 %v614
        %v688 = vpop.f32.mrf.mxu0
        %v689 = vadd.f32 0.0, %v688
        %v690 = vpop.f32.mrf.mxu0
        %v691 = vadd.f32 0.0, %v690
        %692 = vdwg.mxu0
        %v693 = vadd.f32 %v602, %v689
        %v694 = vadd.f32 %v603, %v691
        %s695 = scalar_lea.vmem %s1, 256
        %v696 = vld [vmem:[%s695] sm:$0xff]
        %v697 = vld [vmem:[%s695 + $0x8] sm:$0xff]
        %v698 = vld [vmem:[%s695 + $0x10] sm:$0xff]
        %v699 = vld [vmem:[%s695 + $0x18] sm:$0xff]
        %v700 = vld [vmem:[%s695 + $0x20] sm:$0xff]
        %v701 = vld [vmem:[%s695 + $0x28] sm:$0xff]
        %v702 = vld [vmem:[%s695 + $0x30] sm:$0xf]
        %v703 = vld [vmem:[%s695 + $0x38] sm:$0xf]
        %v704 = vrot.slane %v330, 1
        %v705 = vsel %vm351, %v704, 0
        %v708 = vsel %vm355, %v702, 0
        %v711 = vsel %vm355, %v703, 0
        %713 = vmatprep.subr.mxu0 0.0
        %714 = vmatpush1.msra.mxu0 0.0
        %715 = vmatprep.subr.mxu0 0.0
        %716 = vmatpush1.msra.mxu0 0.0
        %717 = vmatprep.subr.mxu0 0.0
        %718 = vmatpush1.msra.mxu0 0.0
        %719 = vmatprep.subr.mxu0 0.0
        %720 = vmatpush1.msra.mxu0 0.0
        %721 = vmatprep.subr.mxu0 0.0
        %722 = vmatpush1.msra.mxu0 0.0
        %723 = vmatprep.subr.mxu0 0.0
        %724 = vmatpush1.msra.mxu0 0.0
        %725 = vmatprep.subr.mxu0 0.0
        %726 = vmatpush1.msra.mxu0 0.0
        %727 = vmatprep.subr.mxu0 0.0
        %728 = vmatpush1.msra.mxu0 0.0
        %729 = vmatprep.subr.mxu0 0.0
        %730 = vmatpush1.msra.mxu0 0.0
        %731 = vmatprep.subr.mxu0 0.0
        %732 = vmatpush1.msra.mxu0 0.0
        %733 = vmatprep.subr.mxu0 0.0
        %734 = vmatpush1.msra.mxu0 0.0
        %735 = vmatprep.subr.mxu0 0.0
        %736 = vmatpush1.msra.mxu0 0.0
        %737 = vmatprep.subr.mxu0 %v711
        %738 = vmatpush1.msra.mxu0 %v708
        %739 = vmatprep.subr.mxu0 %v701
        %740 = vmatpush1.msra.mxu0 %v700
        %741 = vmatprep.subr.mxu0 %v699
        %742 = vmatpush1.msra.mxu0 %v698
        %743 = vmatprep.subr.mxu0 %v697
        %744 = vmatpush1.msra.mxu0 %v696
        %745 = vmatprep.subr.mxu0 0.0
        %746 = vmatpush2.msra.mxu0 0.0
        %747 = vmatprep.subr.mxu0 0.0
        %748 = vmatpush2.msra.mxu0 0.0
        %749 = vmatprep.subr.mxu0 0.0
        %750 = vmatpush2.msra.mxu0 0.0
        %751 = vmatprep.subr.mxu0 0.0
        %752 = vmatpush2.msra.mxu0 0.0
        %753 = vmatprep.subr.mxu0 0.0
        %754 = vmatpush2.msra.mxu0 0.0
        %755 = vmatprep.subr.mxu0 0.0
        %756 = vmatpush2.msra.mxu0 0.0
        %757 = vmatprep.subr.mxu0 0.0
        %758 = vmatpush2.msra.mxu0 0.0
        %759 = vmatprep.subr.mxu0 0.0
        %760 = vmatpush2.msra.mxu0 0.0
        %761 = vmatprep.subr.mxu0 0.0
        %762 = vmatpush2.msra.mxu0 0.0
        %763 = vmatprep.subr.mxu0 0.0
        %764 = vmatpush2.msra.mxu0 0.0
        %765 = vmatprep.subr.mxu0 0.0
        %766 = vmatpush2.msra.mxu0 0.0
        %767 = vmatprep.subr.mxu0 0.0
        %768 = vmatpush2.msra.mxu0 0.0
        %769 = vmatprep.subr.mxu0 0.0
        %770 = vmatpush2.msra.mxu0 0.0
        %771 = vmatprep.subr.mxu0 0.0
        %772 = vmatpush2.msra.mxu0 0.0
        %773 = vmatprep.subr.mxu0 0.0
        %774 = vmatpush2.msra.mxu0 0.0
        %775 = vmatprep.subr.mxu0 0.0
        %776 = vmatpush2.msra.mxu0 0.0
        %777 = vmatprep.mubr.f32.mxu0 0.0
        %778 = vmatmul.mubr.f32.gmra.mxu0 %v705
        %v779 = vpop.f32.mrf.mxu0
        %v780 = vadd.f32 0.0, %v779
        %v781 = vpop.f32.mrf.mxu0
        %v782 = vadd.f32 0.0, %v781
        %783 = vdwg.mxu0
        %v784 = vadd.f32 %v693, %v780
        %v785 = vadd.f32 %v694, %v782
        %788 = vrot.lane.b32.xlu0 %v784, 8
        %v789 = vpop.permute.xlu0 %788
        %790 = vrot.lane.b32.xlu0 %v785, 8
        %v791 = vpop.permute.xlu0 %790
        %vm792 = vcmask 64512
        %v793 = vsel %vm792, %v789, %v791
        %v795 = vmax.f32 %v784, %v793
        %796 = vmatprep.subr.mxu0 0.0
        %797 = vmatpush1.msra.mxu0 0.0
        %798 = vmatprep.subr.mxu0 0.0
        %799 = vmatpush1.msra.mxu0 0.0
        %800 = vmatprep.subr.mxu0 0.0
        %801 = vmatpush1.msra.mxu0 0.0
        %802 = vmatprep.subr.mxu0 0.0
        %803 = vmatpush1.msra.mxu0 0.0
        %804 = vmatprep.subr.mxu0 0.0
        %805 = vmatpush1.msra.mxu0 0.0
        %806 = vmatprep.subr.mxu0 0.0
        %807 = vmatpush1.msra.mxu0 0.0
        %808 = vmatprep.subr.mxu0 0.0
        %809 = vmatpush1.msra.mxu0 0.0
        %810 = vmatprep.subr.mxu0 0.0
        %811 = vmatpush1.msra.mxu0 0.0
        %812 = vmatprep.subr.mxu0 0.0
        %813 = vmatpush1.msra.mxu0 0.0
        %814 = vmatprep.subr.mxu0 0.0
        %815 = vmatpush1.msra.mxu0 0.0
        %816 = vmatprep.subr.mxu0 0.0
        %817 = vmatpush1.msra.mxu0 0.0
        %818 = vmatprep.subr.mxu0 0.0
        %819 = vmatpush1.msra.mxu0 0.0
        %820 = vmatprep.subr.mxu0 %v360
        %821 = vmatpush1.msra.mxu0 %v357
        %822 = vmatprep.subr.mxu0 %v348
        %823 = vmatpush1.msra.mxu0 %v347
        %824 = vmatprep.subr.mxu0 %v346
        %825 = vmatpush1.msra.mxu0 %v345
        %826 = vmatprep.subr.mxu0 %v344
        %827 = vmatpush1.msra.mxu0 %v343
        %828 = vmatprep.subr.mxu0 0.0
        %829 = vmatpush2.msra.mxu0 0.0
        %830 = vmatprep.subr.mxu0 0.0
        %831 = vmatpush2.msra.mxu0 0.0
        %832 = vmatprep.subr.mxu0 0.0
        %833 = vmatpush2.msra.mxu0 0.0
        %834 = vmatprep.subr.mxu0 0.0
        %835 = vmatpush2.msra.mxu0 0.0
        %836 = vmatprep.subr.mxu0 0.0
        %837 = vmatpush2.msra.mxu0 0.0
        %838 = vmatprep.subr.mxu0 0.0
        %839 = vmatpush2.msra.mxu0 0.0
        %840 = vmatprep.subr.mxu0 0.0
        %841 = vmatpush2.msra.mxu0 0.0
        %842 = vmatprep.subr.mxu0 0.0
        %843 = vmatpush2.msra.mxu0 0.0
        %844 = vmatprep.subr.mxu0 0.0
        %845 = vmatpush2.msra.mxu0 0.0
        %846 = vmatprep.subr.mxu0 0.0
        %847 = vmatpush2.msra.mxu0 0.0
        %848 = vmatprep.subr.mxu0 0.0
        %849 = vmatpush2.msra.mxu0 0.0
        %850 = vmatprep.subr.mxu0 0.0
        %851 = vmatpush2.msra.mxu0 0.0
        %852 = vmatprep.subr.mxu0 0.0
        %853 = vmatpush2.msra.mxu0 0.0
        %854 = vmatprep.subr.mxu0 0.0
        %855 = vmatpush2.msra.mxu0 0.0
        %856 = vmatprep.subr.mxu0 0.0
        %857 = vmatpush2.msra.mxu0 0.0
        %858 = vmatprep.subr.mxu0 0.0
        %859 = vmatpush2.msra.mxu0 0.0
        %860 = vmatprep.mubr.f32.mxu0 0.0
        %861 = vmatmul.mubr.f32.gmra.mxu0 %v523
        %v862 = vpop.f32.mrf.mxu0
        %v863 = vadd.f32 0.0, %v862
        %v864 = vpop.f32.mrf.mxu0
        %v865 = vadd.f32 0.0, %v864
        %866 = vdwg.mxu0
        %867 = vmatprep.subr.mxu0 0.0
        %868 = vmatpush1.msra.mxu0 0.0
        %869 = vmatprep.subr.mxu0 0.0
        %870 = vmatpush1.msra.mxu0 0.0
        %871 = vmatprep.subr.mxu0 0.0
        %872 = vmatpush1.msra.mxu0 0.0
        %873 = vmatprep.subr.mxu0 0.0
        %874 = vmatpush1.msra.mxu0 0.0
        %875 = vmatprep.subr.mxu0 0.0
        %876 = vmatpush1.msra.mxu0 0.0
        %877 = vmatprep.subr.mxu0 0.0
        %878 = vmatpush1.msra.mxu0 0.0
        %879 = vmatprep.subr.mxu0 0.0
        %880 = vmatpush1.msra.mxu0 0.0
        %881 = vmatprep.subr.mxu0 0.0
        %882 = vmatpush1.msra.mxu0 0.0
        %883 = vmatprep.subr.mxu0 0.0
        %884 = vmatpush1.msra.mxu0 0.0
        %885 = vmatprep.subr.mxu0 0.0
        %886 = vmatpush1.msra.mxu0 0.0
        %887 = vmatprep.subr.mxu0 0.0
        %888 = vmatpush1.msra.mxu0 0.0
        %889 = vmatprep.subr.mxu0 0.0
        %890 = vmatpush1.msra.mxu0 0.0
        %891 = vmatprep.subr.mxu0 %v440
        %892 = vmatpush1.msra.mxu0 %v437
        %893 = vmatprep.subr.mxu0 %v339
        %894 = vmatpush1.msra.mxu0 %v338
        %895 = vmatprep.subr.mxu0 %v337
        %896 = vmatpush1.msra.mxu0 %v336
        %897 = vmatprep.subr.mxu0 %v335
        %898 = vmatpush1.msra.mxu0 %v334
        %899 = vmatprep.subr.mxu0 0.0
        %900 = vmatpush2.msra.mxu0 0.0
        %901 = vmatprep.subr.mxu0 0.0
        %902 = vmatpush2.msra.mxu0 0.0
        %903 = vmatprep.subr.mxu0 0.0
        %904 = vmatpush2.msra.mxu0 0.0
        %905 = vmatprep.subr.mxu0 0.0
        %906 = vmatpush2.msra.mxu0 0.0
        %907 = vmatprep.subr.mxu0 0.0
        %908 = vmatpush2.msra.mxu0 0.0
        %909 = vmatprep.subr.mxu0 0.0
        %910 = vmatpush2.msra.mxu0 0.0
        %911 = vmatprep.subr.mxu0 0.0
        %912 = vmatpush2.msra.mxu0 0.0
        %913 = vmatprep.subr.mxu0 0.0
        %914 = vmatpush2.msra.mxu0 0.0
        %915 = vmatprep.subr.mxu0 0.0
        %916 = vmatpush2.msra.mxu0 0.0
        %917 = vmatprep.subr.mxu0 0.0
        %918 = vmatpush2.msra.mxu0 0.0
        %919 = vmatprep.subr.mxu0 0.0
        %920 = vmatpush2.msra.mxu0 0.0
        %921 = vmatprep.subr.mxu0 0.0
        %922 = vmatpush2.msra.mxu0 0.0
        %923 = vmatprep.subr.mxu0 0.0
        %924 = vmatpush2.msra.mxu0 0.0
        %925 = vmatprep.subr.mxu0 0.0
        %926 = vmatpush2.msra.mxu0 0.0
        %927 = vmatprep.subr.mxu0 0.0
        %928 = vmatpush2.msra.mxu0 0.0
        %929 = vmatprep.subr.mxu0 0.0
        %930 = vmatpush2.msra.mxu0 0.0
        %931 = vmatprep.mubr.f32.mxu0 0.0
        %932 = vmatmul.mubr.f32.gmra.mxu0 %v353
        %v933 = vpop.f32.mrf.mxu0
        %v934 = vadd.f32 %v863, %v933
        %v935 = vpop.f32.mrf.mxu0
        %v936 = vadd.f32 %v865, %v935
        %937 = vdwg.mxu0
        %938 = vmatprep.subr.mxu0 0.0
        %939 = vmatpush1.msra.mxu0 0.0
        %940 = vmatprep.subr.mxu0 0.0
        %941 = vmatpush1.msra.mxu0 0.0
        %942 = vmatprep.subr.mxu0 0.0
        %943 = vmatpush1.msra.mxu0 0.0
        %944 = vmatprep.subr.mxu0 0.0
        %945 = vmatpush1.msra.mxu0 0.0
        %946 = vmatprep.subr.mxu0 0.0
        %947 = vmatpush1.msra.mxu0 0.0
        %948 = vmatprep.subr.mxu0 0.0
        %949 = vmatpush1.msra.mxu0 0.0
        %950 = vmatprep.subr.mxu0 0.0
        %951 = vmatpush1.msra.mxu0 0.0
        %952 = vmatprep.subr.mxu0 0.0
        %953 = vmatpush1.msra.mxu0 0.0
        %954 = vmatprep.subr.mxu0 0.0
        %955 = vmatpush1.msra.mxu0 0.0
        %956 = vmatprep.subr.mxu0 0.0
        %957 = vmatpush1.msra.mxu0 0.0
        %958 = vmatprep.subr.mxu0 0.0
        %959 = vmatpush1.msra.mxu0 0.0
        %960 = vmatprep.subr.mxu0 0.0
        %961 = vmatpush1.msra.mxu0 0.0
        %962 = vmatprep.subr.mxu0 %v529
        %963 = vmatpush1.msra.mxu0 %v526
        %964 = vmatprep.subr.mxu0 %v519
        %965 = vmatpush1.msra.mxu0 %v518
        %966 = vmatprep.subr.mxu0 %v517
        %967 = vmatpush1.msra.mxu0 %v516
        %968 = vmatprep.subr.mxu0 %v515
        %969 = vmatpush1.msra.mxu0 %v514
        %970 = vmatprep.subr.mxu0 0.0
        %971 = vmatpush2.msra.mxu0 0.0
        %972 = vmatprep.subr.mxu0 0.0
        %973 = vmatpush2.msra.mxu0 0.0
        %974 = vmatprep.subr.mxu0 0.0
        %975 = vmatpush2.msra.mxu0 0.0
        %976 = vmatprep.subr.mxu0 0.0
        %977 = vmatpush2.msra.mxu0 0.0
        %978 = vmatprep.subr.mxu0 0.0
        %979 = vmatpush2.msra.mxu0 0.0
        %980 = vmatprep.subr.mxu0 0.0
        %981 = vmatpush2.msra.mxu0 0.0
        %982 = vmatprep.subr.mxu0 0.0
        %983 = vmatpush2.msra.mxu0 0.0
        %984 = vmatprep.subr.mxu0 0.0
        %985 = vmatpush2.msra.mxu0 0.0
        %986 = vmatprep.subr.mxu0 0.0
        %987 = vmatpush2.msra.mxu0 0.0
        %988 = vmatprep.subr.mxu0 0.0
        %989 = vmatpush2.msra.mxu0 0.0
        %990 = vmatprep.subr.mxu0 0.0
        %991 = vmatpush2.msra.mxu0 0.0
        %992 = vmatprep.subr.mxu0 0.0
        %993 = vmatpush2.msra.mxu0 0.0
        %994 = vmatprep.subr.mxu0 0.0
        %995 = vmatpush2.msra.mxu0 0.0
        %996 = vmatprep.subr.mxu0 0.0
        %997 = vmatpush2.msra.mxu0 0.0
        %998 = vmatprep.subr.mxu0 0.0
        %999 = vmatpush2.msra.mxu0 0.0
        %1000 = vmatprep.subr.mxu0 0.0
        %1001 = vmatpush2.msra.mxu0 0.0
        %1002 = vmatprep.mubr.f32.mxu0 0.0
        %1003 = vmatmul.mubr.f32.gmra.mxu0 %v614
        %v1004 = vpop.f32.mrf.mxu0
        %v1005 = vadd.f32 0.0, %v1004
        %v1006 = vpop.f32.mrf.mxu0
        %v1007 = vadd.f32 0.0, %v1006
        %1008 = vdwg.mxu0
        %v1009 = vadd.f32 %v934, %v1005
        %v1010 = vadd.f32 %v936, %v1007
        %1011 = vmatprep.subr.mxu0 0.0
        %1012 = vmatpush1.msra.mxu0 0.0
        %1013 = vmatprep.subr.mxu0 0.0
        %1014 = vmatpush1.msra.mxu0 0.0
        %1015 = vmatprep.subr.mxu0 0.0
        %1016 = vmatpush1.msra.mxu0 0.0
        %1017 = vmatprep.subr.mxu0 0.0
        %1018 = vmatpush1.msra.mxu0 0.0
        %1019 = vmatprep.subr.mxu0 0.0
        %1020 = vmatpush1.msra.mxu0 0.0
        %1021 = vmatprep.subr.mxu0 0.0
        %1022 = vmatpush1.msra.mxu0 0.0
        %1023 = vmatprep.subr.mxu0 0.0
        %1024 = vmatpush1.msra.mxu0 0.0
        %1025 = vmatprep.subr.mxu0 0.0
        %1026 = vmatpush1.msra.mxu0 0.0
        %1027 = vmatprep.subr.mxu0 0.0
        %1028 = vmatpush1.msra.mxu0 0.0
        %1029 = vmatprep.subr.mxu0 0.0
        %1030 = vmatpush1.msra.mxu0 0.0
        %1031 = vmatprep.subr.mxu0 0.0
        %1032 = vmatpush1.msra.mxu0 0.0
        %1033 = vmatprep.subr.mxu0 0.0
        %1034 = vmatpush1.msra.mxu0 0.0
        %1035 = vmatprep.subr.mxu0 %v620
        %1036 = vmatpush1.msra.mxu0 %v617
        %1037 = vmatprep.subr.mxu0 %v610
        %1038 = vmatpush1.msra.mxu0 %v609
        %1039 = vmatprep.subr.mxu0 %v608
        %1040 = vmatpush1.msra.mxu0 %v607
        %1041 = vmatprep.subr.mxu0 %v606
        %1042 = vmatpush1.msra.mxu0 %v605
        %1043 = vmatprep.subr.mxu0 0.0
        %1044 = vmatpush2.msra.mxu0 0.0
        %1045 = vmatprep.subr.mxu0 0.0
        %1046 = vmatpush2.msra.mxu0 0.0
        %1047 = vmatprep.subr.mxu0 0.0
        %1048 = vmatpush2.msra.mxu0 0.0
        %1049 = vmatprep.subr.mxu0 0.0
        %1050 = vmatpush2.msra.mxu0 0.0
        %1051 = vmatprep.subr.mxu0 0.0
        %1052 = vmatpush2.msra.mxu0 0.0
        %1053 = vmatprep.subr.mxu0 0.0
        %1054 = vmatpush2.msra.mxu0 0.0
        %1055 = vmatprep.subr.mxu0 0.0
        %1056 = vmatpush2.msra.mxu0 0.0
        %1057 = vmatprep.subr.mxu0 0.0
        %1058 = vmatpush2.msra.mxu0 0.0
        %1059 = vmatprep.subr.mxu0 0.0
        %1060 = vmatpush2.msra.mxu0 0.0
        %1061 = vmatprep.subr.mxu0 0.0
        %1062 = vmatpush2.msra.mxu0 0.0
        %1063 = vmatprep.subr.mxu0 0.0
        %1064 = vmatpush2.msra.mxu0 0.0
        %1065 = vmatprep.subr.mxu0 0.0
        %1066 = vmatpush2.msra.mxu0 0.0
        %1067 = vmatprep.subr.mxu0 0.0
        %1068 = vmatpush2.msra.mxu0 0.0
        %1069 = vmatprep.subr.mxu0 0.0
        %1070 = vmatpush2.msra.mxu0 0.0
        %1071 = vmatprep.subr.mxu0 0.0
        %1072 = vmatpush2.msra.mxu0 0.0
        %1073 = vmatprep.subr.mxu0 0.0
        %1074 = vmatpush2.msra.mxu0 0.0
        %1075 = vmatprep.mubr.f32.mxu0 0.0
        %1076 = vmatmul.mubr.f32.gmra.mxu0 %v705
        %v1077 = vpop.f32.mrf.mxu0
        %v1078 = vadd.f32 0.0, %v1077
        %v1079 = vpop.f32.mrf.mxu0
        %v1080 = vadd.f32 0.0, %v1079
        %1081 = vdwg.mxu0
        %v1082 = vadd.f32 %v1009, %v1078
        %v1083 = vadd.f32 %v1010, %v1080
        %v1084 = vrot.slane %v331, 1
        %v1085 = vsel %vm351, %v1084, 0
        %1087 = vmatprep.subr.mxu0 0.0
        %1088 = vmatpush1.msra.mxu0 0.0
        %1089 = vmatprep.subr.mxu0 0.0
        %1090 = vmatpush1.msra.mxu0 0.0
        %1091 = vmatprep.subr.mxu0 0.0
        %1092 = vmatpush1.msra.mxu0 0.0
        %1093 = vmatprep.subr.mxu0 0.0
        %1094 = vmatpush1.msra.mxu0 0.0
        %1095 = vmatprep.subr.mxu0 0.0
        %1096 = vmatpush1.msra.mxu0 0.0
        %1097 = vmatprep.subr.mxu0 0.0
        %1098 = vmatpush1.msra.mxu0 0.0
        %1099 = vmatprep.subr.mxu0 0.0
        %1100 = vmatpush1.msra.mxu0 0.0
        %1101 = vmatprep.subr.mxu0 0.0
        %1102 = vmatpush1.msra.mxu0 0.0
        %1103 = vmatprep.subr.mxu0 0.0
        %1104 = vmatpush1.msra.mxu0 0.0
        %1105 = vmatprep.subr.mxu0 0.0
        %1106 = vmatpush1.msra.mxu0 0.0
        %1107 = vmatprep.subr.mxu0 0.0
        %1108 = vmatpush1.msra.mxu0 0.0
        %1109 = vmatprep.subr.mxu0 0.0
        %1110 = vmatpush1.msra.mxu0 0.0
        %1111 = vmatprep.subr.mxu0 %v711
        %1112 = vmatpush1.msra.mxu0 %v708
        %1113 = vmatprep.subr.mxu0 %v701
        %1114 = vmatpush1.msra.mxu0 %v700
        %1115 = vmatprep.subr.mxu0 %v699
        %1116 = vmatpush1.msra.mxu0 %v698
        %1117 = vmatprep.subr.mxu0 %v697
        %1118 = vmatpush1.msra.mxu0 %v696
        %1119 = vmatprep.subr.mxu0 0.0
        %1120 = vmatpush2.msra.mxu0 0.0
        %1121 = vmatprep.subr.mxu0 0.0
        %1122 = vmatpush2.msra.mxu0 0.0
        %1123 = vmatprep.subr.mxu0 0.0
        %1124 = vmatpush2.msra.mxu0 0.0
        %1125 = vmatprep.subr.mxu0 0.0
        %1126 = vmatpush2.msra.mxu0 0.0
        %1127 = vmatprep.subr.mxu0 0.0
        %1128 = vmatpush2.msra.mxu0 0.0
        %1129 = vmatprep.subr.mxu0 0.0
        %1130 = vmatpush2.msra.mxu0 0.0
        %1131 = vmatprep.subr.mxu0 0.0
        %1132 = vmatpush2.msra.mxu0 0.0
        %1133 = vmatprep.subr.mxu0 0.0
        %1134 = vmatpush2.msra.mxu0 0.0
        %1135 = vmatprep.subr.mxu0 0.0
        %1136 = vmatpush2.msra.mxu0 0.0
        %1137 = vmatprep.subr.mxu0 0.0
        %1138 = vmatpush2.msra.mxu0 0.0
        %1139 = vmatprep.subr.mxu0 0.0
        %1140 = vmatpush2.msra.mxu0 0.0
        %1141 = vmatprep.subr.mxu0 0.0
        %1142 = vmatpush2.msra.mxu0 0.0
        %1143 = vmatprep.subr.mxu0 0.0
        %1144 = vmatpush2.msra.mxu0 0.0
        %1145 = vmatprep.subr.mxu0 0.0
        %1146 = vmatpush2.msra.mxu0 0.0
        %1147 = vmatprep.subr.mxu0 0.0
        %1148 = vmatpush2.msra.mxu0 0.0
        %1149 = vmatprep.subr.mxu0 0.0
        %1150 = vmatpush2.msra.mxu0 0.0
        %1151 = vmatprep.mubr.f32.mxu0 0.0
        %1152 = vmatmul.mubr.f32.gmra.mxu0 %v1085
        %v1153 = vpop.f32.mrf.mxu0
        %v1154 = vadd.f32 0.0, %v1153
        %v1155 = vpop.f32.mrf.mxu0
        %v1156 = vadd.f32 0.0, %v1155
        %1157 = vdwg.mxu0
        %v1158 = vadd.f32 %v1082, %v1154
        %v1159 = vadd.f32 %v1083, %v1156
        %1162 = vrot.lane.b32.xlu0 %v1158, 8
        %v1163 = vpop.permute.xlu0 %1162
        %1164 = vrot.lane.b32.xlu0 %v1159, 8
        %v1165 = vpop.permute.xlu0 %1164
        %v1166 = vsel %vm792, %v1163, %v1165
        %v1168 = vmax.f32 %v1158, %v1166
        %1169 = vmatprep.subr.mxu0 0.0
        %1170 = vmatpush1.msra.mxu0 0.0
        %1171 = vmatprep.subr.mxu0 0.0
        %1172 = vmatpush1.msra.mxu0 0.0
        %1173 = vmatprep.subr.mxu0 0.0
        %1174 = vmatpush1.msra.mxu0 0.0
        %1175 = vmatprep.subr.mxu0 0.0
        %1176 = vmatpush1.msra.mxu0 0.0
        %1177 = vmatprep.subr.mxu0 0.0
        %1178 = vmatpush1.msra.mxu0 0.0
        %1179 = vmatprep.subr.mxu0 0.0
        %1180 = vmatpush1.msra.mxu0 0.0
        %1181 = vmatprep.subr.mxu0 0.0
        %1182 = vmatpush1.msra.mxu0 0.0
        %1183 = vmatprep.subr.mxu0 0.0
        %1184 = vmatpush1.msra.mxu0 0.0
        %1185 = vmatprep.subr.mxu0 0.0
        %1186 = vmatpush1.msra.mxu0 0.0
        %1187 = vmatprep.subr.mxu0 0.0
        %1188 = vmatpush1.msra.mxu0 0.0
        %1189 = vmatprep.subr.mxu0 0.0
        %1190 = vmatpush1.msra.mxu0 0.0
        %1191 = vmatprep.subr.mxu0 0.0
        %1192 = vmatpush1.msra.mxu0 0.0
        %1193 = vmatprep.subr.mxu0 %v360
        %1194 = vmatpush1.msra.mxu0 %v357
        %1195 = vmatprep.subr.mxu0 %v348
        %1196 = vmatpush1.msra.mxu0 %v347
        %1197 = vmatprep.subr.mxu0 %v346
        %1198 = vmatpush1.msra.mxu0 %v345
        %1199 = vmatprep.subr.mxu0 %v344
        %1200 = vmatpush1.msra.mxu0 %v343
        %1201 = vmatprep.subr.mxu0 0.0
        %1202 = vmatpush2.msra.mxu0 0.0
        %1203 = vmatprep.subr.mxu0 0.0
        %1204 = vmatpush2.msra.mxu0 0.0
        %1205 = vmatprep.subr.mxu0 0.0
        %1206 = vmatpush2.msra.mxu0 0.0
        %1207 = vmatprep.subr.mxu0 0.0
        %1208 = vmatpush2.msra.mxu0 0.0
        %1209 = vmatprep.subr.mxu0 0.0
        %1210 = vmatpush2.msra.mxu0 0.0
        %1211 = vmatprep.subr.mxu0 0.0
        %1212 = vmatpush2.msra.mxu0 0.0
        %1213 = vmatprep.subr.mxu0 0.0
        %1214 = vmatpush2.msra.mxu0 0.0
        %1215 = vmatprep.subr.mxu0 0.0
        %1216 = vmatpush2.msra.mxu0 0.0
        %1217 = vmatprep.subr.mxu0 0.0
        %1218 = vmatpush2.msra.mxu0 0.0
        %1219 = vmatprep.subr.mxu0 0.0
        %1220 = vmatpush2.msra.mxu0 0.0
        %1221 = vmatprep.subr.mxu0 0.0
        %1222 = vmatpush2.msra.mxu0 0.0
        %1223 = vmatprep.subr.mxu0 0.0
        %1224 = vmatpush2.msra.mxu0 0.0
        %1225 = vmatprep.subr.mxu0 0.0
        %1226 = vmatpush2.msra.mxu0 0.0
        %1227 = vmatprep.subr.mxu0 0.0
        %1228 = vmatpush2.msra.mxu0 0.0
        %1229 = vmatprep.subr.mxu0 0.0
        %1230 = vmatpush2.msra.mxu0 0.0
        %1231 = vmatprep.subr.mxu0 0.0
        %1232 = vmatpush2.msra.mxu0 0.0
        %1233 = vmatprep.mubr.f32.mxu0 0.0
        %1234 = vmatmul.mubr.f32.gmra.mxu0 %v614
        %v1235 = vpop.f32.mrf.mxu0
        %v1236 = vadd.f32 0.0, %v1235
        %v1237 = vpop.f32.mrf.mxu0
        %v1238 = vadd.f32 0.0, %v1237
        %1239 = vdwg.mxu0
        %1240 = vmatprep.subr.mxu0 0.0
        %1241 = vmatpush1.msra.mxu0 0.0
        %1242 = vmatprep.subr.mxu0 0.0
        %1243 = vmatpush1.msra.mxu0 0.0
        %1244 = vmatprep.subr.mxu0 0.0
        %1245 = vmatpush1.msra.mxu0 0.0
        %1246 = vmatprep.subr.mxu0 0.0
        %1247 = vmatpush1.msra.mxu0 0.0
        %1248 = vmatprep.subr.mxu0 0.0
        %1249 = vmatpush1.msra.mxu0 0.0
        %1250 = vmatprep.subr.mxu0 0.0
        %1251 = vmatpush1.msra.mxu0 0.0
        %1252 = vmatprep.subr.mxu0 0.0
        %1253 = vmatpush1.msra.mxu0 0.0
        %1254 = vmatprep.subr.mxu0 0.0
        %1255 = vmatpush1.msra.mxu0 0.0
        %1256 = vmatprep.subr.mxu0 0.0
        %1257 = vmatpush1.msra.mxu0 0.0
        %1258 = vmatprep.subr.mxu0 0.0
        %1259 = vmatpush1.msra.mxu0 0.0
        %1260 = vmatprep.subr.mxu0 0.0
        %1261 = vmatpush1.msra.mxu0 0.0
        %1262 = vmatprep.subr.mxu0 0.0
        %1263 = vmatpush1.msra.mxu0 0.0
        %1264 = vmatprep.subr.mxu0 %v440
        %1265 = vmatpush1.msra.mxu0 %v437
        %1266 = vmatprep.subr.mxu0 %v339
        %1267 = vmatpush1.msra.mxu0 %v338
        %1268 = vmatprep.subr.mxu0 %v337
        %1269 = vmatpush1.msra.mxu0 %v336
        %1270 = vmatprep.subr.mxu0 %v335
        %1271 = vmatpush1.msra.mxu0 %v334
        %1272 = vmatprep.subr.mxu0 0.0
        %1273 = vmatpush2.msra.mxu0 0.0
        %1274 = vmatprep.subr.mxu0 0.0
        %1275 = vmatpush2.msra.mxu0 0.0
        %1276 = vmatprep.subr.mxu0 0.0
        %1277 = vmatpush2.msra.mxu0 0.0
        %1278 = vmatprep.subr.mxu0 0.0
        %1279 = vmatpush2.msra.mxu0 0.0
        %1280 = vmatprep.subr.mxu0 0.0
        %1281 = vmatpush2.msra.mxu0 0.0
        %1282 = vmatprep.subr.mxu0 0.0
        %1283 = vmatpush2.msra.mxu0 0.0
        %1284 = vmatprep.subr.mxu0 0.0
        %1285 = vmatpush2.msra.mxu0 0.0
        %1286 = vmatprep.subr.mxu0 0.0
        %1287 = vmatpush2.msra.mxu0 0.0
        %1288 = vmatprep.subr.mxu0 0.0
        %1289 = vmatpush2.msra.mxu0 0.0
        %1290 = vmatprep.subr.mxu0 0.0
        %1291 = vmatpush2.msra.mxu0 0.0
        %1292 = vmatprep.subr.mxu0 0.0
        %1293 = vmatpush2.msra.mxu0 0.0
        %1294 = vmatprep.subr.mxu0 0.0
        %1295 = vmatpush2.msra.mxu0 0.0
        %1296 = vmatprep.subr.mxu0 0.0
        %1297 = vmatpush2.msra.mxu0 0.0
        %1298 = vmatprep.subr.mxu0 0.0
        %1299 = vmatpush2.msra.mxu0 0.0
        %1300 = vmatprep.subr.mxu0 0.0
        %1301 = vmatpush2.msra.mxu0 0.0
        %1302 = vmatprep.subr.mxu0 0.0
        %1303 = vmatpush2.msra.mxu0 0.0
        %1304 = vmatprep.mubr.f32.mxu0 0.0
        %1305 = vmatmul.mubr.f32.gmra.mxu0 %v523
        %v1306 = vpop.f32.mrf.mxu0
        %v1307 = vadd.f32 %v1236, %v1306
        %v1308 = vpop.f32.mrf.mxu0
        %v1309 = vadd.f32 %v1238, %v1308
        %1310 = vdwg.mxu0
        %1311 = vmatprep.subr.mxu0 0.0
        %1312 = vmatpush1.msra.mxu0 0.0
        %1313 = vmatprep.subr.mxu0 0.0
        %1314 = vmatpush1.msra.mxu0 0.0
        %1315 = vmatprep.subr.mxu0 0.0
        %1316 = vmatpush1.msra.mxu0 0.0
        %1317 = vmatprep.subr.mxu0 0.0
        %1318 = vmatpush1.msra.mxu0 0.0
        %1319 = vmatprep.subr.mxu0 0.0
        %1320 = vmatpush1.msra.mxu0 0.0
        %1321 = vmatprep.subr.mxu0 0.0
        %1322 = vmatpush1.msra.mxu0 0.0
        %1323 = vmatprep.subr.mxu0 0.0
        %1324 = vmatpush1.msra.mxu0 0.0
        %1325 = vmatprep.subr.mxu0 0.0
        %1326 = vmatpush1.msra.mxu0 0.0
        %1327 = vmatprep.subr.mxu0 0.0
        %1328 = vmatpush1.msra.mxu0 0.0
        %1329 = vmatprep.subr.mxu0 0.0
        %1330 = vmatpush1.msra.mxu0 0.0
        %1331 = vmatprep.subr.mxu0 0.0
        %1332 = vmatpush1.msra.mxu0 0.0
        %1333 = vmatprep.subr.mxu0 0.0
        %1334 = vmatpush1.msra.mxu0 0.0
        %1335 = vmatprep.subr.mxu0 %v529
        %1336 = vmatpush1.msra.mxu0 %v526
        %1337 = vmatprep.subr.mxu0 %v519
        %1338 = vmatpush1.msra.mxu0 %v518
        %1339 = vmatprep.subr.mxu0 %v517
        %1340 = vmatpush1.msra.mxu0 %v516
        %1341 = vmatprep.subr.mxu0 %v515
        %1342 = vmatpush1.msra.mxu0 %v514
        %1343 = vmatprep.subr.mxu0 0.0
        %1344 = vmatpush2.msra.mxu0 0.0
        %1345 = vmatprep.subr.mxu0 0.0
        %1346 = vmatpush2.msra.mxu0 0.0
        %1347 = vmatprep.subr.mxu0 0.0
        %1348 = vmatpush2.msra.mxu0 0.0
        %1349 = vmatprep.subr.mxu0 0.0
        %1350 = vmatpush2.msra.mxu0 0.0
        %1351 = vmatprep.subr.mxu0 0.0
        %1352 = vmatpush2.msra.mxu0 0.0
        %1353 = vmatprep.subr.mxu0 0.0
        %1354 = vmatpush2.msra.mxu0 0.0
        %1355 = vmatprep.subr.mxu0 0.0
        %1356 = vmatpush2.msra.mxu0 0.0
        %1357 = vmatprep.subr.mxu0 0.0
        %1358 = vmatpush2.msra.mxu0 0.0
        %1359 = vmatprep.subr.mxu0 0.0
        %1360 = vmatpush2.msra.mxu0 0.0
        %1361 = vmatprep.subr.mxu0 0.0
        %1362 = vmatpush2.msra.mxu0 0.0
        %1363 = vmatprep.subr.mxu0 0.0
        %1364 = vmatpush2.msra.mxu0 0.0
        %1365 = vmatprep.subr.mxu0 0.0
        %1366 = vmatpush2.msra.mxu0 0.0
        %1367 = vmatprep.subr.mxu0 0.0
        %1368 = vmatpush2.msra.mxu0 0.0
        %1369 = vmatprep.subr.mxu0 0.0
        %1370 = vmatpush2.msra.mxu0 0.0
        %1371 = vmatprep.subr.mxu0 0.0
        %1372 = vmatpush2.msra.mxu0 0.0
        %1373 = vmatprep.subr.mxu0 0.0
        %1374 = vmatpush2.msra.mxu0 0.0
        %1375 = vmatprep.mubr.f32.mxu0 0.0
        %1376 = vmatmul.mubr.f32.gmra.mxu0 %v705
        %v1377 = vpop.f32.mrf.mxu0
        %v1378 = vadd.f32 0.0, %v1377
        %v1379 = vpop.f32.mrf.mxu0
        %v1380 = vadd.f32 0.0, %v1379
        %1381 = vdwg.mxu0
        %v1382 = vadd.f32 %v1307, %v1378
        %v1383 = vadd.f32 %v1309, %v1380
        %1384 = vmatprep.subr.mxu0 0.0
        %1385 = vmatpush1.msra.mxu0 0.0
        %1386 = vmatprep.subr.mxu0 0.0
        %1387 = vmatpush1.msra.mxu0 0.0
        %1388 = vmatprep.subr.mxu0 0.0
        %1389 = vmatpush1.msra.mxu0 0.0
        %1390 = vmatprep.subr.mxu0 0.0
        %1391 = vmatpush1.msra.mxu0 0.0
        %1392 = vmatprep.subr.mxu0 0.0
        %1393 = vmatpush1.msra.mxu0 0.0
        %1394 = vmatprep.subr.mxu0 0.0
        %1395 = vmatpush1.msra.mxu0 0.0
        %1396 = vmatprep.subr.mxu0 0.0
        %1397 = vmatpush1.msra.mxu0 0.0
        %1398 = vmatprep.subr.mxu0 0.0
        %1399 = vmatpush1.msra.mxu0 0.0
        %1400 = vmatprep.subr.mxu0 0.0
        %1401 = vmatpush1.msra.mxu0 0.0
        %1402 = vmatprep.subr.mxu0 0.0
        %1403 = vmatpush1.msra.mxu0 0.0
        %1404 = vmatprep.subr.mxu0 0.0
        %1405 = vmatpush1.msra.mxu0 0.0
        %1406 = vmatprep.subr.mxu0 0.0
        %1407 = vmatpush1.msra.mxu0 0.0
        %1408 = vmatprep.subr.mxu0 %v620
        %1409 = vmatpush1.msra.mxu0 %v617
        %1410 = vmatprep.subr.mxu0 %v610
        %1411 = vmatpush1.msra.mxu0 %v609
        %1412 = vmatprep.subr.mxu0 %v608
        %1413 = vmatpush1.msra.mxu0 %v607
        %1414 = vmatprep.subr.mxu0 %v606
        %1415 = vmatpush1.msra.mxu0 %v605
        %1416 = vmatprep.subr.mxu0 0.0
        %1417 = vmatpush2.msra.mxu0 0.0
        %1418 = vmatprep.subr.mxu0 0.0
        %1419 = vmatpush2.msra.mxu0 0.0
        %1420 = vmatprep.subr.mxu0 0.0
        %1421 = vmatpush2.msra.mxu0 0.0
        %1422 = vmatprep.subr.mxu0 0.0
        %1423 = vmatpush2.msra.mxu0 0.0
        %1424 = vmatprep.subr.mxu0 0.0
        %1425 = vmatpush2.msra.mxu0 0.0
        %1426 = vmatprep.subr.mxu0 0.0
        %1427 = vmatpush2.msra.mxu0 0.0
        %1428 = vmatprep.subr.mxu0 0.0
        %1429 = vmatpush2.msra.mxu0 0.0
        %1430 = vmatprep.subr.mxu0 0.0
        %1431 = vmatpush2.msra.mxu0 0.0
        %1432 = vmatprep.subr.mxu0 0.0
        %1433 = vmatpush2.msra.mxu0 0.0
        %1434 = vmatprep.subr.mxu0 0.0
        %1435 = vmatpush2.msra.mxu0 0.0
        %1436 = vmatprep.subr.mxu0 0.0
        %1437 = vmatpush2.msra.mxu0 0.0
        %1438 = vmatprep.subr.mxu0 0.0
        %1439 = vmatpush2.msra.mxu0 0.0
        %1440 = vmatprep.subr.mxu0 0.0
        %1441 = vmatpush2.msra.mxu0 0.0
        %1442 = vmatprep.subr.mxu0 0.0
        %1443 = vmatpush2.msra.mxu0 0.0
        %1444 = vmatprep.subr.mxu0 0.0
        %1445 = vmatpush2.msra.mxu0 0.0
        %1446 = vmatprep.subr.mxu0 0.0
        %1447 = vmatpush2.msra.mxu0 0.0
        %1448 = vmatprep.mubr.f32.mxu0 0.0
        %1449 = vmatmul.mubr.f32.gmra.mxu0 %v1085
        %v1450 = vpop.f32.mrf.mxu0
        %v1451 = vadd.f32 0.0, %v1450
        %v1452 = vpop.f32.mrf.mxu0
        %v1453 = vadd.f32 0.0, %v1452
        %1454 = vdwg.mxu0
        %v1455 = vadd.f32 %v1382, %v1451
        %v1456 = vadd.f32 %v1383, %v1453
        %v1457 = vrot.slane %v332, 1
        %v1458 = vsel %vm351, %v1457, 0
        %1460 = vmatprep.subr.mxu0 0.0
        %1461 = vmatpush1.msra.mxu0 0.0
        %1462 = vmatprep.subr.mxu0 0.0
        %1463 = vmatpush1.msra.mxu0 0.0
        %1464 = vmatprep.subr.mxu0 0.0
        %1465 = vmatpush1.msra.mxu0 0.0
        %1466 = vmatprep.subr.mxu0 0.0
        %1467 = vmatpush1.msra.mxu0 0.0
        %1468 = vmatprep.subr.mxu0 0.0
        %1469 = vmatpush1.msra.mxu0 0.0
        %1470 = vmatprep.subr.mxu0 0.0
        %1471 = vmatpush1.msra.mxu0 0.0
        %1472 = vmatprep.subr.mxu0 0.0
        %1473 = vmatpush1.msra.mxu0 0.0
        %1474 = vmatprep.subr.mxu0 0.0
        %1475 = vmatpush1.msra.mxu0 0.0
        %1476 = vmatprep.subr.mxu0 0.0
        %1477 = vmatpush1.msra.mxu0 0.0
        %1478 = vmatprep.subr.mxu0 0.0
        %1479 = vmatpush1.msra.mxu0 0.0
        %1480 = vmatprep.subr.mxu0 0.0
        %1481 = vmatpush1.msra.mxu0 0.0
        %1482 = vmatprep.subr.mxu0 0.0
        %1483 = vmatpush1.msra.mxu0 0.0
        %1484 = vmatprep.subr.mxu0 %v711
        %1485 = vmatpush1.msra.mxu0 %v708
        %1486 = vmatprep.subr.mxu0 %v701
        %1487 = vmatpush1.msra.mxu0 %v700
        %1488 = vmatprep.subr.mxu0 %v699
        %1489 = vmatpush1.msra.mxu0 %v698
        %1490 = vmatprep.subr.mxu0 %v697
        %1491 = vmatpush1.msra.mxu0 %v696
        %1492 = vmatprep.subr.mxu0 0.0
        %1493 = vmatpush2.msra.mxu0 0.0
        %1494 = vmatprep.subr.mxu0 0.0
        %1495 = vmatpush2.msra.mxu0 0.0
        %1496 = vmatprep.subr.mxu0 0.0
        %1497 = vmatpush2.msra.mxu0 0.0
        %1498 = vmatprep.subr.mxu0 0.0
        %1499 = vmatpush2.msra.mxu0 0.0
        %1500 = vmatprep.subr.mxu0 0.0
        %1501 = vmatpush2.msra.mxu0 0.0
        %1502 = vmatprep.subr.mxu0 0.0
        %1503 = vmatpush2.msra.mxu0 0.0
        %1504 = vmatprep.subr.mxu0 0.0
        %1505 = vmatpush2.msra.mxu0 0.0
        %1506 = vmatprep.subr.mxu0 0.0
        %1507 = vmatpush2.msra.mxu0 0.0
        %1508 = vmatprep.subr.mxu0 0.0
        %1509 = vmatpush2.msra.mxu0 0.0
        %1510 = vmatprep.subr.mxu0 0.0
        %1511 = vmatpush2.msra.mxu0 0.0
        %1512 = vmatprep.subr.mxu0 0.0
        %1513 = vmatpush2.msra.mxu0 0.0
        %1514 = vmatprep.subr.mxu0 0.0
        %1515 = vmatpush2.msra.mxu0 0.0
        %1516 = vmatprep.subr.mxu0 0.0
        %1517 = vmatpush2.msra.mxu0 0.0
        %1518 = vmatprep.subr.mxu0 0.0
        %1519 = vmatpush2.msra.mxu0 0.0
        %1520 = vmatprep.subr.mxu0 0.0
        %1521 = vmatpush2.msra.mxu0 0.0
        %1522 = vmatprep.subr.mxu0 0.0
        %1523 = vmatpush2.msra.mxu0 0.0
        %1524 = vmatprep.mubr.f32.mxu0 0.0
        %1525 = vmatmul.mubr.f32.gmra.mxu0 %v1458
        %v1526 = vpop.f32.mrf.mxu0
        %v1527 = vadd.f32 0.0, %v1526
        %v1528 = vpop.f32.mrf.mxu0
        %v1529 = vadd.f32 0.0, %v1528
        %1530 = vdwg.mxu0
        %v1531 = vadd.f32 %v1455, %v1527
        %v1532 = vadd.f32 %v1456, %v1529
        %1535 = vrot.lane.b32.xlu0 %v1531, 8
        %v1536 = vpop.permute.xlu0 %1535
        %1537 = vrot.lane.b32.xlu0 %v1532, 8
        %v1538 = vpop.permute.xlu0 %1537
        %v1539 = vsel %vm792, %v1536, %v1538
        %v1541 = vmax.f32 %v1531, %v1539
        %1542 = vmatprep.subr.mxu0 0.0
        %1543 = vmatpush1.msra.mxu0 0.0
        %1544 = vmatprep.subr.mxu0 0.0
        %1545 = vmatpush1.msra.mxu0 0.0
        %1546 = vmatprep.subr.mxu0 0.0
        %1547 = vmatpush1.msra.mxu0 0.0
        %1548 = vmatprep.subr.mxu0 0.0
        %1549 = vmatpush1.msra.mxu0 0.0
        %1550 = vmatprep.subr.mxu0 0.0
        %1551 = vmatpush1.msra.mxu0 0.0
        %1552 = vmatprep.subr.mxu0 0.0
        %1553 = vmatpush1.msra.mxu0 0.0
        %1554 = vmatprep.subr.mxu0 0.0
        %1555 = vmatpush1.msra.mxu0 0.0
        %1556 = vmatprep.subr.mxu0 0.0
        %1557 = vmatpush1.msra.mxu0 0.0
        %1558 = vmatprep.subr.mxu0 0.0
        %1559 = vmatpush1.msra.mxu0 0.0
        %1560 = vmatprep.subr.mxu0 0.0
        %1561 = vmatpush1.msra.mxu0 0.0
        %1562 = vmatprep.subr.mxu0 0.0
        %1563 = vmatpush1.msra.mxu0 0.0
        %1564 = vmatprep.subr.mxu0 0.0
        %1565 = vmatpush1.msra.mxu0 0.0
        %1566 = vmatprep.subr.mxu0 %v360
        %1567 = vmatpush1.msra.mxu0 %v357
        %1568 = vmatprep.subr.mxu0 %v348
        %1569 = vmatpush1.msra.mxu0 %v347
        %1570 = vmatprep.subr.mxu0 %v346
        %1571 = vmatpush1.msra.mxu0 %v345
        %1572 = vmatprep.subr.mxu0 %v344
        %1573 = vmatpush1.msra.mxu0 %v343
        %1574 = vmatprep.subr.mxu0 0.0
        %1575 = vmatpush2.msra.mxu0 0.0
        %1576 = vmatprep.subr.mxu0 0.0
        %1577 = vmatpush2.msra.mxu0 0.0
        %1578 = vmatprep.subr.mxu0 0.0
        %1579 = vmatpush2.msra.mxu0 0.0
        %1580 = vmatprep.subr.mxu0 0.0
        %1581 = vmatpush2.msra.mxu0 0.0
        %1582 = vmatprep.subr.mxu0 0.0
        %1583 = vmatpush2.msra.mxu0 0.0
        %1584 = vmatprep.subr.mxu0 0.0
        %1585 = vmatpush2.msra.mxu0 0.0
        %1586 = vmatprep.subr.mxu0 0.0
        %1587 = vmatpush2.msra.mxu0 0.0
        %1588 = vmatprep.subr.mxu0 0.0
        %1589 = vmatpush2.msra.mxu0 0.0
        %1590 = vmatprep.subr.mxu0 0.0
        %1591 = vmatpush2.msra.mxu0 0.0
        %1592 = vmatprep.subr.mxu0 0.0
        %1593 = vmatpush2.msra.mxu0 0.0
        %1594 = vmatprep.subr.mxu0 0.0
        %1595 = vmatpush2.msra.mxu0 0.0
        %1596 = vmatprep.subr.mxu0 0.0
        %1597 = vmatpush2.msra.mxu0 0.0
        %1598 = vmatprep.subr.mxu0 0.0
        %1599 = vmatpush2.msra.mxu0 0.0
        %1600 = vmatprep.subr.mxu0 0.0
        %1601 = vmatpush2.msra.mxu0 0.0
        %1602 = vmatprep.subr.mxu0 0.0
        %1603 = vmatpush2.msra.mxu0 0.0
        %1604 = vmatprep.subr.mxu0 0.0
        %1605 = vmatpush2.msra.mxu0 0.0
        %1606 = vmatprep.mubr.f32.mxu0 0.0
        %1607 = vmatmul.mubr.f32.gmra.mxu0 %v705
        %v1608 = vpop.f32.mrf.mxu0
        %v1609 = vadd.f32 0.0, %v1608
        %v1610 = vpop.f32.mrf.mxu0
        %v1611 = vadd.f32 0.0, %v1610
        %1612 = vdwg.mxu0
        %1613 = vmatprep.subr.mxu0 0.0
        %1614 = vmatpush1.msra.mxu0 0.0
        %1615 = vmatprep.subr.mxu0 0.0
        %1616 = vmatpush1.msra.mxu0 0.0
        %1617 = vmatprep.subr.mxu0 0.0
        %1618 = vmatpush1.msra.mxu0 0.0
        %1619 = vmatprep.subr.mxu0 0.0
        %1620 = vmatpush1.msra.mxu0 0.0
        %1621 = vmatprep.subr.mxu0 0.0
        %1622 = vmatpush1.msra.mxu0 0.0
        %1623 = vmatprep.subr.mxu0 0.0
        %1624 = vmatpush1.msra.mxu0 0.0
        %1625 = vmatprep.subr.mxu0 0.0
        %1626 = vmatpush1.msra.mxu0 0.0
        %1627 = vmatprep.subr.mxu0 0.0
        %1628 = vmatpush1.msra.mxu0 0.0
        %1629 = vmatprep.subr.mxu0 0.0
        %1630 = vmatpush1.msra.mxu0 0.0
        %1631 = vmatprep.subr.mxu0 0.0
        %1632 = vmatpush1.msra.mxu0 0.0
        %1633 = vmatprep.subr.mxu0 0.0
        %1634 = vmatpush1.msra.mxu0 0.0
        %1635 = vmatprep.subr.mxu0 0.0
        %1636 = vmatpush1.msra.mxu0 0.0
        %1637 = vmatprep.subr.mxu0 %v440
        %1638 = vmatpush1.msra.mxu0 %v437
        %1639 = vmatprep.subr.mxu0 %v339
        %1640 = vmatpush1.msra.mxu0 %v338
        %1641 = vmatprep.subr.mxu0 %v337
        %1642 = vmatpush1.msra.mxu0 %v336
        %1643 = vmatprep.subr.mxu0 %v335
        %1644 = vmatpush1.msra.mxu0 %v334
        %1645 = vmatprep.subr.mxu0 0.0
        %1646 = vmatpush2.msra.mxu0 0.0
        %1647 = vmatprep.subr.mxu0 0.0
        %1648 = vmatpush2.msra.mxu0 0.0
        %1649 = vmatprep.subr.mxu0 0.0
        %1650 = vmatpush2.msra.mxu0 0.0
        %1651 = vmatprep.subr.mxu0 0.0
        %1652 = vmatpush2.msra.mxu0 0.0
        %1653 = vmatprep.subr.mxu0 0.0
        %1654 = vmatpush2.msra.mxu0 0.0
        %1655 = vmatprep.subr.mxu0 0.0
        %1656 = vmatpush2.msra.mxu0 0.0
        %1657 = vmatprep.subr.mxu0 0.0
        %1658 = vmatpush2.msra.mxu0 0.0
        %1659 = vmatprep.subr.mxu0 0.0
        %1660 = vmatpush2.msra.mxu0 0.0
        %1661 = vmatprep.subr.mxu0 0.0
        %1662 = vmatpush2.msra.mxu0 0.0
        %1663 = vmatprep.subr.mxu0 0.0
        %1664 = vmatpush2.msra.mxu0 0.0
        %1665 = vmatprep.subr.mxu0 0.0
        %1666 = vmatpush2.msra.mxu0 0.0
        %1667 = vmatprep.subr.mxu0 0.0
        %1668 = vmatpush2.msra.mxu0 0.0
        %1669 = vmatprep.subr.mxu0 0.0
        %1670 = vmatpush2.msra.mxu0 0.0
        %1671 = vmatprep.subr.mxu0 0.0
        %1672 = vmatpush2.msra.mxu0 0.0
        %1673 = vmatprep.subr.mxu0 0.0
        %1674 = vmatpush2.msra.mxu0 0.0
        %1675 = vmatprep.subr.mxu0 0.0
        %1676 = vmatpush2.msra.mxu0 0.0
        %1677 = vmatprep.mubr.f32.mxu0 0.0
        %1678 = vmatmul.mubr.f32.gmra.mxu0 %v614
        %v1679 = vpop.f32.mrf.mxu0
        %v1680 = vadd.f32 %v1609, %v1679
        %v1681 = vpop.f32.mrf.mxu0
        %v1682 = vadd.f32 %v1611, %v1681
        %1683 = vdwg.mxu0
        %1684 = vmatprep.subr.mxu0 0.0
        %1685 = vmatpush1.msra.mxu0 0.0
        %1686 = vmatprep.subr.mxu0 0.0
        %1687 = vmatpush1.msra.mxu0 0.0
        %1688 = vmatprep.subr.mxu0 0.0
        %1689 = vmatpush1.msra.mxu0 0.0
        %1690 = vmatprep.subr.mxu0 0.0
        %1691 = vmatpush1.msra.mxu0 0.0
        %1692 = vmatprep.subr.mxu0 0.0
        %1693 = vmatpush1.msra.mxu0 0.0
        %1694 = vmatprep.subr.mxu0 0.0
        %1695 = vmatpush1.msra.mxu0 0.0
        %1696 = vmatprep.subr.mxu0 0.0
        %1697 = vmatpush1.msra.mxu0 0.0
        %1698 = vmatprep.subr.mxu0 0.0
        %1699 = vmatpush1.msra.mxu0 0.0
        %1700 = vmatprep.subr.mxu0 0.0
        %1701 = vmatpush1.msra.mxu0 0.0
        %1702 = vmatprep.subr.mxu0 0.0
        %1703 = vmatpush1.msra.mxu0 0.0
        %1704 = vmatprep.subr.mxu0 0.0
        %1705 = vmatpush1.msra.mxu0 0.0
        %1706 = vmatprep.subr.mxu0 0.0
        %1707 = vmatpush1.msra.mxu0 0.0
        %1708 = vmatprep.subr.mxu0 %v529
        %1709 = vmatpush1.msra.mxu0 %v526
        %1710 = vmatprep.subr.mxu0 %v519
        %1711 = vmatpush1.msra.mxu0 %v518
        %1712 = vmatprep.subr.mxu0 %v517
        %1713 = vmatpush1.msra.mxu0 %v516
        %1714 = vmatprep.subr.mxu0 %v515
        %1715 = vmatpush1.msra.mxu0 %v514
        %1716 = vmatprep.subr.mxu0 0.0
        %1717 = vmatpush2.msra.mxu0 0.0
        %1718 = vmatprep.subr.mxu0 0.0
        %1719 = vmatpush2.msra.mxu0 0.0
        %1720 = vmatprep.subr.mxu0 0.0
        %1721 = vmatpush2.msra.mxu0 0.0
        %1722 = vmatprep.subr.mxu0 0.0
        %1723 = vmatpush2.msra.mxu0 0.0
        %1724 = vmatprep.subr.mxu0 0.0
        %1725 = vmatpush2.msra.mxu0 0.0
        %1726 = vmatprep.subr.mxu0 0.0
        %1727 = vmatpush2.msra.mxu0 0.0
        %1728 = vmatprep.subr.mxu0 0.0
        %1729 = vmatpush2.msra.mxu0 0.0
        %1730 = vmatprep.subr.mxu0 0.0
        %1731 = vmatpush2.msra.mxu0 0.0
        %1732 = vmatprep.subr.mxu0 0.0
        %1733 = vmatpush2.msra.mxu0 0.0
        %1734 = vmatprep.subr.mxu0 0.0
        %1735 = vmatpush2.msra.mxu0 0.0
        %1736 = vmatprep.subr.mxu0 0.0
        %1737 = vmatpush2.msra.mxu0 0.0
        %1738 = vmatprep.subr.mxu0 0.0
        %1739 = vmatpush2.msra.mxu0 0.0
        %1740 = vmatprep.subr.mxu0 0.0
        %1741 = vmatpush2.msra.mxu0 0.0
        %1742 = vmatprep.subr.mxu0 0.0
        %1743 = vmatpush2.msra.mxu0 0.0
        %1744 = vmatprep.subr.mxu0 0.0
        %1745 = vmatpush2.msra.mxu0 0.0
        %1746 = vmatprep.subr.mxu0 0.0
        %1747 = vmatpush2.msra.mxu0 0.0
        %1748 = vmatprep.mubr.f32.mxu0 0.0
        %1749 = vmatmul.mubr.f32.gmra.mxu0 %v1085
        %v1750 = vpop.f32.mrf.mxu0
        %v1751 = vadd.f32 0.0, %v1750
        %v1752 = vpop.f32.mrf.mxu0
        %v1753 = vadd.f32 0.0, %v1752
        %1754 = vdwg.mxu0
        %v1755 = vadd.f32 %v1680, %v1751
        %v1756 = vadd.f32 %v1682, %v1753
        %1757 = vmatprep.subr.mxu0 0.0
        %1758 = vmatpush1.msra.mxu0 0.0
        %1759 = vmatprep.subr.mxu0 0.0
        %1760 = vmatpush1.msra.mxu0 0.0
        %1761 = vmatprep.subr.mxu0 0.0
        %1762 = vmatpush1.msra.mxu0 0.0
        %1763 = vmatprep.subr.mxu0 0.0
        %1764 = vmatpush1.msra.mxu0 0.0
        %1765 = vmatprep.subr.mxu0 0.0
        %1766 = vmatpush1.msra.mxu0 0.0
        %1767 = vmatprep.subr.mxu0 0.0
        %1768 = vmatpush1.msra.mxu0 0.0
        %1769 = vmatprep.subr.mxu0 0.0
        %1770 = vmatpush1.msra.mxu0 0.0
        %1771 = vmatprep.subr.mxu0 0.0
        %1772 = vmatpush1.msra.mxu0 0.0
        %1773 = vmatprep.subr.mxu0 0.0
        %1774 = vmatpush1.msra.mxu0 0.0
        %1775 = vmatprep.subr.mxu0 0.0
        %1776 = vmatpush1.msra.mxu0 0.0
        %1777 = vmatprep.subr.mxu0 0.0
        %1778 = vmatpush1.msra.mxu0 0.0
        %1779 = vmatprep.subr.mxu0 0.0
        %1780 = vmatpush1.msra.mxu0 0.0
        %1781 = vmatprep.subr.mxu0 %v620
        %1782 = vmatpush1.msra.mxu0 %v617
        %1783 = vmatprep.subr.mxu0 %v610
        %1784 = vmatpush1.msra.mxu0 %v609
        %1785 = vmatprep.subr.mxu0 %v608
        %1786 = vmatpush1.msra.mxu0 %v607
        %1787 = vmatprep.subr.mxu0 %v606
        %1788 = vmatpush1.msra.mxu0 %v605
        %1789 = vmatprep.subr.mxu0 0.0
        %1790 = vmatpush2.msra.mxu0 0.0
        %1791 = vmatprep.subr.mxu0 0.0
        %1792 = vmatpush2.msra.mxu0 0.0
        %1793 = vmatprep.subr.mxu0 0.0
        %1794 = vmatpush2.msra.mxu0 0.0
        %1795 = vmatprep.subr.mxu0 0.0
        %1796 = vmatpush2.msra.mxu0 0.0
        %1797 = vmatprep.subr.mxu0 0.0
        %1798 = vmatpush2.msra.mxu0 0.0
        %1799 = vmatprep.subr.mxu0 0.0
        %1800 = vmatpush2.msra.mxu0 0.0
        %1801 = vmatprep.subr.mxu0 0.0
        %1802 = vmatpush2.msra.mxu0 0.0
        %1803 = vmatprep.subr.mxu0 0.0
        %1804 = vmatpush2.msra.mxu0 0.0
        %1805 = vmatprep.subr.mxu0 0.0
        %1806 = vmatpush2.msra.mxu0 0.0
        %1807 = vmatprep.subr.mxu0 0.0
        %1808 = vmatpush2.msra.mxu0 0.0
        %1809 = vmatprep.subr.mxu0 0.0
        %1810 = vmatpush2.msra.mxu0 0.0
        %1811 = vmatprep.subr.mxu0 0.0
        %1812 = vmatpush2.msra.mxu0 0.0
        %1813 = vmatprep.subr.mxu0 0.0
        %1814 = vmatpush2.msra.mxu0 0.0
        %1815 = vmatprep.subr.mxu0 0.0
        %1816 = vmatpush2.msra.mxu0 0.0
        %1817 = vmatprep.subr.mxu0 0.0
        %1818 = vmatpush2.msra.mxu0 0.0
        %1819 = vmatprep.subr.mxu0 0.0
        %1820 = vmatpush2.msra.mxu0 0.0
        %1821 = vmatprep.mubr.f32.mxu0 0.0
        %1822 = vmatmul.mubr.f32.gmra.mxu0 %v1458
        %v1823 = vpop.f32.mrf.mxu0
        %v1824 = vadd.f32 0.0, %v1823
        %v1825 = vpop.f32.mrf.mxu0
        %v1826 = vadd.f32 0.0, %v1825
        %1827 = vdwg.mxu0
        %v1828 = vadd.f32 %v1755, %v1824
        %v1829 = vadd.f32 %v1756, %v1826
        %v1830 = vrot.slane %v333, 1
        %v1831 = vsel %vm351, %v1830, 0
        %1833 = vmatprep.subr.mxu0 0.0
        %1834 = vmatpush1.msra.mxu0 0.0
        %1835 = vmatprep.subr.mxu0 0.0
        %1836 = vmatpush1.msra.mxu0 0.0
        %1837 = vmatprep.subr.mxu0 0.0
        %1838 = vmatpush1.msra.mxu0 0.0
        %1839 = vmatprep.subr.mxu0 0.0
        %1840 = vmatpush1.msra.mxu0 0.0
        %1841 = vmatprep.subr.mxu0 0.0
        %1842 = vmatpush1.msra.mxu0 0.0
        %1843 = vmatprep.subr.mxu0 0.0
        %1844 = vmatpush1.msra.mxu0 0.0
        %1845 = vmatprep.subr.mxu0 0.0
        %1846 = vmatpush1.msra.mxu0 0.0
        %1847 = vmatprep.subr.mxu0 0.0
        %1848 = vmatpush1.msra.mxu0 0.0
        %1849 = vmatprep.subr.mxu0 0.0
        %1850 = vmatpush1.msra.mxu0 0.0
        %1851 = vmatprep.subr.mxu0 0.0
        %1852 = vmatpush1.msra.mxu0 0.0
        %1853 = vmatprep.subr.mxu0 0.0
        %1854 = vmatpush1.msra.mxu0 0.0
        %1855 = vmatprep.subr.mxu0 0.0
        %1856 = vmatpush1.msra.mxu0 0.0
        %1857 = vmatprep.subr.mxu0 %v711
        %1858 = vmatpush1.msra.mxu0 %v708
        %1859 = vmatprep.subr.mxu0 %v701
        %1860 = vmatpush1.msra.mxu0 %v700
        %1861 = vmatprep.subr.mxu0 %v699
        %1862 = vmatpush1.msra.mxu0 %v698
        %1863 = vmatprep.subr.mxu0 %v697
        %1864 = vmatpush1.msra.mxu0 %v696
        %1865 = vmatprep.subr.mxu0 0.0
        %1866 = vmatpush2.msra.mxu0 0.0
        %1867 = vmatprep.subr.mxu0 0.0
        %1868 = vmatpush2.msra.mxu0 0.0
        %1869 = vmatprep.subr.mxu0 0.0
        %1870 = vmatpush2.msra.mxu0 0.0
        %1871 = vmatprep.subr.mxu0 0.0
        %1872 = vmatpush2.msra.mxu0 0.0
        %1873 = vmatprep.subr.mxu0 0.0
        %1874 = vmatpush2.msra.mxu0 0.0
        %1875 = vmatprep.subr.mxu0 0.0
        %1876 = vmatpush2.msra.mxu0 0.0
        %1877 = vmatprep.subr.mxu0 0.0
        %1878 = vmatpush2.msra.mxu0 0.0
        %1879 = vmatprep.subr.mxu0 0.0
        %1880 = vmatpush2.msra.mxu0 0.0
        %1881 = vmatprep.subr.mxu0 0.0
        %1882 = vmatpush2.msra.mxu0 0.0
        %1883 = vmatprep.subr.mxu0 0.0
        %1884 = vmatpush2.msra.mxu0 0.0
        %1885 = vmatprep.subr.mxu0 0.0
        %1886 = vmatpush2.msra.mxu0 0.0
        %1887 = vmatprep.subr.mxu0 0.0
        %1888 = vmatpush2.msra.mxu0 0.0
        %1889 = vmatprep.subr.mxu0 0.0
        %1890 = vmatpush2.msra.mxu0 0.0
        %1891 = vmatprep.subr.mxu0 0.0
        %1892 = vmatpush2.msra.mxu0 0.0
        %1893 = vmatprep.subr.mxu0 0.0
        %1894 = vmatpush2.msra.mxu0 0.0
        %1895 = vmatprep.subr.mxu0 0.0
        %1896 = vmatpush2.msra.mxu0 0.0
        %1897 = vmatprep.mubr.f32.mxu0 0.0
        %1898 = vmatmul.mubr.f32.gmra.mxu0 %v1831
        %v1899 = vpop.f32.mrf.mxu0
        %v1900 = vadd.f32 0.0, %v1899
        %v1901 = vpop.f32.mrf.mxu0
        %v1902 = vadd.f32 0.0, %v1901
        %1903 = vdwg.mxu0
        %v1904 = vadd.f32 %v1828, %v1900
        %v1905 = vadd.f32 %v1829, %v1902
        %1908 = vrot.lane.b32.xlu0 %v1904, 8
        %v1909 = vpop.permute.xlu0 %1908
        %1910 = vrot.lane.b32.xlu0 %v1905, 8
        %v1911 = vpop.permute.xlu0 %1910
        %v1912 = vsel %vm792, %v1909, %v1911
        %v1914 = vmax.f32 %v1904, %v1912
        %v1915 = vmax.f32 %v795, %v1168
        %v1916 = vld [vmem:[%s2] sm:$0x1]
        %v1918 = vlaneseq
        %v1919 = vshrl.u32 %v1918, 7
        %v1920 = vsub.s32 0, %v1919
        %v1921 = vrot.slane %v1916, %v1920
        %v1923 = vadd.f32 %v1915, %v1921
        %v1924 = vmax.f32 %v1923, 0.0
        %v1925 = vmax.f32 %v1541, %v1914
        %v1926 = vadd.f32 %v1925, %v1921
        %v1927 = vmax.f32 %v1926, 0.0
        %v1928 = vld [vmem:[%s3] sm:$0xff]
        %v1929 = vld [vmem:[%s3 + $0x8] sm:$0xff]
        %v1930 = vld [vmem:[%s3 + $0x10] sm:$0xff]
        %v1931 = vld [vmem:[%s3 + $0x18] sm:$0xff]
        %v1932 = vld [vmem:[%s3 + $0x20] sm:$0xff]
        %v1933 = vld [vmem:[%s3 + $0x28] sm:$0xff]
        %v1934 = vld [vmem:[%s3 + $0x30] sm:$0xff]
        %v1935 = vld [vmem:[%s3 + $0x38] sm:$0xff]
        %v1936 = vld [vmem:[%s3 + $0x40] sm:$0xff]
        %v1937 = vld [vmem:[%s3 + $0x48] sm:$0xff]
        %v1938 = vld [vmem:[%s3 + $0x50] sm:$0xff]
        %v1939 = vld [vmem:[%s3 + $0x58] sm:$0xff]
        %v1940 = vld [vmem:[%s3 + $0x60] sm:$0xff]
        %v1941 = vld [vmem:[%s3 + $0x68] sm:$0xff]
        %v1942 = vld [vmem:[%s3 + $0x70] sm:$0xff]
        %v1943 = vld [vmem:[%s3 + $0x78] sm:$0xff]
        %v1944 = vld [vmem:[%s3 + $0x80] sm:$0xff]
        %v1945 = vld [vmem:[%s3 + $0x88] sm:$0xff]
        %v1946 = vld [vmem:[%s3 + $0x90] sm:$0xff]
        %v1947 = vld [vmem:[%s3 + $0x98] sm:$0xff]
        %v1948 = vld [vmem:[%s3 + $0xa0] sm:$0xff]
        %v1949 = vld [vmem:[%s3 + $0xa8] sm:$0xff]
        %v1950 = vld [vmem:[%s3 + $0xb0] sm:$0xff]
        %v1951 = vld [vmem:[%s3 + $0xb8] sm:$0xff]
        %v1952 = vld [vmem:[%s3 + $0xc0] sm:$0xff]
        %v1953 = vld [vmem:[%s3 + $0xc8] sm:$0xff]
        %v1954 = vld [vmem:[%s3 + $0xd0] sm:$0xff]
        %v1955 = vld [vmem:[%s3 + $0xd8] sm:$0xff]
        %v1956 = vld [vmem:[%s3 + $0xe0] sm:$0xff]
        %v1957 = vld [vmem:[%s3 + $0xe8] sm:$0xff]
        %s1958 = scalar_lea.vmem %s3, 240
        %v1959 = vld [vmem:[%s1958] sm:$0xff]
        %v1960 = vld [vmem:[%s1958 + $0x8] sm:$0xff]
        %v1961 = vld [vmem:[%s1958 + $0x10] sm:$0xff]
        %v1962 = vld [vmem:[%s1958 + $0x18] sm:$0xff]
        %v1963 = vld [vmem:[%s1958 + $0x20] sm:$0xff]
        %v1964 = vld [vmem:[%s1958 + $0x28] sm:$0xff]
        %v1965 = vld [vmem:[%s1958 + $0x30] sm:$0xff]
        %v1966 = vld [vmem:[%s1958 + $0x38] sm:$0xff]
        %v1967 = vld [vmem:[%s1958 + $0x40] sm:$0xff]
        %v1968 = vld [vmem:[%s1958 + $0x48] sm:$0xff]
        %v1969 = vld [vmem:[%s1958 + $0x50] sm:$0xff]
        %v1970 = vld [vmem:[%s1958 + $0x58] sm:$0xff]
        %v1971 = vld [vmem:[%s1958 + $0x60] sm:$0xff]
        %v1972 = vld [vmem:[%s1958 + $0x68] sm:$0xff]
        %v1973 = vld [vmem:[%s1958 + $0x70] sm:$0xff]
        %v1974 = vld [vmem:[%s1958 + $0x78] sm:$0xff]
        %v1975 = vld [vmem:[%s1958 + $0x80] sm:$0xff]
        %v1976 = vld [vmem:[%s1958 + $0x88] sm:$0xff]
        %v1977 = vld [vmem:[%s1958 + $0x90] sm:$0xff]
        %v1978 = vld [vmem:[%s1958 + $0x98] sm:$0xff]
        %v1979 = vld [vmem:[%s1958 + $0xa0] sm:$0xff]
        %v1980 = vld [vmem:[%s1958 + $0xa8] sm:$0xff]
        %v1981 = vld [vmem:[%s1958 + $0xb0] sm:$0xff]
        %v1982 = vld [vmem:[%s1958 + $0xb8] sm:$0xff]
        %v1983 = vld [vmem:[%s1958 + $0xc0] sm:$0xff]
        %v1984 = vld [vmem:[%s1958 + $0xc8] sm:$0xff]
        %v1985 = vld [vmem:[%s1958 + $0xd0] sm:$0xff]
        %v1986 = vld [vmem:[%s1958 + $0xd8] sm:$0xff]
        %v1987 = vld [vmem:[%s1958 + $0xe0] sm:$0xff]
        %v1988 = vld [vmem:[%s1958 + $0xe8] sm:$0xff]
        %vm1989 = vcmask 982016
        %v1991 = vsel %vm1989, %v1927, 0
        %1993 = vmatprep.subr.mxu0 0.0
        %1994 = vmatpush1.msra.mxu0 0.0
        %1995 = vmatprep.subr.mxu0 %v1988
        %1996 = vmatpush1.msra.mxu0 %v1987
        %1997 = vmatprep.subr.mxu0 %v1986
        %1998 = vmatpush1.msra.mxu0 %v1985
        %1999 = vmatprep.subr.mxu0 %v1984
        %2000 = vmatpush1.msra.mxu0 %v1983
        %2001 = vmatprep.subr.mxu0 %v1982
        %2002 = vmatpush1.msra.mxu0 %v1981
        %2003 = vmatprep.subr.mxu0 %v1980
        %2004 = vmatpush1.msra.mxu0 %v1979
        %2005 = vmatprep.subr.mxu0 %v1978
        %2006 = vmatpush1.msra.mxu0 %v1977
        %2007 = vmatprep.subr.mxu0 %v1976
        %2008 = vmatpush1.msra.mxu0 %v1975
        %2009 = vmatprep.subr.mxu0 %v1974
        %2010 = vmatpush1.msra.mxu0 %v1973
        %2011 = vmatprep.subr.mxu0 %v1972
        %2012 = vmatpush1.msra.mxu0 %v1971
        %2013 = vmatprep.subr.mxu0 %v1970
        %2014 = vmatpush1.msra.mxu0 %v1969
        %2015 = vmatprep.subr.mxu0 %v1968
        %2016 = vmatpush1.msra.mxu0 %v1967
        %2017 = vmatprep.subr.mxu0 %v1966
        %2018 = vmatpush1.msra.mxu0 %v1965
        %2019 = vmatprep.subr.mxu0 %v1964
        %2020 = vmatpush1.msra.mxu0 %v1963
        %2021 = vmatprep.subr.mxu0 %v1962
        %2022 = vmatpush1.msra.mxu0 %v1961
        %2023 = vmatprep.subr.mxu0 %v1960
        %2024 = vmatpush1.msra.mxu0 %v1959
        %2025 = vmatprep.subr.mxu0 0.0
        %2026 = vmatpush2.msra.mxu0 0.0
        %2027 = vmatprep.subr.mxu0 0.0
        %2028 = vmatpush2.msra.mxu0 0.0
        %2029 = vmatprep.subr.mxu0 0.0
        %2030 = vmatpush2.msra.mxu0 0.0
        %2031 = vmatprep.subr.mxu0 0.0
        %2032 = vmatpush2.msra.mxu0 0.0
        %2033 = vmatprep.subr.mxu0 0.0
        %2034 = vmatpush2.msra.mxu0 0.0
        %2035 = vmatprep.subr.mxu0 0.0
        %2036 = vmatpush2.msra.mxu0 0.0
        %2037 = vmatprep.subr.mxu0 0.0
        %2038 = vmatpush2.msra.mxu0 0.0
        %2039 = vmatprep.subr.mxu0 0.0
        %2040 = vmatpush2.msra.mxu0 0.0
        %2041 = vmatprep.subr.mxu0 0.0
        %2042 = vmatpush2.msra.mxu0 0.0
        %2043 = vmatprep.subr.mxu0 0.0
        %2044 = vmatpush2.msra.mxu0 0.0
        %2045 = vmatprep.subr.mxu0 0.0
        %2046 = vmatpush2.msra.mxu0 0.0
        %2047 = vmatprep.subr.mxu0 0.0
        %2048 = vmatpush2.msra.mxu0 0.0
        %2049 = vmatprep.subr.mxu0 0.0
        %2050 = vmatpush2.msra.mxu0 0.0
        %2051 = vmatprep.subr.mxu0 0.0
        %2052 = vmatpush2.msra.mxu0 0.0
        %2053 = vmatprep.subr.mxu0 0.0
        %2054 = vmatpush2.msra.mxu0 0.0
        %2055 = vmatprep.subr.mxu0 0.0
        %2056 = vmatpush2.msra.mxu0 0.0
        %2057 = vmatprep.mubr.f32.mxu0 0.0
        %2058 = vmatmul.mubr.f32.gmra.mxu0 %v1991
        %v2059 = vpop.f32.mrf.mxu0
        %v2060 = vadd.f32 0.0, %v2059
        %v2061 = vpop.f32.mrf.mxu0
        %v2062 = vadd.f32 0.0, %v2061
        %2063 = vdwg.mxu0
        %v2065 = vsel %vm1989, %v1924, 0
        %2067 = vmatprep.subr.mxu0 0.0
        %2068 = vmatpush1.msra.mxu0 0.0
        %2069 = vmatprep.subr.mxu0 %v1957
        %2070 = vmatpush1.msra.mxu0 %v1956
        %2071 = vmatprep.subr.mxu0 %v1955
        %2072 = vmatpush1.msra.mxu0 %v1954
        %2073 = vmatprep.subr.mxu0 %v1953
        %2074 = vmatpush1.msra.mxu0 %v1952
        %2075 = vmatprep.subr.mxu0 %v1951
        %2076 = vmatpush1.msra.mxu0 %v1950
        %2077 = vmatprep.subr.mxu0 %v1949
        %2078 = vmatpush1.msra.mxu0 %v1948
        %2079 = vmatprep.subr.mxu0 %v1947
        %2080 = vmatpush1.msra.mxu0 %v1946
        %2081 = vmatprep.subr.mxu0 %v1945
        %2082 = vmatpush1.msra.mxu0 %v1944
        %2083 = vmatprep.subr.mxu0 %v1943
        %2084 = vmatpush1.msra.mxu0 %v1942
        %2085 = vmatprep.subr.mxu0 %v1941
        %2086 = vmatpush1.msra.mxu0 %v1940
        %2087 = vmatprep.subr.mxu0 %v1939
        %2088 = vmatpush1.msra.mxu0 %v1938
        %2089 = vmatprep.subr.mxu0 %v1937
        %2090 = vmatpush1.msra.mxu0 %v1936
        %2091 = vmatprep.subr.mxu0 %v1935
        %2092 = vmatpush1.msra.mxu0 %v1934
        %2093 = vmatprep.subr.mxu0 %v1933
        %2094 = vmatpush1.msra.mxu0 %v1932
        %2095 = vmatprep.subr.mxu0 %v1931
        %2096 = vmatpush1.msra.mxu0 %v1930
        %2097 = vmatprep.subr.mxu0 %v1929
        %2098 = vmatpush1.msra.mxu0 %v1928
        %2099 = vmatprep.subr.mxu0 0.0
        %2100 = vmatpush2.msra.mxu0 0.0
        %2101 = vmatprep.subr.mxu0 0.0
        %2102 = vmatpush2.msra.mxu0 0.0
        %2103 = vmatprep.subr.mxu0 0.0
        %2104 = vmatpush2.msra.mxu0 0.0
        %2105 = vmatprep.subr.mxu0 0.0
        %2106 = vmatpush2.msra.mxu0 0.0
        %2107 = vmatprep.subr.mxu0 0.0
        %2108 = vmatpush2.msra.mxu0 0.0
        %2109 = vmatprep.subr.mxu0 0.0
        %2110 = vmatpush2.msra.mxu0 0.0
        %2111 = vmatprep.subr.mxu0 0.0
        %2112 = vmatpush2.msra.mxu0 0.0
        %2113 = vmatprep.subr.mxu0 0.0
        %2114 = vmatpush2.msra.mxu0 0.0
        %2115 = vmatprep.subr.mxu0 0.0
        %2116 = vmatpush2.msra.mxu0 0.0
        %2117 = vmatprep.subr.mxu0 0.0
        %2118 = vmatpush2.msra.mxu0 0.0
        %2119 = vmatprep.subr.mxu0 0.0
        %2120 = vmatpush2.msra.mxu0 0.0
        %2121 = vmatprep.subr.mxu0 0.0
        %2122 = vmatpush2.msra.mxu0 0.0
        %2123 = vmatprep.subr.mxu0 0.0
        %2124 = vmatpush2.msra.mxu0 0.0
        %2125 = vmatprep.subr.mxu0 0.0
        %2126 = vmatpush2.msra.mxu0 0.0
        %2127 = vmatprep.subr.mxu0 0.0
        %2128 = vmatpush2.msra.mxu0 0.0
        %2129 = vmatprep.subr.mxu0 0.0
        %2130 = vmatpush2.msra.mxu0 0.0
        %2131 = vmatprep.mubr.f32.mxu0 0.0
        %2132 = vmatmul.mubr.f32.gmra.mxu0 %v2065
        %v2133 = vpop.f32.mrf.mxu0
        %v2134 = vadd.f32 %v2060, %v2133
        %v2135 = vpop.f32.mrf.mxu0
        %v2136 = vadd.f32 %v2062, %v2135
        %2137 = vdwg.mxu0
        %s2138 = scalar_lea.vmem %s3, 480
        %v2139 = vld [vmem:[%s2138] sm:$0xff]
        %v2140 = vld [vmem:[%s2138 + $0x8] sm:$0xff]
        %v2141 = vld [vmem:[%s2138 + $0x10] sm:$0xff]
        %v2142 = vld [vmem:[%s2138 + $0x18] sm:$0xff]
        %v2143 = vld [vmem:[%s2138 + $0x20] sm:$0xff]
        %v2144 = vld [vmem:[%s2138 + $0x28] sm:$0xff]
        %v2145 = vld [vmem:[%s2138 + $0x30] sm:$0xff]
        %v2146 = vld [vmem:[%s2138 + $0x38] sm:$0xff]
        %v2147 = vld [vmem:[%s2138 + $0x40] sm:$0xff]
        %v2148 = vld [vmem:[%s2138 + $0x48] sm:$0xff]
        %v2149 = vld [vmem:[%s2138 + $0x50] sm:$0xff]
        %v2150 = vld [vmem:[%s2138 + $0x58] sm:$0xff]
        %v2151 = vld [vmem:[%s2138 + $0x60] sm:$0xff]
        %v2152 = vld [vmem:[%s2138 + $0x68] sm:$0xff]
        %v2153 = vld [vmem:[%s2138 + $0x70] sm:$0xff]
        %v2154 = vld [vmem:[%s2138 + $0x78] sm:$0xff]
        %v2155 = vld [vmem:[%s2138 + $0x80] sm:$0xff]
        %v2156 = vld [vmem:[%s2138 + $0x88] sm:$0xff]
        %v2157 = vld [vmem:[%s2138 + $0x90] sm:$0xff]
        %v2158 = vld [vmem:[%s2138 + $0x98] sm:$0xff]
        %v2159 = vld [vmem:[%s2138 + $0xa0] sm:$0xff]
        %v2160 = vld [vmem:[%s2138 + $0xa8] sm:$0xff]
        %v2161 = vld [vmem:[%s2138 + $0xb0] sm:$0xff]
        %v2162 = vld [vmem:[%s2138 + $0xb8] sm:$0xff]
        %v2163 = vld [vmem:[%s2138 + $0xc0] sm:$0xff]
        %v2164 = vld [vmem:[%s2138 + $0xc8] sm:$0xff]
        %v2165 = vld [vmem:[%s2138 + $0xd0] sm:$0xff]
        %v2166 = vld [vmem:[%s2138 + $0xd8] sm:$0xff]
        %v2167 = vld [vmem:[%s2138 + $0xe0] sm:$0xff]
        %v2168 = vld [vmem:[%s2138 + $0xe8] sm:$0xff]
        %v2169 = vrot.slane %v1924, 1
        %v2170 = vsel %vm1989, %v2169, 0
        %2172 = vmatprep.subr.mxu0 0.0
        %2173 = vmatpush1.msra.mxu0 0.0
        %2174 = vmatprep.subr.mxu0 %v2168
        %2175 = vmatpush1.msra.mxu0 %v2167
        %2176 = vmatprep.subr.mxu0 %v2166
        %2177 = vmatpush1.msra.mxu0 %v2165
        %2178 = vmatprep.subr.mxu0 %v2164
        %2179 = vmatpush1.msra.mxu0 %v2163
        %2180 = vmatprep.subr.mxu0 %v2162
        %2181 = vmatpush1.msra.mxu0 %v2161
        %2182 = vmatprep.subr.mxu0 %v2160
        %2183 = vmatpush1.msra.mxu0 %v2159
        %2184 = vmatprep.subr.mxu0 %v2158
        %2185 = vmatpush1.msra.mxu0 %v2157
        %2186 = vmatprep.subr.mxu0 %v2156
        %2187 = vmatpush1.msra.mxu0 %v2155
        %2188 = vmatprep.subr.mxu0 %v2154
        %2189 = vmatpush1.msra.mxu0 %v2153
        %2190 = vmatprep.subr.mxu0 %v2152
        %2191 = vmatpush1.msra.mxu0 %v2151
        %2192 = vmatprep.subr.mxu0 %v2150
        %2193 = vmatpush1.msra.mxu0 %v2149
        %2194 = vmatprep.subr.mxu0 %v2148
        %2195 = vmatpush1.msra.mxu0 %v2147
        %2196 = vmatprep.subr.mxu0 %v2146
        %2197 = vmatpush1.msra.mxu0 %v2145
        %2198 = vmatprep.subr.mxu0 %v2144
        %2199 = vmatpush1.msra.mxu0 %v2143
        %2200 = vmatprep.subr.mxu0 %v2142
        %2201 = vmatpush1.msra.mxu0 %v2141
        %2202 = vmatprep.subr.mxu0 %v2140
        %2203 = vmatpush1.msra.mxu0 %v2139
        %2204 = vmatprep.subr.mxu0 0.0
        %2205 = vmatpush2.msra.mxu0 0.0
        %2206 = vmatprep.subr.mxu0 0.0
        %2207 = vmatpush2.msra.mxu0 0.0
        %2208 = vmatprep.subr.mxu0 0.0
        %2209 = vmatpush2.msra.mxu0 0.0
        %2210 = vmatprep.subr.mxu0 0.0
        %2211 = vmatpush2.msra.mxu0 0.0
        %2212 = vmatprep.subr.mxu0 0.0
        %2213 = vmatpush2.msra.mxu0 0.0
        %2214 = vmatprep.subr.mxu0 0.0
        %2215 = vmatpush2.msra.mxu0 0.0
        %2216 = vmatprep.subr.mxu0 0.0
        %2217 = vmatpush2.msra.mxu0 0.0
        %2218 = vmatprep.subr.mxu0 0.0
        %2219 = vmatpush2.msra.mxu0 0.0
        %2220 = vmatprep.subr.mxu0 0.0
        %2221 = vmatpush2.msra.mxu0 0.0
        %2222 = vmatprep.subr.mxu0 0.0
        %2223 = vmatpush2.msra.mxu0 0.0
        %2224 = vmatprep.subr.mxu0 0.0
        %2225 = vmatpush2.msra.mxu0 0.0
        %2226 = vmatprep.subr.mxu0 0.0
        %2227 = vmatpush2.msra.mxu0 0.0
        %2228 = vmatprep.subr.mxu0 0.0
        %2229 = vmatpush2.msra.mxu0 0.0
        %2230 = vmatprep.subr.mxu0 0.0
        %2231 = vmatpush2.msra.mxu0 0.0
        %2232 = vmatprep.subr.mxu0 0.0
        %2233 = vmatpush2.msra.mxu0 0.0
        %2234 = vmatprep.subr.mxu0 0.0
        %2235 = vmatpush2.msra.mxu0 0.0
        %2236 = vmatprep.mubr.f32.mxu0 0.0
        %2237 = vmatmul.mubr.f32.gmra.mxu0 %v2170
        %v2238 = vpop.f32.mrf.mxu0
        %v2239 = vadd.f32 0.0, %v2238
        %v2240 = vpop.f32.mrf.mxu0
        %v2241 = vadd.f32 0.0, %v2240
        %2242 = vdwg.mxu0
        %v2243 = vadd.f32 %v2134, %v2239
        %v2244 = vadd.f32 %v2136, %v2241
        %s2245 = scalar_lea.vmem %s3, 720
        %v2246 = vld [vmem:[%s2245] sm:$0xff]
        %v2247 = vld [vmem:[%s2245 + $0x8] sm:$0xff]
        %v2248 = vld [vmem:[%s2245 + $0x10] sm:$0xff]
        %v2249 = vld [vmem:[%s2245 + $0x18] sm:$0xff]
        %v2250 = vld [vmem:[%s2245 + $0x20] sm:$0xff]
        %v2251 = vld [vmem:[%s2245 + $0x28] sm:$0xff]
        %v2252 = vld [vmem:[%s2245 + $0x30] sm:$0xff]
        %v2253 = vld [vmem:[%s2245 + $0x38] sm:$0xff]
        %v2254 = vld [vmem:[%s2245 + $0x40] sm:$0xff]
        %v2255 = vld [vmem:[%s2245 + $0x48] sm:$0xff]
        %v2256 = vld [vmem:[%s2245 + $0x50] sm:$0xff]
        %v2257 = vld [vmem:[%s2245 + $0x58] sm:$0xff]
        %v2258 = vld [vmem:[%s2245 + $0x60] sm:$0xff]
        %v2259 = vld [vmem:[%s2245 + $0x68] sm:$0xff]
        %v2260 = vld [vmem:[%s2245 + $0x70] sm:$0xff]
        %v2261 = vld [vmem:[%s2245 + $0x78] sm:$0xff]
        %v2262 = vld [vmem:[%s2245 + $0x80] sm:$0xff]
        %v2263 = vld [vmem:[%s2245 + $0x88] sm:$0xff]
        %v2264 = vld [vmem:[%s2245 + $0x90] sm:$0xff]
        %v2265 = vld [vmem:[%s2245 + $0x98] sm:$0xff]
        %v2266 = vld [vmem:[%s2245 + $0xa0] sm:$0xff]
        %v2267 = vld [vmem:[%s2245 + $0xa8] sm:$0xff]
        %v2268 = vld [vmem:[%s2245 + $0xb0] sm:$0xff]
        %v2269 = vld [vmem:[%s2245 + $0xb8] sm:$0xff]
        %v2270 = vld [vmem:[%s2245 + $0xc0] sm:$0xff]
        %v2271 = vld [vmem:[%s2245 + $0xc8] sm:$0xff]
        %v2272 = vld [vmem:[%s2245 + $0xd0] sm:$0xff]
        %v2273 = vld [vmem:[%s2245 + $0xd8] sm:$0xff]
        %v2274 = vld [vmem:[%s2245 + $0xe0] sm:$0xff]
        %v2275 = vld [vmem:[%s2245 + $0xe8] sm:$0xff]
        %v2276 = vrot.slane %v1927, 1
        %v2277 = vsel %vm1989, %v2276, 0
        %2279 = vmatprep.subr.mxu0 0.0
        %2280 = vmatpush1.msra.mxu0 0.0
        %2281 = vmatprep.subr.mxu0 %v2275
        %2282 = vmatpush1.msra.mxu0 %v2274
        %2283 = vmatprep.subr.mxu0 %v2273
        %2284 = vmatpush1.msra.mxu0 %v2272
        %2285 = vmatprep.subr.mxu0 %v2271
        %2286 = vmatpush1.msra.mxu0 %v2270
        %2287 = vmatprep.subr.mxu0 %v2269
        %2288 = vmatpush1.msra.mxu0 %v2268
        %2289 = vmatprep.subr.mxu0 %v2267
        %2290 = vmatpush1.msra.mxu0 %v2266
        %2291 = vmatprep.subr.mxu0 %v2265
        %2292 = vmatpush1.msra.mxu0 %v2264
        %2293 = vmatprep.subr.mxu0 %v2263
        %2294 = vmatpush1.msra.mxu0 %v2262
        %2295 = vmatprep.subr.mxu0 %v2261
        %2296 = vmatpush1.msra.mxu0 %v2260
        %2297 = vmatprep.subr.mxu0 %v2259
        %2298 = vmatpush1.msra.mxu0 %v2258
        %2299 = vmatprep.subr.mxu0 %v2257
        %2300 = vmatpush1.msra.mxu0 %v2256
        %2301 = vmatprep.subr.mxu0 %v2255
        %2302 = vmatpush1.msra.mxu0 %v2254
        %2303 = vmatprep.subr.mxu0 %v2253
        %2304 = vmatpush1.msra.mxu0 %v2252
        %2305 = vmatprep.subr.mxu0 %v2251
        %2306 = vmatpush1.msra.mxu0 %v2250
        %2307 = vmatprep.subr.mxu0 %v2249
        %2308 = vmatpush1.msra.mxu0 %v2248
        %2309 = vmatprep.subr.mxu0 %v2247
        %2310 = vmatpush1.msra.mxu0 %v2246
        %2311 = vmatprep.subr.mxu0 0.0
        %2312 = vmatpush2.msra.mxu0 0.0
        %2313 = vmatprep.subr.mxu0 0.0
        %2314 = vmatpush2.msra.mxu0 0.0
        %2315 = vmatprep.subr.mxu0 0.0
        %2316 = vmatpush2.msra.mxu0 0.0
        %2317 = vmatprep.subr.mxu0 0.0
        %2318 = vmatpush2.msra.mxu0 0.0
        %2319 = vmatprep.subr.mxu0 0.0
        %2320 = vmatpush2.msra.mxu0 0.0
        %2321 = vmatprep.subr.mxu0 0.0
        %2322 = vmatpush2.msra.mxu0 0.0
        %2323 = vmatprep.subr.mxu0 0.0
        %2324 = vmatpush2.msra.mxu0 0.0
        %2325 = vmatprep.subr.mxu0 0.0
        %2326 = vmatpush2.msra.mxu0 0.0
        %2327 = vmatprep.subr.mxu0 0.0
        %2328 = vmatpush2.msra.mxu0 0.0
        %2329 = vmatprep.subr.mxu0 0.0
        %2330 = vmatpush2.msra.mxu0 0.0
        %2331 = vmatprep.subr.mxu0 0.0
        %2332 = vmatpush2.msra.mxu0 0.0
        %2333 = vmatprep.subr.mxu0 0.0
        %2334 = vmatpush2.msra.mxu0 0.0
        %2335 = vmatprep.subr.mxu0 0.0
        %2336 = vmatpush2.msra.mxu0 0.0
        %2337 = vmatprep.subr.mxu0 0.0
        %2338 = vmatpush2.msra.mxu0 0.0
        %2339 = vmatprep.subr.mxu0 0.0
        %2340 = vmatpush2.msra.mxu0 0.0
        %2341 = vmatprep.subr.mxu0 0.0
        %2342 = vmatpush2.msra.mxu0 0.0
        %2343 = vmatprep.mubr.f32.mxu0 0.0
        %2344 = vmatmul.mubr.f32.gmra.mxu0 %v2277
        %v2345 = vpop.f32.mrf.mxu0
        %v2346 = vadd.f32 0.0, %v2345
        %v2347 = vpop.f32.mrf.mxu0
        %v2348 = vadd.f32 0.0, %v2347
        %2349 = vdwg.mxu0
        %v2350 = vadd.f32 %v2243, %v2346
        %v2351 = vadd.f32 %v2244, %v2348
        %s2352 = scalar_lea.vmem %s3, 960
        %v2353 = vld [vmem:[%s2352] sm:$0xff]
        %v2354 = vld [vmem:[%s2352 + $0x8] sm:$0xff]
        %v2355 = vld [vmem:[%s2352 + $0x10] sm:$0xff]
        %v2356 = vld [vmem:[%s2352 + $0x18] sm:$0xff]
        %v2357 = vld [vmem:[%s2352 + $0x20] sm:$0xff]
        %v2358 = vld [vmem:[%s2352 + $0x28] sm:$0xff]
        %v2359 = vld [vmem:[%s2352 + $0x30] sm:$0xff]
        %v2360 = vld [vmem:[%s2352 + $0x38] sm:$0xff]
        %v2361 = vld [vmem:[%s2352 + $0x40] sm:$0xff]
        %v2362 = vld [vmem:[%s2352 + $0x48] sm:$0xff]
        %v2363 = vld [vmem:[%s2352 + $0x50] sm:$0xff]
        %v2364 = vld [vmem:[%s2352 + $0x58] sm:$0xff]
        %v2365 = vld [vmem:[%s2352 + $0x60] sm:$0xff]
        %v2366 = vld [vmem:[%s2352 + $0x68] sm:$0xff]
        %v2367 = vld [vmem:[%s2352 + $0x70] sm:$0xff]
        %v2368 = vld [vmem:[%s2352 + $0x78] sm:$0xff]
        %v2369 = vld [vmem:[%s2352 + $0x80] sm:$0xff]
        %v2370 = vld [vmem:[%s2352 + $0x88] sm:$0xff]
        %v2371 = vld [vmem:[%s2352 + $0x90] sm:$0xff]
        %v2372 = vld [vmem:[%s2352 + $0x98] sm:$0xff]
        %v2373 = vld [vmem:[%s2352 + $0xa0] sm:$0xff]
        %v2374 = vld [vmem:[%s2352 + $0xa8] sm:$0xff]
        %v2375 = vld [vmem:[%s2352 + $0xb0] sm:$0xff]
        %v2376 = vld [vmem:[%s2352 + $0xb8] sm:$0xff]
        %v2377 = vld [vmem:[%s2352 + $0xc0] sm:$0xff]
        %v2378 = vld [vmem:[%s2352 + $0xc8] sm:$0xff]
        %v2379 = vld [vmem:[%s2352 + $0xd0] sm:$0xff]
        %v2380 = vld [vmem:[%s2352 + $0xd8] sm:$0xff]
        %v2381 = vld [vmem:[%s2352 + $0xe0] sm:$0xff]
        %v2382 = vld [vmem:[%s2352 + $0xe8] sm:$0xff]
        %v2383 = vrot.slane %v1924, 2
        %v2384 = vsel %vm1989, %v2383, 0
        %2386 = vmatprep.subr.mxu0 0.0
        %2387 = vmatpush1.msra.mxu0 0.0
        %2388 = vmatprep.subr.mxu0 %v2382
        %2389 = vmatpush1.msra.mxu0 %v2381
        %2390 = vmatprep.subr.mxu0 %v2380
        %2391 = vmatpush1.msra.mxu0 %v2379
        %2392 = vmatprep.subr.mxu0 %v2378
        %2393 = vmatpush1.msra.mxu0 %v2377
        %2394 = vmatprep.subr.mxu0 %v2376
        %2395 = vmatpush1.msra.mxu0 %v2375
        %2396 = vmatprep.subr.mxu0 %v2374
        %2397 = vmatpush1.msra.mxu0 %v2373
        %2398 = vmatprep.subr.mxu0 %v2372
        %2399 = vmatpush1.msra.mxu0 %v2371
        %2400 = vmatprep.subr.mxu0 %v2370
        %2401 = vmatpush1.msra.mxu0 %v2369
        %2402 = vmatprep.subr.mxu0 %v2368
        %2403 = vmatpush1.msra.mxu0 %v2367
        %2404 = vmatprep.subr.mxu0 %v2366
        %2405 = vmatpush1.msra.mxu0 %v2365
        %2406 = vmatprep.subr.mxu0 %v2364
        %2407 = vmatpush1.msra.mxu0 %v2363
        %2408 = vmatprep.subr.mxu0 %v2362
        %2409 = vmatpush1.msra.mxu0 %v2361
        %2410 = vmatprep.subr.mxu0 %v2360
        %2411 = vmatpush1.msra.mxu0 %v2359
        %2412 = vmatprep.subr.mxu0 %v2358
        %2413 = vmatpush1.msra.mxu0 %v2357
        %2414 = vmatprep.subr.mxu0 %v2356
        %2415 = vmatpush1.msra.mxu0 %v2355
        %2416 = vmatprep.subr.mxu0 %v2354
        %2417 = vmatpush1.msra.mxu0 %v2353
        %2418 = vmatprep.subr.mxu0 0.0
        %2419 = vmatpush2.msra.mxu0 0.0
        %2420 = vmatprep.subr.mxu0 0.0
        %2421 = vmatpush2.msra.mxu0 0.0
        %2422 = vmatprep.subr.mxu0 0.0
        %2423 = vmatpush2.msra.mxu0 0.0
        %2424 = vmatprep.subr.mxu0 0.0
        %2425 = vmatpush2.msra.mxu0 0.0
        %2426 = vmatprep.subr.mxu0 0.0
        %2427 = vmatpush2.msra.mxu0 0.0
        %2428 = vmatprep.subr.mxu0 0.0
        %2429 = vmatpush2.msra.mxu0 0.0
        %2430 = vmatprep.subr.mxu0 0.0
        %2431 = vmatpush2.msra.mxu0 0.0
        %2432 = vmatprep.subr.mxu0 0.0
        %2433 = vmatpush2.msra.mxu0 0.0
        %2434 = vmatprep.subr.mxu0 0.0
        %2435 = vmatpush2.msra.mxu0 0.0
        %2436 = vmatprep.subr.mxu0 0.0
        %2437 = vmatpush2.msra.mxu0 0.0
        %2438 = vmatprep.subr.mxu0 0.0
        %2439 = vmatpush2.msra.mxu0 0.0
        %2440 = vmatprep.subr.mxu0 0.0
        %2441 = vmatpush2.msra.mxu0 0.0
        %2442 = vmatprep.subr.mxu0 0.0
        %2443 = vmatpush2.msra.mxu0 0.0
        %2444 = vmatprep.subr.mxu0 0.0
        %2445 = vmatpush2.msra.mxu0 0.0
        %2446 = vmatprep.subr.mxu0 0.0
        %2447 = vmatpush2.msra.mxu0 0.0
        %2448 = vmatprep.subr.mxu0 0.0
        %2449 = vmatpush2.msra.mxu0 0.0
        %2450 = vmatprep.mubr.f32.mxu0 0.0
        %2451 = vmatmul.mubr.f32.gmra.mxu0 %v2384
        %v2452 = vpop.f32.mrf.mxu0
        %v2453 = vadd.f32 0.0, %v2452
        %v2454 = vpop.f32.mrf.mxu0
        %v2455 = vadd.f32 0.0, %v2454
        %2456 = vdwg.mxu0
        %v2457 = vadd.f32 %v2350, %v2453
        %v2458 = vadd.f32 %v2351, %v2455
        %2461 = vrot.lane.b32.xlu0 %v2457, 48
        %v2462 = vpop.permute.xlu0 %2461
        %2463 = vrot.lane.b32.xlu0 %v2458, 48
        %v2464 = vpop.permute.xlu0 %2463
        %vm2465 = vcmask 392192
        %v2466 = vsel %vm2465, %v2462, %v2464
        %v2468 = vmax.f32 %v2457, %v2466
        %2469 = vmatprep.subr.mxu0 0.0
        %2470 = vmatpush1.msra.mxu0 0.0
        %2471 = vmatprep.subr.mxu0 %v1988
        %2472 = vmatpush1.msra.mxu0 %v1987
        %2473 = vmatprep.subr.mxu0 %v1986
        %2474 = vmatpush1.msra.mxu0 %v1985
        %2475 = vmatprep.subr.mxu0 %v1984
        %2476 = vmatpush1.msra.mxu0 %v1983
        %2477 = vmatprep.subr.mxu0 %v1982
        %2478 = vmatpush1.msra.mxu0 %v1981
        %2479 = vmatprep.subr.mxu0 %v1980
        %2480 = vmatpush1.msra.mxu0 %v1979
        %2481 = vmatprep.subr.mxu0 %v1978
        %2482 = vmatpush1.msra.mxu0 %v1977
        %2483 = vmatprep.subr.mxu0 %v1976
        %2484 = vmatpush1.msra.mxu0 %v1975
        %2485 = vmatprep.subr.mxu0 %v1974
        %2486 = vmatpush1.msra.mxu0 %v1973
        %2487 = vmatprep.subr.mxu0 %v1972
        %2488 = vmatpush1.msra.mxu0 %v1971
        %2489 = vmatprep.subr.mxu0 %v1970
        %2490 = vmatpush1.msra.mxu0 %v1969
        %2491 = vmatprep.subr.mxu0 %v1968
        %2492 = vmatpush1.msra.mxu0 %v1967
        %2493 = vmatprep.subr.mxu0 %v1966
        %2494 = vmatpush1.msra.mxu0 %v1965
        %2495 = vmatprep.subr.mxu0 %v1964
        %2496 = vmatpush1.msra.mxu0 %v1963
        %2497 = vmatprep.subr.mxu0 %v1962
        %2498 = vmatpush1.msra.mxu0 %v1961
        %2499 = vmatprep.subr.mxu0 %v1960
        %2500 = vmatpush1.msra.mxu0 %v1959
        %2501 = vmatprep.subr.mxu0 0.0
        %2502 = vmatpush2.msra.mxu0 0.0
        %2503 = vmatprep.subr.mxu0 0.0
        %2504 = vmatpush2.msra.mxu0 0.0
        %2505 = vmatprep.subr.mxu0 0.0
        %2506 = vmatpush2.msra.mxu0 0.0
        %2507 = vmatprep.subr.mxu0 0.0
        %2508 = vmatpush2.msra.mxu0 0.0
        %2509 = vmatprep.subr.mxu0 0.0
        %2510 = vmatpush2.msra.mxu0 0.0
        %2511 = vmatprep.subr.mxu0 0.0
        %2512 = vmatpush2.msra.mxu0 0.0
        %2513 = vmatprep.subr.mxu0 0.0
        %2514 = vmatpush2.msra.mxu0 0.0
        %2515 = vmatprep.subr.mxu0 0.0
        %2516 = vmatpush2.msra.mxu0 0.0
        %2517 = vmatprep.subr.mxu0 0.0
        %2518 = vmatpush2.msra.mxu0 0.0
        %2519 = vmatprep.subr.mxu0 0.0
        %2520 = vmatpush2.msra.mxu0 0.0
        %2521 = vmatprep.subr.mxu0 0.0
        %2522 = vmatpush2.msra.mxu0 0.0
        %2523 = vmatprep.subr.mxu0 0.0
        %2524 = vmatpush2.msra.mxu0 0.0
        %2525 = vmatprep.subr.mxu0 0.0
        %2526 = vmatpush2.msra.mxu0 0.0
        %2527 = vmatprep.subr.mxu0 0.0
        %2528 = vmatpush2.msra.mxu0 0.0
        %2529 = vmatprep.subr.mxu0 0.0
        %2530 = vmatpush2.msra.mxu0 0.0
        %2531 = vmatprep.subr.mxu0 0.0
        %2532 = vmatpush2.msra.mxu0 0.0
        %2533 = vmatprep.mubr.f32.mxu0 0.0
        %2534 = vmatmul.mubr.f32.gmra.mxu0 %v2170
        %v2535 = vpop.f32.mrf.mxu0
        %v2536 = vadd.f32 0.0, %v2535
        %v2537 = vpop.f32.mrf.mxu0
        %v2538 = vadd.f32 0.0, %v2537
        %2539 = vdwg.mxu0
        %2540 = vmatprep.subr.mxu0 0.0
        %2541 = vmatpush1.msra.mxu0 0.0
        %2542 = vmatprep.subr.mxu0 %v1957
        %2543 = vmatpush1.msra.mxu0 %v1956
        %2544 = vmatprep.subr.mxu0 %v1955
        %2545 = vmatpush1.msra.mxu0 %v1954
        %2546 = vmatprep.subr.mxu0 %v1953
        %2547 = vmatpush1.msra.mxu0 %v1952
        %2548 = vmatprep.subr.mxu0 %v1951
        %2549 = vmatpush1.msra.mxu0 %v1950
        %2550 = vmatprep.subr.mxu0 %v1949
        %2551 = vmatpush1.msra.mxu0 %v1948
        %2552 = vmatprep.subr.mxu0 %v1947
        %2553 = vmatpush1.msra.mxu0 %v1946
        %2554 = vmatprep.subr.mxu0 %v1945
        %2555 = vmatpush1.msra.mxu0 %v1944
        %2556 = vmatprep.subr.mxu0 %v1943
        %2557 = vmatpush1.msra.mxu0 %v1942
        %2558 = vmatprep.subr.mxu0 %v1941
        %2559 = vmatpush1.msra.mxu0 %v1940
        %2560 = vmatprep.subr.mxu0 %v1939
        %2561 = vmatpush1.msra.mxu0 %v1938
        %2562 = vmatprep.subr.mxu0 %v1937
        %2563 = vmatpush1.msra.mxu0 %v1936
        %2564 = vmatprep.subr.mxu0 %v1935
        %2565 = vmatpush1.msra.mxu0 %v1934
        %2566 = vmatprep.subr.mxu0 %v1933
        %2567 = vmatpush1.msra.mxu0 %v1932
        %2568 = vmatprep.subr.mxu0 %v1931
        %2569 = vmatpush1.msra.mxu0 %v1930
        %2570 = vmatprep.subr.mxu0 %v1929
        %2571 = vmatpush1.msra.mxu0 %v1928
        %2572 = vmatprep.subr.mxu0 0.0
        %2573 = vmatpush2.msra.mxu0 0.0
        %2574 = vmatprep.subr.mxu0 0.0
        %2575 = vmatpush2.msra.mxu0 0.0
        %2576 = vmatprep.subr.mxu0 0.0
        %2577 = vmatpush2.msra.mxu0 0.0
        %2578 = vmatprep.subr.mxu0 0.0
        %2579 = vmatpush2.msra.mxu0 0.0
        %2580 = vmatprep.subr.mxu0 0.0
        %2581 = vmatpush2.msra.mxu0 0.0
        %2582 = vmatprep.subr.mxu0 0.0
        %2583 = vmatpush2.msra.mxu0 0.0
        %2584 = vmatprep.subr.mxu0 0.0
        %2585 = vmatpush2.msra.mxu0 0.0
        %2586 = vmatprep.subr.mxu0 0.0
        %2587 = vmatpush2.msra.mxu0 0.0
        %2588 = vmatprep.subr.mxu0 0.0
        %2589 = vmatpush2.msra.mxu0 0.0
        %2590 = vmatprep.subr.mxu0 0.0
        %2591 = vmatpush2.msra.mxu0 0.0
        %2592 = vmatprep.subr.mxu0 0.0
        %2593 = vmatpush2.msra.mxu0 0.0
        %2594 = vmatprep.subr.mxu0 0.0
        %2595 = vmatpush2.msra.mxu0 0.0
        %2596 = vmatprep.subr.mxu0 0.0
        %2597 = vmatpush2.msra.mxu0 0.0
        %2598 = vmatprep.subr.mxu0 0.0
        %2599 = vmatpush2.msra.mxu0 0.0
        %2600 = vmatprep.subr.mxu0 0.0
        %2601 = vmatpush2.msra.mxu0 0.0
        %2602 = vmatprep.subr.mxu0 0.0
        %2603 = vmatpush2.msra.mxu0 0.0
        %2604 = vmatprep.mubr.f32.mxu0 0.0
        %2605 = vmatmul.mubr.f32.gmra.mxu0 %v1991
        %v2606 = vpop.f32.mrf.mxu0
        %v2607 = vadd.f32 %v2536, %v2606
        %v2608 = vpop.f32.mrf.mxu0
        %v2609 = vadd.f32 %v2538, %v2608
        %2610 = vdwg.mxu0
        %2611 = vmatprep.subr.mxu0 0.0
        %2612 = vmatpush1.msra.mxu0 0.0
        %2613 = vmatprep.subr.mxu0 %v2168
        %2614 = vmatpush1.msra.mxu0 %v2167
        %2615 = vmatprep.subr.mxu0 %v2166
        %2616 = vmatpush1.msra.mxu0 %v2165
        %2617 = vmatprep.subr.mxu0 %v2164
        %2618 = vmatpush1.msra.mxu0 %v2163
        %2619 = vmatprep.subr.mxu0 %v2162
        %2620 = vmatpush1.msra.mxu0 %v2161
        %2621 = vmatprep.subr.mxu0 %v2160
        %2622 = vmatpush1.msra.mxu0 %v2159
        %2623 = vmatprep.subr.mxu0 %v2158
        %2624 = vmatpush1.msra.mxu0 %v2157
        %2625 = vmatprep.subr.mxu0 %v2156
        %2626 = vmatpush1.msra.mxu0 %v2155
        %2627 = vmatprep.subr.mxu0 %v2154
        %2628 = vmatpush1.msra.mxu0 %v2153
        %2629 = vmatprep.subr.mxu0 %v2152
        %2630 = vmatpush1.msra.mxu0 %v2151
        %2631 = vmatprep.subr.mxu0 %v2150
        %2632 = vmatpush1.msra.mxu0 %v2149
        %2633 = vmatprep.subr.mxu0 %v2148
        %2634 = vmatpush1.msra.mxu0 %v2147
        %2635 = vmatprep.subr.mxu0 %v2146
        %2636 = vmatpush1.msra.mxu0 %v2145
        %2637 = vmatprep.subr.mxu0 %v2144
        %2638 = vmatpush1.msra.mxu0 %v2143
        %2639 = vmatprep.subr.mxu0 %v2142
        %2640 = vmatpush1.msra.mxu0 %v2141
        %2641 = vmatprep.subr.mxu0 %v2140
        %2642 = vmatpush1.msra.mxu0 %v2139
        %2643 = vmatprep.subr.mxu0 0.0
        %2644 = vmatpush2.msra.mxu0 0.0
        %2645 = vmatprep.subr.mxu0 0.0
        %2646 = vmatpush2.msra.mxu0 0.0
        %2647 = vmatprep.subr.mxu0 0.0
        %2648 = vmatpush2.msra.mxu0 0.0
        %2649 = vmatprep.subr.mxu0 0.0
        %2650 = vmatpush2.msra.mxu0 0.0
        %2651 = vmatprep.subr.mxu0 0.0
        %2652 = vmatpush2.msra.mxu0 0.0
        %2653 = vmatprep.subr.mxu0 0.0
        %2654 = vmatpush2.msra.mxu0 0.0
        %2655 = vmatprep.subr.mxu0 0.0
        %2656 = vmatpush2.msra.mxu0 0.0
        %2657 = vmatprep.subr.mxu0 0.0
        %2658 = vmatpush2.msra.mxu0 0.0
        %2659 = vmatprep.subr.mxu0 0.0
        %2660 = vmatpush2.msra.mxu0 0.0
        %2661 = vmatprep.subr.mxu0 0.0
        %2662 = vmatpush2.msra.mxu0 0.0
        %2663 = vmatprep.subr.mxu0 0.0
        %2664 = vmatpush2.msra.mxu0 0.0
        %2665 = vmatprep.subr.mxu0 0.0
        %2666 = vmatpush2.msra.mxu0 0.0
        %2667 = vmatprep.subr.mxu0 0.0
        %2668 = vmatpush2.msra.mxu0 0.0
        %2669 = vmatprep.subr.mxu0 0.0
        %2670 = vmatpush2.msra.mxu0 0.0
        %2671 = vmatprep.subr.mxu0 0.0
        %2672 = vmatpush2.msra.mxu0 0.0
        %2673 = vmatprep.subr.mxu0 0.0
        %2674 = vmatpush2.msra.mxu0 0.0
        %2675 = vmatprep.mubr.f32.mxu0 0.0
        %2676 = vmatmul.mubr.f32.gmra.mxu0 %v2277
        %v2677 = vpop.f32.mrf.mxu0
        %v2678 = vadd.f32 0.0, %v2677
        %v2679 = vpop.f32.mrf.mxu0
        %v2680 = vadd.f32 0.0, %v2679
        %2681 = vdwg.mxu0
        %v2682 = vadd.f32 %v2607, %v2678
        %v2683 = vadd.f32 %v2609, %v2680
        %2684 = vmatprep.subr.mxu0 0.0
        %2685 = vmatpush1.msra.mxu0 0.0
        %2686 = vmatprep.subr.mxu0 %v2275
        %2687 = vmatpush1.msra.mxu0 %v2274
        %2688 = vmatprep.subr.mxu0 %v2273
        %2689 = vmatpush1.msra.mxu0 %v2272
        %2690 = vmatprep.subr.mxu0 %v2271
        %2691 = vmatpush1.msra.mxu0 %v2270
        %2692 = vmatprep.subr.mxu0 %v2269
        %2693 = vmatpush1.msra.mxu0 %v2268
        %2694 = vmatprep.subr.mxu0 %v2267
        %2695 = vmatpush1.msra.mxu0 %v2266
        %2696 = vmatprep.subr.mxu0 %v2265
        %2697 = vmatpush1.msra.mxu0 %v2264
        %2698 = vmatprep.subr.mxu0 %v2263
        %2699 = vmatpush1.msra.mxu0 %v2262
        %2700 = vmatprep.subr.mxu0 %v2261
        %2701 = vmatpush1.msra.mxu0 %v2260
        %2702 = vmatprep.subr.mxu0 %v2259
        %2703 = vmatpush1.msra.mxu0 %v2258
        %2704 = vmatprep.subr.mxu0 %v2257
        %2705 = vmatpush1.msra.mxu0 %v2256
        %2706 = vmatprep.subr.mxu0 %v2255
        %2707 = vmatpush1.msra.mxu0 %v2254
        %2708 = vmatprep.subr.mxu0 %v2253
        %2709 = vmatpush1.msra.mxu0 %v2252
        %2710 = vmatprep.subr.mxu0 %v2251
        %2711 = vmatpush1.msra.mxu0 %v2250
        %2712 = vmatprep.subr.mxu0 %v2249
        %2713 = vmatpush1.msra.mxu0 %v2248
        %2714 = vmatprep.subr.mxu0 %v2247
        %2715 = vmatpush1.msra.mxu0 %v2246
        %2716 = vmatprep.subr.mxu0 0.0
        %2717 = vmatpush2.msra.mxu0 0.0
        %2718 = vmatprep.subr.mxu0 0.0
        %2719 = vmatpush2.msra.mxu0 0.0
        %2720 = vmatprep.subr.mxu0 0.0
        %2721 = vmatpush2.msra.mxu0 0.0
        %2722 = vmatprep.subr.mxu0 0.0
        %2723 = vmatpush2.msra.mxu0 0.0
        %2724 = vmatprep.subr.mxu0 0.0
        %2725 = vmatpush2.msra.mxu0 0.0
        %2726 = vmatprep.subr.mxu0 0.0
        %2727 = vmatpush2.msra.mxu0 0.0
        %2728 = vmatprep.subr.mxu0 0.0
        %2729 = vmatpush2.msra.mxu0 0.0
        %2730 = vmatprep.subr.mxu0 0.0
        %2731 = vmatpush2.msra.mxu0 0.0
        %2732 = vmatprep.subr.mxu0 0.0
        %2733 = vmatpush2.msra.mxu0 0.0
        %2734 = vmatprep.subr.mxu0 0.0
        %2735 = vmatpush2.msra.mxu0 0.0
        %2736 = vmatprep.subr.mxu0 0.0
        %2737 = vmatpush2.msra.mxu0 0.0
        %2738 = vmatprep.subr.mxu0 0.0
        %2739 = vmatpush2.msra.mxu0 0.0
        %2740 = vmatprep.subr.mxu0 0.0
        %2741 = vmatpush2.msra.mxu0 0.0
        %2742 = vmatprep.subr.mxu0 0.0
        %2743 = vmatpush2.msra.mxu0 0.0
        %2744 = vmatprep.subr.mxu0 0.0
        %2745 = vmatpush2.msra.mxu0 0.0
        %2746 = vmatprep.subr.mxu0 0.0
        %2747 = vmatpush2.msra.mxu0 0.0
        %2748 = vmatprep.mubr.f32.mxu0 0.0
        %2749 = vmatmul.mubr.f32.gmra.mxu0 %v2384
        %v2750 = vpop.f32.mrf.mxu0
        %v2751 = vadd.f32 0.0, %v2750
        %v2752 = vpop.f32.mrf.mxu0
        %v2753 = vadd.f32 0.0, %v2752
        %2754 = vdwg.mxu0
        %v2755 = vadd.f32 %v2682, %v2751
        %v2756 = vadd.f32 %v2683, %v2753
        %v2757 = vrot.slane %v1927, 2
        %v2758 = vsel %vm1989, %v2757, 0
        %2760 = vmatprep.subr.mxu0 0.0
        %2761 = vmatpush1.msra.mxu0 0.0
        %2762 = vmatprep.subr.mxu0 %v2382
        %2763 = vmatpush1.msra.mxu0 %v2381
        %2764 = vmatprep.subr.mxu0 %v2380
        %2765 = vmatpush1.msra.mxu0 %v2379
        %2766 = vmatprep.subr.mxu0 %v2378
        %2767 = vmatpush1.msra.mxu0 %v2377
        %2768 = vmatprep.subr.mxu0 %v2376
        %2769 = vmatpush1.msra.mxu0 %v2375
        %2770 = vmatprep.subr.mxu0 %v2374
        %2771 = vmatpush1.msra.mxu0 %v2373
        %2772 = vmatprep.subr.mxu0 %v2372
        %2773 = vmatpush1.msra.mxu0 %v2371
        %2774 = vmatprep.subr.mxu0 %v2370
        %2775 = vmatpush1.msra.mxu0 %v2369
        %2776 = vmatprep.subr.mxu0 %v2368
        %2777 = vmatpush1.msra.mxu0 %v2367
        %2778 = vmatprep.subr.mxu0 %v2366
        %2779 = vmatpush1.msra.mxu0 %v2365
        %2780 = vmatprep.subr.mxu0 %v2364
        %2781 = vmatpush1.msra.mxu0 %v2363
        %2782 = vmatprep.subr.mxu0 %v2362
        %2783 = vmatpush1.msra.mxu0 %v2361
        %2784 = vmatprep.subr.mxu0 %v2360
        %2785 = vmatpush1.msra.mxu0 %v2359
        %2786 = vmatprep.subr.mxu0 %v2358
        %2787 = vmatpush1.msra.mxu0 %v2357
        %2788 = vmatprep.subr.mxu0 %v2356
        %2789 = vmatpush1.msra.mxu0 %v2355
        %2790 = vmatprep.subr.mxu0 %v2354
        %2791 = vmatpush1.msra.mxu0 %v2353
        %2792 = vmatprep.subr.mxu0 0.0
        %2793 = vmatpush2.msra.mxu0 0.0
        %2794 = vmatprep.subr.mxu0 0.0
        %2795 = vmatpush2.msra.mxu0 0.0
        %2796 = vmatprep.subr.mxu0 0.0
        %2797 = vmatpush2.msra.mxu0 0.0
        %2798 = vmatprep.subr.mxu0 0.0
        %2799 = vmatpush2.msra.mxu0 0.0
        %2800 = vmatprep.subr.mxu0 0.0
        %2801 = vmatpush2.msra.mxu0 0.0
        %2802 = vmatprep.subr.mxu0 0.0
        %2803 = vmatpush2.msra.mxu0 0.0
        %2804 = vmatprep.subr.mxu0 0.0
        %2805 = vmatpush2.msra.mxu0 0.0
        %2806 = vmatprep.subr.mxu0 0.0
        %2807 = vmatpush2.msra.mxu0 0.0
        %2808 = vmatprep.subr.mxu0 0.0
        %2809 = vmatpush2.msra.mxu0 0.0
        %2810 = vmatprep.subr.mxu0 0.0
        %2811 = vmatpush2.msra.mxu0 0.0
        %2812 = vmatprep.subr.mxu0 0.0
        %2813 = vmatpush2.msra.mxu0 0.0
        %2814 = vmatprep.subr.mxu0 0.0
        %2815 = vmatpush2.msra.mxu0 0.0
        %2816 = vmatprep.subr.mxu0 0.0
        %2817 = vmatpush2.msra.mxu0 0.0
        %2818 = vmatprep.subr.mxu0 0.0
        %2819 = vmatpush2.msra.mxu0 0.0
        %2820 = vmatprep.subr.mxu0 0.0
        %2821 = vmatpush2.msra.mxu0 0.0
        %2822 = vmatprep.subr.mxu0 0.0
        %2823 = vmatpush2.msra.mxu0 0.0
        %2824 = vmatprep.mubr.f32.mxu0 0.0
        %2825 = vmatmul.mubr.f32.gmra.mxu0 %v2758
        %v2826 = vpop.f32.mrf.mxu0
        %v2827 = vadd.f32 0.0, %v2826
        %v2828 = vpop.f32.mrf.mxu0
        %v2829 = vadd.f32 0.0, %v2828
        %2830 = vdwg.mxu0
        %v2831 = vadd.f32 %v2755, %v2827
        %v2832 = vadd.f32 %v2756, %v2829
        %2835 = vrot.lane.b32.xlu0 %v2831, 48
        %v2836 = vpop.permute.xlu0 %2835
        %2837 = vrot.lane.b32.xlu0 %v2832, 48
        %v2838 = vpop.permute.xlu0 %2837
        %v2839 = vsel %vm2465, %v2836, %v2838
        %v2841 = vmax.f32 %v2831, %v2839
        %v2842 = vmax.f32 %v2468, %v2841
        %v2843 = vld [vmem:[%s4] sm:$0x1]
        %v2845 = vlaneseq
        %v2846 = vshrl.u32 %v2845, 7
        %v2847 = vsub.s32 0, %v2846
        %v2848 = vrot.slane %v2843, %v2847
        %v2850 = vadd.f32 %v2842, %v2848
        %v2851 = vmax.f32 %v2850, 0.0
        %v2852 = vld [vmem:[%s5] sm:$0xff]
        %v2853 = vld [vmem:[%s5 + $0x8] sm:$0xff]
        %v2854 = vld [vmem:[%s5 + $0x10] sm:$0xff]
        %v2855 = vld [vmem:[%s5 + $0x18] sm:$0xff]
        %v2856 = vld [vmem:[%s5 + $0x20] sm:$0xff]
        %v2857 = vld [vmem:[%s5 + $0x28] sm:$0xff]
        %v2858 = vld [vmem:[%s5 + $0x30] sm:$0xff]
        %v2859 = vld [vmem:[%s5 + $0x38] sm:$0xff]
        %v2860 = vld [vmem:[%s5 + $0x40] sm:$0xff]
        %v2861 = vld [vmem:[%s5 + $0x48] sm:$0xff]
        %s2862 = scalar_lea.vmem %s5, 80
        %v2863 = vld [vmem:[%s2862] sm:$0xff]
        %v2864 = vld [vmem:[%s2862 + $0x8] sm:$0xff]
        %v2865 = vld [vmem:[%s2862 + $0x10] sm:$0xff]
        %v2866 = vld [vmem:[%s2862 + $0x18] sm:$0xff]
        %v2867 = vld [vmem:[%s2862 + $0x20] sm:$0xff]
        %v2868 = vld [vmem:[%s2862 + $0x28] sm:$0xff]
        %v2869 = vld [vmem:[%s2862 + $0x30] sm:$0xff]
        %v2870 = vld [vmem:[%s2862 + $0x38] sm:$0xff]
        %v2871 = vld [vmem:[%s2862 + $0x40] sm:$0xff]
        %v2872 = vld [vmem:[%s2862 + $0x48] sm:$0xff]
        %v2874 = vrot.slane %v2851, 1
        %vm2875 = vcmask 654336
        %v2876 = vsel %vm2875, %v2874, 0
        %2878 = vmatprep.subr.mxu0 0.0
        %2879 = vmatpush1.msra.mxu0 0.0
        %2880 = vmatprep.subr.mxu0 0.0
        %2881 = vmatpush1.msra.mxu0 0.0
        %2882 = vmatprep.subr.mxu0 0.0
        %2883 = vmatpush1.msra.mxu0 0.0
        %2884 = vmatprep.subr.mxu0 0.0
        %2885 = vmatpush1.msra.mxu0 0.0
        %2886 = vmatprep.subr.mxu0 0.0
        %2887 = vmatpush1.msra.mxu0 0.0
        %2888 = vmatprep.subr.mxu0 0.0
        %2889 = vmatpush1.msra.mxu0 0.0
        %2890 = vmatprep.subr.mxu0 0.0
        %2891 = vmatpush1.msra.mxu0 %v2872
        %2892 = vmatprep.subr.mxu0 0.0
        %2893 = vmatpush1.msra.mxu0 %v2871
        %2894 = vmatprep.subr.mxu0 0.0
        %2895 = vmatpush1.msra.mxu0 %v2870
        %2896 = vmatprep.subr.mxu0 0.0
        %2897 = vmatpush1.msra.mxu0 %v2869
        %2898 = vmatprep.subr.mxu0 0.0
        %2899 = vmatpush1.msra.mxu0 %v2868
        %2900 = vmatprep.subr.mxu0 0.0
        %2901 = vmatpush1.msra.mxu0 %v2867
        %2902 = vmatprep.subr.mxu0 0.0
        %2903 = vmatpush1.msra.mxu0 %v2866
        %2904 = vmatprep.subr.mxu0 0.0
        %2905 = vmatpush1.msra.mxu0 %v2865
        %2906 = vmatprep.subr.mxu0 0.0
        %2907 = vmatpush1.msra.mxu0 %v2864
        %2908 = vmatprep.subr.mxu0 0.0
        %2909 = vmatpush1.msra.mxu0 %v2863
        %2910 = vmatprep.subr.mxu0 0.0
        %2911 = vmatpush2.msra.mxu0 0.0
        %2912 = vmatprep.subr.mxu0 0.0
        %2913 = vmatpush2.msra.mxu0 0.0
        %2914 = vmatprep.subr.mxu0 0.0
        %2915 = vmatpush2.msra.mxu0 0.0
        %2916 = vmatprep.subr.mxu0 0.0
        %2917 = vmatpush2.msra.mxu0 0.0
        %2918 = vmatprep.subr.mxu0 0.0
        %2919 = vmatpush2.msra.mxu0 0.0
        %2920 = vmatprep.subr.mxu0 0.0
        %2921 = vmatpush2.msra.mxu0 0.0
        %2922 = vmatprep.subr.mxu0 0.0
        %2923 = vmatpush2.msra.mxu0 0.0
        %2924 = vmatprep.subr.mxu0 0.0
        %2925 = vmatpush2.msra.mxu0 0.0
        %2926 = vmatprep.subr.mxu0 0.0
        %2927 = vmatpush2.msra.mxu0 0.0
        %2928 = vmatprep.subr.mxu0 0.0
        %2929 = vmatpush2.msra.mxu0 0.0
        %2930 = vmatprep.subr.mxu0 0.0
        %2931 = vmatpush2.msra.mxu0 0.0
        %2932 = vmatprep.subr.mxu0 0.0
        %2933 = vmatpush2.msra.mxu0 0.0
        %2934 = vmatprep.subr.mxu0 0.0
        %2935 = vmatpush2.msra.mxu0 0.0
        %2936 = vmatprep.subr.mxu0 0.0
        %2937 = vmatpush2.msra.mxu0 0.0
        %2938 = vmatprep.subr.mxu0 0.0
        %2939 = vmatpush2.msra.mxu0 0.0
        %2940 = vmatprep.subr.mxu0 0.0
        %2941 = vmatpush2.msra.mxu0 0.0
        %2942 = vmatprep.mubr.f32.mxu0 0.0
        %2943 = vmatmul.mubr.f32.gmra.mxu0 %v2876
        %v2944 = vpop.f32.mrf.mxu0
        %v2945 = vadd.f32 0.0, %v2944
        %v2946 = vpop.f32.mrf.mxu0
        %2947 = vdwg.mxu0
        %v2948 = vsel %vm2875, %v2851, 0
        %2950 = vmatprep.subr.mxu0 0.0
        %2951 = vmatpush1.msra.mxu0 0.0
        %2952 = vmatprep.subr.mxu0 0.0
        %2953 = vmatpush1.msra.mxu0 0.0
        %2954 = vmatprep.subr.mxu0 0.0
        %2955 = vmatpush1.msra.mxu0 0.0
        %2956 = vmatprep.subr.mxu0 0.0
        %2957 = vmatpush1.msra.mxu0 0.0
        %2958 = vmatprep.subr.mxu0 0.0
        %2959 = vmatpush1.msra.mxu0 0.0
        %2960 = vmatprep.subr.mxu0 0.0
        %2961 = vmatpush1.msra.mxu0 0.0
        %2962 = vmatprep.subr.mxu0 0.0
        %2963 = vmatpush1.msra.mxu0 %v2861
        %2964 = vmatprep.subr.mxu0 0.0
        %2965 = vmatpush1.msra.mxu0 %v2860
        %2966 = vmatprep.subr.mxu0 0.0
        %2967 = vmatpush1.msra.mxu0 %v2859
        %2968 = vmatprep.subr.mxu0 0.0
        %2969 = vmatpush1.msra.mxu0 %v2858
        %2970 = vmatprep.subr.mxu0 0.0
        %2971 = vmatpush1.msra.mxu0 %v2857
        %2972 = vmatprep.subr.mxu0 0.0
        %2973 = vmatpush1.msra.mxu0 %v2856
        %2974 = vmatprep.subr.mxu0 0.0
        %2975 = vmatpush1.msra.mxu0 %v2855
        %2976 = vmatprep.subr.mxu0 0.0
        %2977 = vmatpush1.msra.mxu0 %v2854
        %2978 = vmatprep.subr.mxu0 0.0
        %2979 = vmatpush1.msra.mxu0 %v2853
        %2980 = vmatprep.subr.mxu0 0.0
        %2981 = vmatpush1.msra.mxu0 %v2852
        %2982 = vmatprep.subr.mxu0 0.0
        %2983 = vmatpush2.msra.mxu0 0.0
        %2984 = vmatprep.subr.mxu0 0.0
        %2985 = vmatpush2.msra.mxu0 0.0
        %2986 = vmatprep.subr.mxu0 0.0
        %2987 = vmatpush2.msra.mxu0 0.0
        %2988 = vmatprep.subr.mxu0 0.0
        %2989 = vmatpush2.msra.mxu0 0.0
        %2990 = vmatprep.subr.mxu0 0.0
        %2991 = vmatpush2.msra.mxu0 0.0
        %2992 = vmatprep.subr.mxu0 0.0
        %2993 = vmatpush2.msra.mxu0 0.0
        %2994 = vmatprep.subr.mxu0 0.0
        %2995 = vmatpush2.msra.mxu0 0.0
        %2996 = vmatprep.subr.mxu0 0.0
        %2997 = vmatpush2.msra.mxu0 0.0
        %2998 = vmatprep.subr.mxu0 0.0
        %2999 = vmatpush2.msra.mxu0 0.0
        %3000 = vmatprep.subr.mxu0 0.0
        %3001 = vmatpush2.msra.mxu0 0.0
        %3002 = vmatprep.subr.mxu0 0.0
        %3003 = vmatpush2.msra.mxu0 0.0
        %3004 = vmatprep.subr.mxu0 0.0
        %3005 = vmatpush2.msra.mxu0 0.0
        %3006 = vmatprep.subr.mxu0 0.0
        %3007 = vmatpush2.msra.mxu0 0.0
        %3008 = vmatprep.subr.mxu0 0.0
        %3009 = vmatpush2.msra.mxu0 0.0
        %3010 = vmatprep.subr.mxu0 0.0
        %3011 = vmatpush2.msra.mxu0 0.0
        %3012 = vmatprep.subr.mxu0 0.0
        %3013 = vmatpush2.msra.mxu0 0.0
        %3014 = vmatprep.mubr.f32.mxu0 0.0
        %3015 = vmatmul.mubr.f32.gmra.mxu0 %v2948
        %v3016 = vpop.f32.mrf.mxu0
        %v3017 = vadd.f32 %v2945, %v3016
        %v3018 = vpop.f32.mrf.mxu0
        %3019 = vdwg.mxu0
        %s3020 = scalar_lea.vmem %s5, 160
        %v3021 = vld [vmem:[%s3020] sm:$0xff]
        %v3022 = vld [vmem:[%s3020 + $0x8] sm:$0xff]
        %v3023 = vld [vmem:[%s3020 + $0x10] sm:$0xff]
        %v3024 = vld [vmem:[%s3020 + $0x18] sm:$0xff]
        %v3025 = vld [vmem:[%s3020 + $0x20] sm:$0xff]
        %v3026 = vld [vmem:[%s3020 + $0x28] sm:$0xff]
        %v3027 = vld [vmem:[%s3020 + $0x30] sm:$0xff]
        %v3028 = vld [vmem:[%s3020 + $0x38] sm:$0xff]
        %v3029 = vld [vmem:[%s3020 + $0x40] sm:$0xff]
        %v3030 = vld [vmem:[%s3020 + $0x48] sm:$0xff]
        %v3031 = vrot.slane %v2851, 2
        %v3032 = vsel %vm2875, %v3031, 0
        %3034 = vmatprep.subr.mxu0 0.0
        %3035 = vmatpush1.msra.mxu0 0.0
        %3036 = vmatprep.subr.mxu0 0.0
        %3037 = vmatpush1.msra.mxu0 0.0
        %3038 = vmatprep.subr.mxu0 0.0
        %3039 = vmatpush1.msra.mxu0 0.0
        %3040 = vmatprep.subr.mxu0 0.0
        %3041 = vmatpush1.msra.mxu0 0.0
        %3042 = vmatprep.subr.mxu0 0.0
        %3043 = vmatpush1.msra.mxu0 0.0
        %3044 = vmatprep.subr.mxu0 0.0
        %3045 = vmatpush1.msra.mxu0 0.0
        %3046 = vmatprep.subr.mxu0 0.0
        %3047 = vmatpush1.msra.mxu0 %v3030
        %3048 = vmatprep.subr.mxu0 0.0
        %3049 = vmatpush1.msra.mxu0 %v3029
        %3050 = vmatprep.subr.mxu0 0.0
        %3051 = vmatpush1.msra.mxu0 %v3028
        %3052 = vmatprep.subr.mxu0 0.0
        %3053 = vmatpush1.msra.mxu0 %v3027
        %3054 = vmatprep.subr.mxu0 0.0
        %3055 = vmatpush1.msra.mxu0 %v3026
        %3056 = vmatprep.subr.mxu0 0.0
        %3057 = vmatpush1.msra.mxu0 %v3025
        %3058 = vmatprep.subr.mxu0 0.0
        %3059 = vmatpush1.msra.mxu0 %v3024
        %3060 = vmatprep.subr.mxu0 0.0
        %3061 = vmatpush1.msra.mxu0 %v3023
        %3062 = vmatprep.subr.mxu0 0.0
        %3063 = vmatpush1.msra.mxu0 %v3022
        %3064 = vmatprep.subr.mxu0 0.0
        %3065 = vmatpush1.msra.mxu0 %v3021
        %3066 = vmatprep.subr.mxu0 0.0
        %3067 = vmatpush2.msra.mxu0 0.0
        %3068 = vmatprep.subr.mxu0 0.0
        %3069 = vmatpush2.msra.mxu0 0.0
        %3070 = vmatprep.subr.mxu0 0.0
        %3071 = vmatpush2.msra.mxu0 0.0
        %3072 = vmatprep.subr.mxu0 0.0
        %3073 = vmatpush2.msra.mxu0 0.0
        %3074 = vmatprep.subr.mxu0 0.0
        %3075 = vmatpush2.msra.mxu0 0.0
        %3076 = vmatprep.subr.mxu0 0.0
        %3077 = vmatpush2.msra.mxu0 0.0
        %3078 = vmatprep.subr.mxu0 0.0
        %3079 = vmatpush2.msra.mxu0 0.0
        %3080 = vmatprep.subr.mxu0 0.0
        %3081 = vmatpush2.msra.mxu0 0.0
        %3082 = vmatprep.subr.mxu0 0.0
        %3083 = vmatpush2.msra.mxu0 0.0
        %3084 = vmatprep.subr.mxu0 0.0
        %3085 = vmatpush2.msra.mxu0 0.0
        %3086 = vmatprep.subr.mxu0 0.0
        %3087 = vmatpush2.msra.mxu0 0.0
        %3088 = vmatprep.subr.mxu0 0.0
        %3089 = vmatpush2.msra.mxu0 0.0
        %3090 = vmatprep.subr.mxu0 0.0
        %3091 = vmatpush2.msra.mxu0 0.0
        %3092 = vmatprep.subr.mxu0 0.0
        %3093 = vmatpush2.msra.mxu0 0.0
        %3094 = vmatprep.subr.mxu0 0.0
        %3095 = vmatpush2.msra.mxu0 0.0
        %3096 = vmatprep.subr.mxu0 0.0
        %3097 = vmatpush2.msra.mxu0 0.0
        %3098 = vmatprep.mubr.f32.mxu0 0.0
        %3099 = vmatmul.mubr.f32.gmra.mxu0 %v3032
        %v3100 = vpop.f32.mrf.mxu0
        %v3101 = vadd.f32 0.0, %v3100
        %v3102 = vpop.f32.mrf.mxu0
        %3103 = vdwg.mxu0
        %v3104 = vadd.f32 %v3017, %v3101
        %s3105 = scalar_lea.vmem %s5, 240
        %v3106 = vld [vmem:[%s3105] sm:$0xff]
        %v3107 = vld [vmem:[%s3105 + $0x8] sm:$0xff]
        %v3108 = vld [vmem:[%s3105 + $0x10] sm:$0xff]
        %v3109 = vld [vmem:[%s3105 + $0x18] sm:$0xff]
        %v3110 = vld [vmem:[%s3105 + $0x20] sm:$0xff]
        %v3111 = vld [vmem:[%s3105 + $0x28] sm:$0xff]
        %v3112 = vld [vmem:[%s3105 + $0x30] sm:$0xff]
        %v3113 = vld [vmem:[%s3105 + $0x38] sm:$0xff]
        %v3114 = vld [vmem:[%s3105 + $0x40] sm:$0xff]
        %v3115 = vld [vmem:[%s3105 + $0x48] sm:$0xff]
        %v3116 = vrot.slane %v2851, 3
        %v3117 = vsel %vm2875, %v3116, 0
        %3119 = vmatprep.subr.mxu0 0.0
        %3120 = vmatpush1.msra.mxu0 0.0
        %3121 = vmatprep.subr.mxu0 0.0
        %3122 = vmatpush1.msra.mxu0 0.0
        %3123 = vmatprep.subr.mxu0 0.0
        %3124 = vmatpush1.msra.mxu0 0.0
        %3125 = vmatprep.subr.mxu0 0.0
        %3126 = vmatpush1.msra.mxu0 0.0
        %3127 = vmatprep.subr.mxu0 0.0
        %3128 = vmatpush1.msra.mxu0 0.0
        %3129 = vmatprep.subr.mxu0 0.0
        %3130 = vmatpush1.msra.mxu0 0.0
        %3131 = vmatprep.subr.mxu0 0.0
        %3132 = vmatpush1.msra.mxu0 %v3115
        %3133 = vmatprep.subr.mxu0 0.0
        %3134 = vmatpush1.msra.mxu0 %v3114
        %3135 = vmatprep.subr.mxu0 0.0
        %3136 = vmatpush1.msra.mxu0 %v3113
        %3137 = vmatprep.subr.mxu0 0.0
        %3138 = vmatpush1.msra.mxu0 %v3112
        %3139 = vmatprep.subr.mxu0 0.0
        %3140 = vmatpush1.msra.mxu0 %v3111
        %3141 = vmatprep.subr.mxu0 0.0
        %3142 = vmatpush1.msra.mxu0 %v3110
        %3143 = vmatprep.subr.mxu0 0.0
        %3144 = vmatpush1.msra.mxu0 %v3109
        %3145 = vmatprep.subr.mxu0 0.0
        %3146 = vmatpush1.msra.mxu0 %v3108
        %3147 = vmatprep.subr.mxu0 0.0
        %3148 = vmatpush1.msra.mxu0 %v3107
        %3149 = vmatprep.subr.mxu0 0.0
        %3150 = vmatpush1.msra.mxu0 %v3106
        %3151 = vmatprep.subr.mxu0 0.0
        %3152 = vmatpush2.msra.mxu0 0.0
        %3153 = vmatprep.subr.mxu0 0.0
        %3154 = vmatpush2.msra.mxu0 0.0
        %3155 = vmatprep.subr.mxu0 0.0
        %3156 = vmatpush2.msra.mxu0 0.0
        %3157 = vmatprep.subr.mxu0 0.0
        %3158 = vmatpush2.msra.mxu0 0.0
        %3159 = vmatprep.subr.mxu0 0.0
        %3160 = vmatpush2.msra.mxu0 0.0
        %3161 = vmatprep.subr.mxu0 0.0
        %3162 = vmatpush2.msra.mxu0 0.0
        %3163 = vmatprep.subr.mxu0 0.0
        %3164 = vmatpush2.msra.mxu0 0.0
        %3165 = vmatprep.subr.mxu0 0.0
        %3166 = vmatpush2.msra.mxu0 0.0
        %3167 = vmatprep.subr.mxu0 0.0
        %3168 = vmatpush2.msra.mxu0 0.0
        %3169 = vmatprep.subr.mxu0 0.0
        %3170 = vmatpush2.msra.mxu0 0.0
        %3171 = vmatprep.subr.mxu0 0.0
        %3172 = vmatpush2.msra.mxu0 0.0
        %3173 = vmatprep.subr.mxu0 0.0
        %3174 = vmatpush2.msra.mxu0 0.0
        %3175 = vmatprep.subr.mxu0 0.0
        %3176 = vmatpush2.msra.mxu0 0.0
        %3177 = vmatprep.subr.mxu0 0.0
        %3178 = vmatpush2.msra.mxu0 0.0
        %3179 = vmatprep.subr.mxu0 0.0
        %3180 = vmatpush2.msra.mxu0 0.0
        %3181 = vmatprep.subr.mxu0 0.0
        %3182 = vmatpush2.msra.mxu0 0.0
        %3183 = vmatprep.mubr.f32.mxu0 0.0
        %3184 = vmatmul.mubr.f32.gmra.mxu0 %v3117
        %v3185 = vpop.f32.mrf.mxu0
        %v3186 = vadd.f32 0.0, %v3185
        %v3187 = vpop.f32.mrf.mxu0
        %3188 = vdwg.mxu0
        %v3189 = vadd.f32 %v3104, %v3186
        %v3190 = vld [vmem:[%s6] sm:$0x1]
        %v3191 = vadd.f32 %v3189, %v3190
        %v3192 = vmax.f32 %v3191, 0.0
        %v3193 = vld [vmem:[%s7] sm:$0xff]
        %v3194 = vld [vmem:[%s7 + $0x8] sm:$0xff]
        %v3195 = vld [vmem:[%s7 + $0x10] sm:$0xff]
        %v3196 = vld [vmem:[%s7 + $0x18] sm:$0xff]
        %v3197 = vld [vmem:[%s7 + $0x20] sm:$0xff]
        %v3198 = vld [vmem:[%s7 + $0x28] sm:$0xff]
        %v3199 = vld [vmem:[%s7 + $0x30] sm:$0x3]
        %v3200 = vld [vmem:[%s8] sm:$0x1]
        %vm3201 = vcmask 408576
        %v3203 = vsel %vm3201, %v3192, 0
        %vm3205 = vcmask 1041408
        %v3207 = vsel %vm3205, %v3199, 0
        %3209 = vmatprep.subr.mxu0 0.0
        %3210 = vmatpush1.msra.mxu0 0.0
        %3211 = vmatprep.subr.mxu0 0.0
        %3212 = vmatpush1.msra.mxu0 0.0
        %3213 = vmatprep.subr.mxu0 0.0
        %3214 = vmatpush1.msra.mxu0 0.0
        %3215 = vmatprep.subr.mxu0 0.0
        %3216 = vmatpush1.msra.mxu0 0.0
        %3217 = vmatprep.subr.mxu0 0.0
        %3218 = vmatpush1.msra.mxu0 0.0
        %3219 = vmatprep.subr.mxu0 0.0
        %3220 = vmatpush1.msra.mxu0 0.0
        %3221 = vmatprep.subr.mxu0 0.0
        %3222 = vmatpush1.msra.mxu0 0.0
        %3223 = vmatprep.subr.mxu0 0.0
        %3224 = vmatpush1.msra.mxu0 0.0
        %3225 = vmatprep.subr.mxu0 0.0
        %3226 = vmatpush1.msra.mxu0 0.0
        %3227 = vmatprep.subr.mxu0 0.0
        %3228 = vmatpush1.msra.mxu0 %v3207
        %3229 = vmatprep.subr.mxu0 0.0
        %3230 = vmatpush1.msra.mxu0 %v3198
        %3231 = vmatprep.subr.mxu0 0.0
        %3232 = vmatpush1.msra.mxu0 %v3197
        %3233 = vmatprep.subr.mxu0 0.0
        %3234 = vmatpush1.msra.mxu0 %v3196
        %3235 = vmatprep.subr.mxu0 0.0
        %3236 = vmatpush1.msra.mxu0 %v3195
        %3237 = vmatprep.subr.mxu0 0.0
        %3238 = vmatpush1.msra.mxu0 %v3194
        %3239 = vmatprep.subr.mxu0 0.0
        %3240 = vmatpush1.msra.mxu0 %v3193
        %3241 = vmatprep.subr.mxu0 0.0
        %3242 = vmatpush2.msra.mxu0 0.0
        %3243 = vmatprep.subr.mxu0 0.0
        %3244 = vmatpush2.msra.mxu0 0.0
        %3245 = vmatprep.subr.mxu0 0.0
        %3246 = vmatpush2.msra.mxu0 0.0
        %3247 = vmatprep.subr.mxu0 0.0
        %3248 = vmatpush2.msra.mxu0 0.0
        %3249 = vmatprep.subr.mxu0 0.0
        %3250 = vmatpush2.msra.mxu0 0.0
        %3251 = vmatprep.subr.mxu0 0.0
        %3252 = vmatpush2.msra.mxu0 0.0
        %3253 = vmatprep.subr.mxu0 0.0
        %3254 = vmatpush2.msra.mxu0 0.0
        %3255 = vmatprep.subr.mxu0 0.0
        %3256 = vmatpush2.msra.mxu0 0.0
        %3257 = vmatprep.subr.mxu0 0.0
        %3258 = vmatpush2.msra.mxu0 0.0
        %3259 = vmatprep.subr.mxu0 0.0
        %3260 = vmatpush2.msra.mxu0 0.0
        %3261 = vmatprep.subr.mxu0 0.0
        %3262 = vmatpush2.msra.mxu0 0.0
        %3263 = vmatprep.subr.mxu0 0.0
        %3264 = vmatpush2.msra.mxu0 0.0
        %3265 = vmatprep.subr.mxu0 0.0
        %3266 = vmatpush2.msra.mxu0 0.0
        %3267 = vmatprep.subr.mxu0 0.0
        %3268 = vmatpush2.msra.mxu0 0.0
        %3269 = vmatprep.subr.mxu0 0.0
        %3270 = vmatpush2.msra.mxu0 0.0
        %3271 = vmatprep.subr.mxu0 0.0
        %3272 = vmatpush2.msra.mxu0 0.0
        %3273 = vmatprep.mubr.f32.mxu0 0.0
        %3274 = vmatmul.mubr.f32.gmra.mxu0 %v3203
        %v3275 = vpop.f32.mrf.mxu0
        %v3276 = vadd.f32 %v3200, %v3275
        %v3277 = vpop.f32.mrf.mxu0
        %3278 = vdwg.mxu0
        %vm3279 = vcmask 73728
        %v3280 = vsel %vm3279, %v3276, -inf
        %3281 = vmax.xlane.f32.xlu0 %v3280
        %v3282 = vpop.xlane.xlu0 %3281
        %v3283 = vsub.f32 %v3276, %v3282
        %v3284 = vmul.f32 %v3283, 1.442695
        %v3285 = vpow.pop %v3284
        %v3286 = vsel %vm3279, %v3285, 0.0
        %3287 = vadd.xlane.f32.xlu0 %v3286
        %v3288 = vpop.xlane.xlu0 %3287
        %v3289 = vlog2.pop %v3288
        %v3290 = vmul.f32 %v3289, 0.6931472
        %v3291 = vsub.f32 %v3283, %v3290
        %3292 = vst.msk [vmem:[%s324] sm:$0x1] %vm3279, %v3291
        %s3293 = sand.u32 %s225, 1
        %s3294 = scalar_lea.sflag [#allocation3], %s3293
        %s3295 = sand.u32 %s225, 1
        %s3296 = scalar_lea.vmem [#allocation2], %s3295
        // Predicated region
        $region57: #{net_forward.1} parent=55 // pred_check
          %p3297 = pneg %p235
        $region58: #{net_forward.1} parent=55 // pred_check_branch
          %3299 = sbr.rel (%p3297) target = $region60
        $region59: #{net_forward.1} parent=55 // pred_region
          %s3301 = ssub.s32 16, 16
          %3302 = vsyncadd %s3294, %s3301
          %s3303 = smul.addr %s23, 16
          %s3304 = scalar_lea.hbm %s9, %s3303
          %s3306 = sshll.u32 %s3296, 4
          %s3307 = int_to_ptr.vmem [resolvable:$true] %s3306
          %3309 = dma.vmem_to_hbm [thread:$0]  %s3307, 16, %s3304, %s3294
        $region60: #{net_forward.1} parent=55 // pred_fallthru
          _
      $region56: #{net_forward.1} parent=5 // pred_fallthru
        _
      %p3310 = scmp.le.s32.totalorder 2, %s18
      // Predicated region
      $region61: #{net_forward.1} parent=5 // pred_check
        %p3311 = pneg %p3310
      $region62: #{net_forward.1} parent=5 // pred_check_branch
        %3313 = sbr.rel (%p3311) target = $region64
      $region63: #{net_forward.1} parent=5 // pred_region
        %s3314 = ssub.s32 %s18, 2
        // Predicated region
        $region65: #{net_forward.1} parent=63 // pred_check
          %p3315 = pneg %p241
        $region66: #{net_forward.1} parent=63 // pred_check_branch
          %3317 = sbr.rel (%p3315) target = $region68
        $region67: #{net_forward.1} parent=63 // pred_region
          %s3318 = sand.u32 %s226, 1
          %s3319 = scalar_lea.sflag [#allocation3], %s3318
          %s3320 = sand.u32 %s226, 1
          %s3321 = scalar_lea.vmem [#allocation2], %s3320
          %3322 = dma.done %s3319, 16
        $region68: #{net_forward.1} parent=63 // pred_fallthru
          _
      $region64: #{net_forward.1} parent=5 // pred_fallthru
        _
    $region6: #{net_forward.1} parent=1 // loop_footer
      %s22 = sadd.s32 1, %s18
    $region7: #{net_forward.1} parent=1 // loop_footer_branch
      %17 = sbr.rel target = $region3
    $region8: #{net_forward.1} parent=1 // loop_exit
      _
    %3323 = vsyncpa [#allocation3], 1
    %s3324 = scalar_lea.sflag [#allocation3], 1
    %3325 = vsyncpa %s3324, 1

</llo_original>
